<compile_context>
chip_gen: v6e
topology: v6e:2x2x1
jax: 0.10.0
libtpu: 0.0.40
codegen_flags: <defaults>
</compile_context>

<pallas_src>
import functools

import jax
import jax.numpy as jnp
from jax import lax
from jax.experimental import pallas as pl
from jax.experimental.pallas import tpu as pltpu


OUT_PAD = 128  # predictor output zero-padded to a full 128-lane vreg (lane-dense store)


# ------------------------------ small helpers ------------------------------ #

def _round_up(x, m):
    return ((x + m - 1) // m) * m


def _cdiv(a, b):
    return (a + b - 1) // b


# ---------------------------- parameter creation ---------------------------- #

def _linear_init(key, fan_in, fan_out):
    """torch nn.Linear default init; W stored as (in, out) so y = x @ W + b."""
    kw, kb = jax.random.split(key)
    bound = 1.0 / float(fan_in) ** 0.5
    w = jax.random.uniform(kw, (fan_in, fan_out), jnp.float32, -bound, bound)
    b = jax.random.uniform(kb, (1, fan_out), jnp.float32, -bound, bound)
    return w, b


def _init_mlp(key, in_dim, layer_sizes):
    sizes = [in_dim] + list(layer_sizes)
    layers = []
    for i in range(len(sizes) - 1):
        key, sub = jax.random.split(key)
        layers.append(_linear_init(sub, sizes[i], sizes[i + 1]))
    return key, layers


def _init_resdnn(key, input_dim, hidden_units):
    if input_dim != hidden_units[0][0]:
        raise ValueError("ResDNN: the feature size must equal the hidden size")
    hu = [list(h) for h in hidden_units]
    hu[0] = [input_dim] + hu[0]                       # same mutation as the torch module
    blocks = []
    for h in hu:
        key, layers = _init_mlp(key, h[0], h[1:])     # MLP(in_dim=h[0], layers=h[1:])
        blocks.append(layers)                         # blocks after the first are empty MLPs
    return key, blocks


def init_base_sim_model3_params(key, args):
    # TODO(synk): only args['activation'] == 'relu' is implemented in the kernel.
    assert str(args["activation"]).lower() == "relu"
    E, L = args["encoder_hidden_size"], args["encoder_hidden_layers"]
    P, Lp = args["processor_hidden_size"], args["processor_hidden_layers"]
    Dd, Ld = args["decoder_hidden_size"], args["decoder_hidden_layers"]
    d_ped, d_obs = args["ped_feature_dim"], args["obs_feature_dim"]
    d_self = d_ped

    params = {}
    key, params["ped_encoder"] = _init_mlp(key, d_ped, [E] * L)
    if d_obs > 0:
        key, params["obs_encoder"] = _init_mlp(key, d_obs, [E] * L)
    else:
        params["obs_encoder"] = []
    key, params["self_encoder1"] = _init_mlp(key, 2, [E // 2] * L)
    key, params["self_encoder2"] = _init_mlp(key, d_self - 2, [E // 2] * L)
    key, params["ped_processor"] = _init_resdnn(key, E, [[P] for _ in range(Lp)])
    key, params["self_processor"] = _init_resdnn(key, (E // 2) * 2, [[P] for _ in range(Lp)])
    key, params["ped_decoder"] = _init_mlp(key, 2 * P, [Dd] * Ld)
    key, params["predictor"] = _init_mlp(key, Dd, [2])
    return params


# ------------------------------ fused kernel ------------------------------- #

def _make_fused_kernel(layout, K1, K2, tb, has_obs):
    """layout: tuple of (stage_name, n_layers); params arrive flattened (W0,b0,W1,b1,...)."""

    def kernel(*refs):
        out_ref = refs[-1]
        n_feat = 3 if has_obs else 2
        ped_ref = refs[0]
        obs_ref = refs[1] if has_obs else None
        self_ref = refs[n_feat - 1]
        param_refs = refs[n_feat:-1]

        stages, idx = {}, 0
        for name, n_layers in layout:
            stages[name] = [(param_refs[idx + 2 * j], param_refs[idx + 2 * j + 1])
                            for j in range(n_layers)]
            idx += 2 * n_layers

        def mlp(x, layers):
            # Linear -> ReLU between layers, Identity after the last (== torch MLP default).
            n = len(layers)
            for li, (w_ref, b_ref) in enumerate(layers):
                x = jnp.dot(x, w_ref[...], preferred_element_type=jnp.float32) + b_ref[...]
                if li < n - 1:
                    x = jnp.maximum(x, 0.0)
            return x

        def res_block(x, layers):
            # ResBlock: MLP with ReLU after EVERY layer (output_act == activation), plus x.
            # An empty layer list (ResDNN blocks beyond the first) degenerates to x + x.
            y = x
            for w_ref, b_ref in layers:
                y = jnp.maximum(
                    jnp.dot(y, w_ref[...], preferred_element_type=jnp.float32) + b_ref[...],
                    0.0)
            return y + x

        # ---- neighbour branch: ped (and obs) encoder -> last ResBlock -> sum over K ----
        ped_x = jnp.concatenate([ped_ref[k] for k in range(K1)], axis=0)      # (K1*tb, d_ped)
        ped_y = res_block(mlp(ped_x, stages["ped_encoder"]), stages["ped_proc_last"])
        nb_sum = ped_y[0:tb, :]
        for k in range(1, K1):
            nb_sum = nb_sum + ped_y[k * tb:(k + 1) * tb, :]
        if has_obs:
            obs_x = jnp.concatenate([obs_ref[k] for k in range(K2)], axis=0)  # (K2*tb, d_obs)
            obs_y = res_block(mlp(obs_x, stages["obs_encoder"]), stages["ped_proc_last"])
            for k in range(K2):
                nb_sum = nb_sum + obs_y[k * tb:(k + 1) * tb, :]
        P = nb_sum.shape[-1]

        # ---- self branch: unit destination vector + two half-width encoders ----
        # The [:, :2] / [:, 2:] lane slices that feed the encoders were folded host-side
        # into zero-padded first-layer weights, so both encoders consume the full row.
        sf = self_ref[...]                                                    # (tb, d_self)
        dvec = sf[:, 0:2]
        inv_norm = lax.rsqrt(jnp.sum(dvec * dvec, axis=-1, keepdims=True))    # EUP rsqrt
        e1 = mlp(sf * inv_norm, stages["self_encoder1"])                      # (tb, E/2)
        e2 = mlp(sf, stages["self_encoder2"])                                 # (tb, E/2)
        E2 = e1.shape[-1]

        # self_processor's last ResBlock on concat([e1, e2]); the concat is folded into the
        # first matmul by splitting its weight rows, and the residual is kept as two halves.
        sp = stages["self_proc_last"]
        if sp:
            w0_ref, b0_ref = sp[0]
            w0 = w0_ref[...]
            y = (jnp.dot(e1, w0[:E2], preferred_element_type=jnp.float32)
                 + jnp.dot(e2, w0[E2:], preferred_element_type=jnp.float32)
                 + b0_ref[...])
            y = jnp.maximum(y, 0.0)
            for w_ref, b_ref in sp[1:]:
                y = jnp.maximum(
                    jnp.dot(y, w_ref[...], preferred_element_type=jnp.float32) + b_ref[...],
                    0.0)
            s_left = y[:, :E2] + e1
            s_right = y[:, E2:] + e2
        else:                                 # empty last block => identity MLP => 2x
            s_left, s_right = e1 + e1, e2 + e2

        # ---- decoder: first layer consumes [nb_sum | s_left | s_right] via split weights ----
        dec = stages["ped_decoder"]
        wd_ref, bd_ref = dec[0]
        wd = wd_ref[...]
        h = (jnp.dot(nb_sum, wd[:P], preferred_element_type=jnp.float32)
             + jnp.dot(s_left, wd[P:P + E2], preferred_element_type=jnp.float32)
             + jnp.dot(s_right, wd[P + E2:], preferred_element_type=jnp.float32)
             + bd_ref[...])
        n_dec = len(dec)
        if n_dec > 1:
            h = jnp.maximum(h, 0.0)
            for j, (w_ref, b_ref) in enumerate(dec[1:], start=1):
                h = jnp.dot(h, w_ref[...], preferred_element_type=jnp.float32) + b_ref[...]
                if j < n_dec - 1:
                    h = jnp.maximum(h, 0.0)

        # ---- predictor (single Linear, output zero-padded to 128 lanes => dense vst) ----
        out_ref[...] = mlp(h, stages["predictor"]).astype(out_ref.dtype)

    return kernel


# ------------------------------ host wrapper -------------------------------- #

def _pick_batch_tile(n, cap=256):
    """Batch tile: multiple of 8, capped, and (when possible) >=2 grid steps so the BlockSpec
    pipeline overlaps DMA with compute and both v7x TensorCores get work."""
    n8 = _round_up(max(n, 1), 8)
    if n8 <= 8:
        return 8
    tb = min(cap, n8)
    if _cdiv(n8, tb) < 2:
        tb = max(8, _round_up(_cdiv(n8, 2), 8))
    return tb


@functools.partial(jax.jit, static_argnames=("batch_tile_cap",))
def base_sim_model3_forward(params, ped_features, obs_features, self_features,
                            batch_tile_cap=256):
    N, K1, d_ped = ped_features.shape
    d_self = self_features.shape[1]
    has_obs = (len(params["obs_encoder"]) > 0 and obs_features is not None
               and obs_features.shape[1] > 0)
    K2 = obs_features.shape[1] if has_obs else 0
    d_obs = obs_features.shape[2] if has_obs else 0

    tb = _pick_batch_tile(N, batch_tile_cap)
    n_pad = _cdiv(N, tb) * tb
    pad = n_pad - N
    if pad:
        ped_features = jnp.concatenate(
            [ped_features, jnp.zeros((pad, K1, d_ped), ped_features.dtype)], axis=0)
        if has_obs:
            obs_features = jnp.concatenate(
                [obs_features, jnp.zeros((pad, K2, d_obs), obs_features.dtype)], axis=0)
        # padded rows get all-ones self features so the destination norm stays finite
        self_features = jnp.concatenate(
            [self_features, jnp.ones((pad, d_self), self_features.dtype)], axis=0)

    # neighbour axis first so the kernel indexes whole (tb, d) row blocks per neighbour
    ped_t = jnp.transpose(ped_features, (1, 0, 2))                # (K1, n_pad, d_ped)
    obs_t = jnp.transpose(obs_features, (1, 0, 2)) if has_obs else None

    # ---- fold the self-feature lane splits into zero-padded first-layer weights ----
    w1, b1 = params["self_encoder1"][0]                           # (2, E/2)
    w1_pad = jnp.zeros((d_self, w1.shape[1]), w1.dtype).at[:2, :].set(w1)
    enc1 = [(w1_pad, b1)] + list(params["self_encoder1"][1:])
    w2, b2 = params["self_encoder2"][0]                           # (d_self-2, E/2)
    w2_pad = jnp.zeros((d_self, w2.shape[1]), w2.dtype).at[2:, :].set(w2)
    enc2 = [(w2_pad, b2)] + list(params["self_encoder2"][1:])

    # ---- flatten parameters (only the LIVE last ResDNN block of each processor) ----
    layout, flat = [], []

    def add_stage(name, layers):
        layout.append((name, len(layers)))
        for w, b in layers:
            flat.append(w)
            flat.append(b)

    add_stage("ped_encoder", params["ped_encoder"])
    if has_obs:
        add_stage("obs_encoder", params["obs_encoder"])
    add_stage("self_encoder1", enc1)
    add_stage("self_encoder2", enc2)
    add_stage("ped_proc_last", params["ped_processor"][-1])      # dead blocks skipped
    add_stage("self_proc_last", params["self_processor"][-1])
    add_stage("ped_decoder", params["ped_decoder"])
    wp, bp = params["predictor"][0]
    wp_pad = jnp.zeros((wp.shape[0], OUT_PAD), wp.dtype).at[:, :wp.shape[1]].set(wp)
    bp_pad = jnp.zeros((1, OUT_PAD), bp.dtype).at[:, :bp.shape[1]].set(bp)
    add_stage("predictor", [(wp_pad, bp_pad)])

    # ---- block specs ----
    grid = (n_pad // tb,)
    in_specs = [pl.BlockSpec((K1, tb, d_ped), lambda i: (0, i, 0))]
    inputs = [ped_t]
    if has_obs:
        in_specs.append(pl.BlockSpec((K2, tb, d_obs), lambda i: (0, i, 0)))
        inputs.append(obs_t)
    in_specs.append(pl.BlockSpec((tb, d_self), lambda i: (i, 0)))
    inputs.append(self_features)
    for p in flat:
        in_specs.append(pl.BlockSpec(p.shape, lambda i: (0, 0)))  # weights resident in VMEM
        inputs.append(p)
    out_spec = pl.BlockSpec((tb, OUT_PAD), lambda i: (i, 0))

    # ---- advisory cost estimate so XLA schedules around the custom call sensibly ----
    def mm_flops(rows, layers):
        return sum(2 * rows * w.shape[0] * w.shape[1] for w, _ in layers)

    flops = mm_flops(n_pad * K1, params["ped_encoder"])
    if has_obs:
        flops += mm_flops(n_pad * K2, params["obs_encoder"])
    flops += mm_flops(n_pad * (K1 + K2), params["ped_processor"][-1])
    flops += mm_flops(n_pad, enc1)
    flops += mm_flops(n_pad, enc2)
    flops += mm_flops(n_pad, params["self_processor"][-1])
    flops += mm_flops(n_pad, params["ped_decoder"])
    flops += 2 * n_pad * wp_pad.shape[0] * OUT_PAD
    bytes_accessed = (sum(int(a.size) * a.dtype.itemsize for a in inputs)
                      + n_pad * OUT_PAD * 4)
    cost = pl.CostEstimate(flops=int(flops), transcendentals=int(n_pad),
                           bytes_accessed=int(bytes_accessed))

    kernel = _make_fused_kernel(tuple(layout), K1, K2, tb, has_obs)
    out = pl.pallas_call(
        kernel,
        out_shape=jax.ShapeDtypeStruct((n_pad, OUT_PAD), jnp.float32),
        grid_spec=pl.GridSpec(grid=grid, in_specs=in_specs, out_specs=out_spec),
        compiler_params=pltpu.CompilerParams(dimension_semantics=("parallel",)),
        cost_estimate=cost,
    )(*inputs)
    return out[:N, :2]


# --------------------------- pure-JAX reference ----------------------------- #

def _mlp_ref(x, layers):
    n = len(layers)
    for i, (w, b) in enumerate(layers):
        x = x @ w + b
        if i < n - 1:
            x = jnp.maximum(x, 0.0)
    return x


def _res_block_ref(x, layers):
    y = x
    for w, b in layers:
        y = jnp.maximum(y @ w + b, 0.0)
    return y + x


def _resdnn_ref(x, blocks):
    out = None
    for layers in blocks:        # faithful: every block applied to the ORIGINAL x; last wins
        out = _res_block_ref(x, layers)
    return out


def base_sim_model3_ref(params, ped_features, obs_features, self_features):
    ped_emb = _mlp_ref(ped_features, params["ped_encoder"])
    if len(params["obs_encoder"]) > 0:
        obs_emb = _mlp_ref(obs_features, params["obs_encoder"])
        ped_emb = jnp.concatenate([ped_emb, obs_emb], axis=1)
    d = self_features[:, :2]
    dest = d / jnp.linalg.norm(d, axis=1, keepdims=True)
    s1 = _mlp_ref(dest, params["self_encoder1"])
    s2 = _mlp_ref(self_features[:, 2:], params["self_encoder2"])
    s = jnp.concatenate([s1, s2], axis=-1)
    ped_emb = _resdnn_ref(ped_emb, params["ped_processor"])
    s = _resdnn_ref(s, params["self_processor"])
    ped_emb = jnp.sum(ped_emb, axis=1)
    h = jnp.concatenate([ped_emb, s], axis=1)
    h = _mlp_ref(h, params["ped_decoder"])
    return _mlp_ref(h, params["predictor"])


# ---------------------------------- main ------------------------------------ #

if __name__ == "__main__":
    args = dict(
        ped_feature_dim=8,
        obs_feature_dim=6,
        encoder_hidden_size=32,
        encoder_hidden_layers=2,
        processor_hidden_size=32,     # ResDNN requires this == encoder_hidden_size
        processor_hidden_layers=1,
        decoder_hidden_size=32,
        decoder_hidden_layers=2,
        dropout=0.0,                  # dropout == 0 -> identity
        activation="relu",
    )
    N, K1, K2 = 16, 6, 4              # 16 agents, 6 ped neighbours, 4 obstacles

    key = jax.random.PRNGKey(0)
    k_par, k_ped, k_obs, k_self = jax.random.split(key, 4)
    params = init_base_sim_model3_params(k_par, args)
    ped = jax.random.normal(k_ped, (N, K1, args["ped_feature_dim"]), jnp.float32)
    obs = jax.random.normal(k_obs, (N, K2, args["obs_feature_dim"]), jnp.float32)
    self_feat = jax.random.normal(k_self, (N, args["ped_feature_dim"]), jnp.float32)

    out = base_sim_model3_forward(params, ped, obs, self_feat)
    out = jax.block_until_ready(out)

    ref = base_sim_model3_ref(params, ped, obs, self_feat)
    assert out.shape == (N, 2), out.shape
    assert jnp.allclose(out, ref, atol=2e-4, rtol=2e-4), (
        "mismatch vs pure-JAX reference, max abs err = "
        f"{float(jnp.max(jnp.abs(out - ref)))}")

    print("KERNEL_OK")
</pallas_src>

<mosaic_0001>
module attributes {stable_mosaic.version = 11 : i64} {
  func.func @kernel(%arg0: i32, %arg1: memref<6x8x8xf32, #tpu.memory_space<vmem>>, %arg2: memref<4x8x6xf32, #tpu.memory_space<vmem>>, %arg3: memref<8x8xf32, #tpu.memory_space<vmem>>, %arg4: memref<8x32xf32, #tpu.memory_space<vmem>>, %arg5: memref<1x32xf32, #tpu.memory_space<vmem>>, %arg6: memref<32x32xf32, #tpu.memory_space<vmem>>, %arg7: memref<1x32xf32, #tpu.memory_space<vmem>>, %arg8: memref<6x32xf32, #tpu.memory_space<vmem>>, %arg9: memref<1x32xf32, #tpu.memory_space<vmem>>, %arg10: memref<32x32xf32, #tpu.memory_space<vmem>>, %arg11: memref<1x32xf32, #tpu.memory_space<vmem>>, %arg12: memref<8x16xf32, #tpu.memory_space<vmem>>, %arg13: memref<1x16xf32, #tpu.memory_space<vmem>>, %arg14: memref<16x16xf32, #tpu.memory_space<vmem>>, %arg15: memref<1x16xf32, #tpu.memory_space<vmem>>, %arg16: memref<8x16xf32, #tpu.memory_space<vmem>>, %arg17: memref<1x16xf32, #tpu.memory_space<vmem>>, %arg18: memref<16x16xf32, #tpu.memory_space<vmem>>, %arg19: memref<1x16xf32, #tpu.memory_space<vmem>>, %arg20: memref<32x32xf32, #tpu.memory_space<vmem>>, %arg21: memref<1x32xf32, #tpu.memory_space<vmem>>, %arg22: memref<32x32xf32, #tpu.memory_space<vmem>>, %arg23: memref<1x32xf32, #tpu.memory_space<vmem>>, %arg24: memref<64x32xf32, #tpu.memory_space<vmem>>, %arg25: memref<1x32xf32, #tpu.memory_space<vmem>>, %arg26: memref<32x32xf32, #tpu.memory_space<vmem>>, %arg27: memref<1x32xf32, #tpu.memory_space<vmem>>, %arg28: memref<32x128xf32, #tpu.memory_space<vmem>>, %arg29: memref<1x128xf32, #tpu.memory_space<vmem>>, %arg30: memref<8x128xf32, #tpu.memory_space<vmem>>) attributes {dimension_semantics = [#tpu.dimension_semantics<parallel>], iteration_bounds = array<i64: 2>, scalar_prefetch = 0 : i64, scratch_operands = 0 : i64, tpu.core_type = #tpu.core_type<tc>, window_params = [{transform_indices = @transform_0, window_bounds = array<i64: 6, 8, 8>}, {transform_indices = @transform_1, window_bounds = array<i64: 4, 8, 6>}, {transform_indices = @transform_2, window_bounds = array<i64: 8, 8>}, {pipeline_mode = #tpu.pipeline_mode<synchronous>, transform_indices = @transform_3, window_bounds = array<i64: 8, 32>}, {pipeline_mode = #tpu.pipeline_mode<synchronous>, transform_indices = @transform_4, window_bounds = array<i64: 1, 32>}, {pipeline_mode = #tpu.pipeline_mode<synchronous>, transform_indices = @transform_5, window_bounds = array<i64: 32, 32>}, {pipeline_mode = #tpu.pipeline_mode<synchronous>, transform_indices = @transform_6, window_bounds = array<i64: 1, 32>}, {pipeline_mode = #tpu.pipeline_mode<synchronous>, transform_indices = @transform_7, window_bounds = array<i64: 6, 32>}, {pipeline_mode = #tpu.pipeline_mode<synchronous>, transform_indices = @transform_8, window_bounds = array<i64: 1, 32>}, {pipeline_mode = #tpu.pipeline_mode<synchronous>, transform_indices = @transform_9, window_bounds = array<i64: 32, 32>}, {pipeline_mode = #tpu.pipeline_mode<synchronous>, transform_indices = @transform_10, window_bounds = array<i64: 1, 32>}, {pipeline_mode = #tpu.pipeline_mode<synchronous>, transform_indices = @transform_11, window_bounds = array<i64: 8, 16>}, {pipeline_mode = #tpu.pipeline_mode<synchronous>, transform_indices = @transform_12, window_bounds = array<i64: 1, 16>}, {pipeline_mode = #tpu.pipeline_mode<synchronous>, transform_indices = @transform_13, window_bounds = array<i64: 16, 16>}, {pipeline_mode = #tpu.pipeline_mode<synchronous>, transform_indices = @transform_14, window_bounds = array<i64: 1, 16>}, {pipeline_mode = #tpu.pipeline_mode<synchronous>, transform_indices = @transform_15, window_bounds = array<i64: 8, 16>}, {pipeline_mode = #tpu.pipeline_mode<synchronous>, transform_indices = @transform_16, window_bounds = array<i64: 1, 16>}, {pipeline_mode = #tpu.pipeline_mode<synchronous>, transform_indices = @transform_17, window_bounds = array<i64: 16, 16>}, {pipeline_mode = #tpu.pipeline_mode<synchronous>, transform_indices = @transform_18, window_bounds = array<i64: 1, 16>}, {pipeline_mode = #tpu.pipeline_mode<synchronous>, transform_indices = @transform_19, window_bounds = array<i64: 32, 32>}, {pipeline_mode = #tpu.pipeline_mode<synchronous>, transform_indices = @transform_20, window_bounds = array<i64: 1, 32>}, {pipeline_mode = #tpu.pipeline_mode<synchronous>, transform_indices = @transform_21, window_bounds = array<i64: 32, 32>}, {pipeline_mode = #tpu.pipeline_mode<synchronous>, transform_indices = @transform_22, window_bounds = array<i64: 1, 32>}, {pipeline_mode = #tpu.pipeline_mode<synchronous>, transform_indices = @transform_23, window_bounds = array<i64: 64, 32>}, {pipeline_mode = #tpu.pipeline_mode<synchronous>, transform_indices = @transform_24, window_bounds = array<i64: 1, 32>}, {pipeline_mode = #tpu.pipeline_mode<synchronous>, transform_indices = @transform_25, window_bounds = array<i64: 32, 32>}, {pipeline_mode = #tpu.pipeline_mode<synchronous>, transform_indices = @transform_26, window_bounds = array<i64: 1, 32>}, {pipeline_mode = #tpu.pipeline_mode<synchronous>, transform_indices = @transform_27, window_bounds = array<i64: 32, 128>}, {pipeline_mode = #tpu.pipeline_mode<synchronous>, transform_indices = @transform_28, window_bounds = array<i64: 1, 128>}, {transform_indices = @transform_29, window_bounds = array<i64: 8, 128>}]} {
    %c0 = arith.constant 0 : index
    %c0_0 = arith.constant 0 : index
    %c0_1 = arith.constant 0 : index
    %0 = vector.load %arg1[%c0, %c0_0, %c0_1] : memref<6x8x8xf32, #tpu.memory_space<vmem>>, vector<1x8x8xf32>
    %1 = vector.shape_cast %0 : vector<1x8x8xf32> to vector<8x8xf32>
    %c1 = arith.constant 1 : index
    %c0_2 = arith.constant 0 : index
    %c0_3 = arith.constant 0 : index
    %2 = vector.load %arg1[%c1, %c0_2, %c0_3] : memref<6x8x8xf32, #tpu.memory_space<vmem>>, vector<1x8x8xf32>
    %3 = vector.shape_cast %2 : vector<1x8x8xf32> to vector<8x8xf32>
    %c2 = arith.constant 2 : index
    %c0_4 = arith.constant 0 : index
    %c0_5 = arith.constant 0 : index
    %4 = vector.load %arg1[%c2, %c0_4, %c0_5] : memref<6x8x8xf32, #tpu.memory_space<vmem>>, vector<1x8x8xf32>
    %5 = vector.shape_cast %4 : vector<1x8x8xf32> to vector<8x8xf32>
    %c3 = arith.constant 3 : index
    %c0_6 = arith.constant 0 : index
    %c0_7 = arith.constant 0 : index
    %6 = vector.load %arg1[%c3, %c0_6, %c0_7] : memref<6x8x8xf32, #tpu.memory_space<vmem>>, vector<1x8x8xf32>
    %7 = vector.shape_cast %6 : vector<1x8x8xf32> to vector<8x8xf32>
    %c4 = arith.constant 4 : index
    %c0_8 = arith.constant 0 : index
    %c0_9 = arith.constant 0 : index
    %8 = vector.load %arg1[%c4, %c0_8, %c0_9] : memref<6x8x8xf32, #tpu.memory_space<vmem>>, vector<1x8x8xf32>
    %9 = vector.shape_cast %8 : vector<1x8x8xf32> to vector<8x8xf32>
    %c5 = arith.constant 5 : index
    %c0_10 = arith.constant 0 : index
    %c0_11 = arith.constant 0 : index
    %10 = vector.load %arg1[%c5, %c0_10, %c0_11] : memref<6x8x8xf32, #tpu.memory_space<vmem>>, vector<1x8x8xf32>
    %11 = vector.shape_cast %10 : vector<1x8x8xf32> to vector<8x8xf32>
    %12 = tpu.concatenate %1, %3, %5, %7, %9, %11 in 0 : vector<8x8xf32>, vector<8x8xf32>, vector<8x8xf32>, vector<8x8xf32>, vector<8x8xf32>, vector<8x8xf32> -> vector<48x8xf32>
    %c0_12 = arith.constant 0 : index
    %c0_13 = arith.constant 0 : index
    %13 = vector.load %arg4[%c0_12, %c0_13] : memref<8x32xf32, #tpu.memory_space<vmem>>, vector<8x32xf32>
    %cst = arith.constant dense<0.000000e+00> : vector<48x32xf32>
    %14 = tpu.matmul %12, %13, %cst {dimension_numbers = #tpu.dot_dimension_numbers<[1], [0], [0], [1], [0, 0, 1, 1], [], []>} : vector<48x8xf32>, vector<8x32xf32>, vector<48x32xf32> -> vector<48x32xf32>
    %c0_14 = arith.constant 0 : index
    %c0_15 = arith.constant 0 : index
    %15 = vector.load %arg5[%c0_14, %c0_15] : memref<1x32xf32, #tpu.memory_space<vmem>>, vector<1x32xf32>
    %16 = vector.broadcast %15 : vector<1x32xf32> to vector<48x32xf32>
    %17 = arith.addf %14, %16 : vector<48x32xf32>
    %cst_16 = arith.constant 0.000000e+00 : f32
    %18 = vector.broadcast %cst_16 : f32 to vector<48x32xf32>
    %19 = arith.maximumf %17, %18 : vector<48x32xf32>
    %c0_17 = arith.constant 0 : index
    %c0_18 = arith.constant 0 : index
    %20 = vector.load %arg6[%c0_17, %c0_18] : memref<32x32xf32, #tpu.memory_space<vmem>>, vector<32x32xf32>
    %cst_19 = arith.constant dense<0.000000e+00> : vector<48x32xf32>
    %21 = tpu.matmul %19, %20, %cst_19 {dimension_numbers = #tpu.dot_dimension_numbers<[1], [0], [0], [1], [0, 0, 1, 1], [], []>} : vector<48x32xf32>, vector<32x32xf32>, vector<48x32xf32> -> vector<48x32xf32>
    %c0_20 = arith.constant 0 : index
    %c0_21 = arith.constant 0 : index
    %22 = vector.load %arg7[%c0_20, %c0_21] : memref<1x32xf32, #tpu.memory_space<vmem>>, vector<1x32xf32>
    %23 = vector.broadcast %22 : vector<1x32xf32> to vector<48x32xf32>
    %24 = arith.addf %21, %23 : vector<48x32xf32>
    %c0_22 = arith.constant 0 : index
    %c0_23 = arith.constant 0 : index
    %25 = vector.load %arg20[%c0_22, %c0_23] : memref<32x32xf32, #tpu.memory_space<vmem>>, vector<32x32xf32>
    %cst_24 = arith.constant dense<0.000000e+00> : vector<48x32xf32>
    %26 = tpu.matmul %24, %25, %cst_24 {dimension_numbers = #tpu.dot_dimension_numbers<[1], [0], [0], [1], [0, 0, 1, 1], [], []>} : vector<48x32xf32>, vector<32x32xf32>, vector<48x32xf32> -> vector<48x32xf32>
    %c0_25 = arith.constant 0 : index
    %c0_26 = arith.constant 0 : index
    %27 = vector.load %arg21[%c0_25, %c0_26] : memref<1x32xf32, #tpu.memory_space<vmem>>, vector<1x32xf32>
    %28 = vector.broadcast %27 : vector<1x32xf32> to vector<48x32xf32>
    %29 = arith.addf %26, %28 : vector<48x32xf32>
    %cst_27 = arith.constant 0.000000e+00 : f32
    %30 = vector.broadcast %cst_27 : f32 to vector<48x32xf32>
    %31 = arith.maximumf %29, %30 : vector<48x32xf32>
    %32 = arith.addf %31, %24 : vector<48x32xf32>
    %33 = vector.extract_strided_slice %32 {offsets = [0, 0], sizes = [8, 32], strides = [1, 1]} : vector<48x32xf32> to vector<8x32xf32>
    %34 = vector.extract_strided_slice %32 {offsets = [8, 0], sizes = [8, 32], strides = [1, 1]} : vector<48x32xf32> to vector<8x32xf32>
    %35 = arith.addf %33, %34 : vector<8x32xf32>
    %36 = vector.extract_strided_slice %32 {offsets = [16, 0], sizes = [8, 32], strides = [1, 1]} : vector<48x32xf32> to vector<8x32xf32>
    %37 = arith.addf %35, %36 : vector<8x32xf32>
    %38 = vector.extract_strided_slice %32 {offsets = [24, 0], sizes = [8, 32], strides = [1, 1]} : vector<48x32xf32> to vector<8x32xf32>
    %39 = arith.addf %37, %38 : vector<8x32xf32>
    %40 = vector.extract_strided_slice %32 {offsets = [32, 0], sizes = [8, 32], strides = [1, 1]} : vector<48x32xf32> to vector<8x32xf32>
    %41 = arith.addf %39, %40 : vector<8x32xf32>
    %42 = vector.extract_strided_slice %32 {offsets = [40, 0], sizes = [8, 32], strides = [1, 1]} : vector<48x32xf32> to vector<8x32xf32>
    %43 = arith.addf %41, %42 : vector<8x32xf32>
    %c0_28 = arith.constant 0 : index
    %c0_29 = arith.constant 0 : index
    %c0_30 = arith.constant 0 : index
    %44 = vector.load %arg2[%c0_28, %c0_29, %c0_30] : memref<4x8x6xf32, #tpu.memory_space<vmem>>, vector<1x8x6xf32>
    %45 = vector.shape_cast %44 : vector<1x8x6xf32> to vector<8x6xf32>
    %c1_31 = arith.constant 1 : index
    %c0_32 = arith.constant 0 : index
    %c0_33 = arith.constant 0 : index
    %46 = vector.load %arg2[%c1_31, %c0_32, %c0_33] : memref<4x8x6xf32, #tpu.memory_space<vmem>>, vector<1x8x6xf32>
    %47 = vector.shape_cast %46 : vector<1x8x6xf32> to vector<8x6xf32>
    %c2_34 = arith.constant 2 : index
    %c0_35 = arith.constant 0 : index
    %c0_36 = arith.constant 0 : index
    %48 = vector.load %arg2[%c2_34, %c0_35, %c0_36] : memref<4x8x6xf32, #tpu.memory_space<vmem>>, vector<1x8x6xf32>
    %49 = vector.shape_cast %48 : vector<1x8x6xf32> to vector<8x6xf32>
    %c3_37 = arith.constant 3 : index
    %c0_38 = arith.constant 0 : index
    %c0_39 = arith.constant 0 : index
    %50 = vector.load %arg2[%c3_37, %c0_38, %c0_39] : memref<4x8x6xf32, #tpu.memory_space<vmem>>, vector<1x8x6xf32>
    %51 = vector.shape_cast %50 : vector<1x8x6xf32> to vector<8x6xf32>
    %52 = tpu.concatenate %45, %47, %49, %51 in 0 : vector<8x6xf32>, vector<8x6xf32>, vector<8x6xf32>, vector<8x6xf32> -> vector<32x6xf32>
    %c0_40 = arith.constant 0 : index
    %c0_41 = arith.constant 0 : index
    %53 = vector.load %arg8[%c0_40, %c0_41] : memref<6x32xf32, #tpu.memory_space<vmem>>, vector<6x32xf32>
    %cst_42 = arith.constant dense<0.000000e+00> : vector<32x32xf32>
    %54 = tpu.matmul %52, %53, %cst_42 {dimension_numbers = #tpu.dot_dimension_numbers<[1], [0], [0], [1], [0, 0, 1, 1], [], []>} : vector<32x6xf32>, vector<6x32xf32>, vector<32x32xf32> -> vector<32x32xf32>
    %c0_43 = arith.constant 0 : index
    %c0_44 = arith.constant 0 : index
    %55 = vector.load %arg9[%c0_43, %c0_44] : memref<1x32xf32, #tpu.memory_space<vmem>>, vector<1x32xf32>
    %56 = vector.broadcast %55 : vector<1x32xf32> to vector<32x32xf32>
    %57 = arith.addf %54, %56 : vector<32x32xf32>
    %cst_45 = arith.constant 0.000000e+00 : f32
    %58 = vector.broadcast %cst_45 : f32 to vector<32x32xf32>
    %59 = arith.maximumf %57, %58 : vector<32x32xf32>
    %c0_46 = arith.constant 0 : index
    %c0_47 = arith.constant 0 : index
    %60 = vector.load %arg10[%c0_46, %c0_47] : memref<32x32xf32, #tpu.memory_space<vmem>>, vector<32x32xf32>
    %cst_48 = arith.constant dense<0.000000e+00> : vector<32x32xf32>
    %61 = tpu.matmul %59, %60, %cst_48 {dimension_numbers = #tpu.dot_dimension_numbers<[1], [0], [0], [1], [0, 0, 1, 1], [], []>} : vector<32x32xf32>, vector<32x32xf32>, vector<32x32xf32> -> vector<32x32xf32>
    %c0_49 = arith.constant 0 : index
    %c0_50 = arith.constant 0 : index
    %62 = vector.load %arg11[%c0_49, %c0_50] : memref<1x32xf32, #tpu.memory_space<vmem>>, vector<1x32xf32>
    %63 = vector.broadcast %62 : vector<1x32xf32> to vector<32x32xf32>
    %64 = arith.addf %61, %63 : vector<32x32xf32>
    %c0_51 = arith.constant 0 : index
    %c0_52 = arith.constant 0 : index
    %65 = vector.load %arg20[%c0_51, %c0_52] : memref<32x32xf32, #tpu.memory_space<vmem>>, vector<32x32xf32>
    %cst_53 = arith.constant dense<0.000000e+00> : vector<32x32xf32>
    %66 = tpu.matmul %64, %65, %cst_53 {dimension_numbers = #tpu.dot_dimension_numbers<[1], [0], [0], [1], [0, 0, 1, 1], [], []>} : vector<32x32xf32>, vector<32x32xf32>, vector<32x32xf32> -> vector<32x32xf32>
    %c0_54 = arith.constant 0 : index
    %c0_55 = arith.constant 0 : index
    %67 = vector.load %arg21[%c0_54, %c0_55] : memref<1x32xf32, #tpu.memory_space<vmem>>, vector<1x32xf32>
    %68 = vector.broadcast %67 : vector<1x32xf32> to vector<32x32xf32>
    %69 = arith.addf %66, %68 : vector<32x32xf32>
    %cst_56 = arith.constant 0.000000e+00 : f32
    %70 = vector.broadcast %cst_56 : f32 to vector<32x32xf32>
    %71 = arith.maximumf %69, %70 : vector<32x32xf32>
    %72 = arith.addf %71, %64 : vector<32x32xf32>
    %73 = vector.extract_strided_slice %72 {offsets = [0, 0], sizes = [8, 32], strides = [1, 1]} : vector<32x32xf32> to vector<8x32xf32>
    %74 = arith.addf %43, %73 : vector<8x32xf32>
    %75 = vector.extract_strided_slice %72 {offsets = [8, 0], sizes = [8, 32], strides = [1, 1]} : vector<32x32xf32> to vector<8x32xf32>
    %76 = arith.addf %74, %75 : vector<8x32xf32>
    %77 = vector.extract_strided_slice %72 {offsets = [16, 0], sizes = [8, 32], strides = [1, 1]} : vector<32x32xf32> to vector<8x32xf32>
    %78 = arith.addf %76, %77 : vector<8x32xf32>
    %79 = vector.extract_strided_slice %72 {offsets = [24, 0], sizes = [8, 32], strides = [1, 1]} : vector<32x32xf32> to vector<8x32xf32>
    %80 = arith.addf %78, %79 : vector<8x32xf32>
    %c0_57 = arith.constant 0 : index
    %c0_58 = arith.constant 0 : index
    %81 = vector.load %arg3[%c0_57, %c0_58] : memref<8x8xf32, #tpu.memory_space<vmem>>, vector<8x8xf32>
    %82 = vector.extract_strided_slice %81 {offsets = [0, 0], sizes = [8, 2], strides = [1, 1]} : vector<8x8xf32> to vector<8x2xf32>
    %83 = arith.mulf %82, %82 : vector<8x2xf32>
    %cst_59 = arith.constant dense<0.000000e+00> : vector<8xf32>
    %84 = vector.multi_reduction <add>, %83, %cst_59 [1] : vector<8x2xf32> to vector<8xf32>
    %85 = vector.shape_cast %84 : vector<8xf32> to vector<8x1xf32>
    %86 = math.rsqrt %85 : vector<8x1xf32>
    %87 = vector.broadcast %86 : vector<8x1xf32> to vector<8x8xf32>
    %88 = arith.mulf %81, %87 : vector<8x8xf32>
    %c0_60 = arith.constant 0 : index
    %c0_61 = arith.constant 0 : index
    %89 = vector.load %arg12[%c0_60, %c0_61] : memref<8x16xf32, #tpu.memory_space<vmem>>, vector<8x16xf32>
    %cst_62 = arith.constant dense<0.000000e+00> : vector<8x16xf32>
    %90 = tpu.matmul %88, %89, %cst_62 {dimension_numbers = #tpu.dot_dimension_numbers<[1], [0], [0], [1], [0, 0, 1, 1], [], []>} : vector<8x8xf32>, vector<8x16xf32>, vector<8x16xf32> -> vector<8x16xf32>
    %c0_63 = arith.constant 0 : index
    %c0_64 = arith.constant 0 : index
    %91 = vector.load %arg13[%c0_63, %c0_64] : memref<1x16xf32, #tpu.memory_space<vmem>>, vector<1x16xf32>
    %92 = vector.broadcast %91 : vector<1x16xf32> to vector<8x16xf32>
    %93 = arith.addf %90, %92 : vector<8x16xf32>
    %cst_65 = arith.constant 0.000000e+00 : f32
    %94 = vector.broadcast %cst_65 : f32 to vector<8x16xf32>
    %95 = arith.maximumf %93, %94 : vector<8x16xf32>
    %c0_66 = arith.constant 0 : index
    %c0_67 = arith.constant 0 : index
    %96 = vector.load %arg14[%c0_66, %c0_67] : memref<16x16xf32, #tpu.memory_space<vmem>>, vector<16x16xf32>
    %cst_68 = arith.constant dense<0.000000e+00> : vector<8x16xf32>
    %97 = tpu.matmul %95, %96, %cst_68 {dimension_numbers = #tpu.dot_dimension_numbers<[1], [0], [0], [1], [0, 0, 1, 1], [], []>} : vector<8x16xf32>, vector<16x16xf32>, vector<8x16xf32> -> vector<8x16xf32>
    %c0_69 = arith.constant 0 : index
    %c0_70 = arith.constant 0 : index
    %98 = vector.load %arg15[%c0_69, %c0_70] : memref<1x16xf32, #tpu.memory_space<vmem>>, vector<1x16xf32>
    %99 = vector.broadcast %98 : vector<1x16xf32> to vector<8x16xf32>
    %100 = arith.addf %97, %99 : vector<8x16xf32>
    %c0_71 = arith.constant 0 : index
    %c0_72 = arith.constant 0 : index
    %101 = vector.load %arg16[%c0_71, %c0_72] : memref<8x16xf32, #tpu.memory_space<vmem>>, vector<8x16xf32>
    %cst_73 = arith.constant dense<0.000000e+00> : vector<8x16xf32>
    %102 = tpu.matmul %81, %101, %cst_73 {dimension_numbers = #tpu.dot_dimension_numbers<[1], [0], [0], [1], [0, 0, 1, 1], [], []>} : vector<8x8xf32>, vector<8x16xf32>, vector<8x16xf32> -> vector<8x16xf32>
    %c0_74 = arith.constant 0 : index
    %c0_75 = arith.constant 0 : index
    %103 = vector.load %arg17[%c0_74, %c0_75] : memref<1x16xf32, #tpu.memory_space<vmem>>, vector<1x16xf32>
    %104 = vector.broadcast %103 : vector<1x16xf32> to vector<8x16xf32>
    %105 = arith.addf %102, %104 : vector<8x16xf32>
    %cst_76 = arith.constant 0.000000e+00 : f32
    %106 = vector.broadcast %cst_76 : f32 to vector<8x16xf32>
    %107 = arith.maximumf %105, %106 : vector<8x16xf32>
    %c0_77 = arith.constant 0 : index
    %c0_78 = arith.constant 0 : index
    %108 = vector.load %arg18[%c0_77, %c0_78] : memref<16x16xf32, #tpu.memory_space<vmem>>, vector<16x16xf32>
    %cst_79 = arith.constant dense<0.000000e+00> : vector<8x16xf32>
    %109 = tpu.matmul %107, %108, %cst_79 {dimension_numbers = #tpu.dot_dimension_numbers<[1], [0], [0], [1], [0, 0, 1, 1], [], []>} : vector<8x16xf32>, vector<16x16xf32>, vector<8x16xf32> -> vector<8x16xf32>
    %c0_80 = arith.constant 0 : index
    %c0_81 = arith.constant 0 : index
    %110 = vector.load %arg19[%c0_80, %c0_81] : memref<1x16xf32, #tpu.memory_space<vmem>>, vector<1x16xf32>
    %111 = vector.broadcast %110 : vector<1x16xf32> to vector<8x16xf32>
    %112 = arith.addf %109, %111 : vector<8x16xf32>
    %c0_82 = arith.constant 0 : index
    %c0_83 = arith.constant 0 : index
    %113 = vector.load %arg22[%c0_82, %c0_83] : memref<32x32xf32, #tpu.memory_space<vmem>>, vector<32x32xf32>
    %114 = vector.extract_strided_slice %113 {offsets = [0, 0], sizes = [16, 32], strides = [1, 1]} : vector<32x32xf32> to vector<16x32xf32>
    %cst_84 = arith.constant dense<0.000000e+00> : vector<8x32xf32>
    %115 = tpu.matmul %100, %114, %cst_84 {dimension_numbers = #tpu.dot_dimension_numbers<[1], [0], [0], [1], [0, 0, 1, 1], [], []>} : vector<8x16xf32>, vector<16x32xf32>, vector<8x32xf32> -> vector<8x32xf32>
    %116 = vector.extract_strided_slice %113 {offsets = [16, 0], sizes = [16, 32], strides = [1, 1]} : vector<32x32xf32> to vector<16x32xf32>
    %cst_85 = arith.constant dense<0.000000e+00> : vector<8x32xf32>
    %117 = tpu.matmul %112, %116, %cst_85 {dimension_numbers = #tpu.dot_dimension_numbers<[1], [0], [0], [1], [0, 0, 1, 1], [], []>} : vector<8x16xf32>, vector<16x32xf32>, vector<8x32xf32> -> vector<8x32xf32>
    %118 = arith.addf %115, %117 : vector<8x32xf32>
    %c0_86 = arith.constant 0 : index
    %c0_87 = arith.constant 0 : index
    %119 = vector.load %arg23[%c0_86, %c0_87] : memref<1x32xf32, #tpu.memory_space<vmem>>, vector<1x32xf32>
    %120 = vector.broadcast %119 : vector<1x32xf32> to vector<8x32xf32>
    %121 = arith.addf %118, %120 : vector<8x32xf32>
    %cst_88 = arith.constant 0.000000e+00 : f32
    %122 = vector.broadcast %cst_88 : f32 to vector<8x32xf32>
    %123 = arith.maximumf %121, %122 : vector<8x32xf32>
    %124 = vector.extract_strided_slice %123 {offsets = [0, 0], sizes = [8, 16], strides = [1, 1]} : vector<8x32xf32> to vector<8x16xf32>
    %125 = arith.addf %124, %100 : vector<8x16xf32>
    %126 = vector.extract_strided_slice %123 {offsets = [0, 16], sizes = [8, 16], strides = [1, 1]} : vector<8x32xf32> to vector<8x16xf32>
    %127 = arith.addf %126, %112 : vector<8x16xf32>
    %c0_89 = arith.constant 0 : index
    %c0_90 = arith.constant 0 : index
    %128 = vector.load %arg24[%c0_89, %c0_90] : memref<64x32xf32, #tpu.memory_space<vmem>>, vector<64x32xf32>
    %129 = vector.extract_strided_slice %128 {offsets = [0, 0], sizes = [32, 32], strides = [1, 1]} : vector<64x32xf32> to vector<32x32xf32>
    %cst_91 = arith.constant dense<0.000000e+00> : vector<8x32xf32>
    %130 = tpu.matmul %80, %129, %cst_91 {dimension_numbers = #tpu.dot_dimension_numbers<[1], [0], [0], [1], [0, 0, 1, 1], [], []>} : vector<8x32xf32>, vector<32x32xf32>, vector<8x32xf32> -> vector<8x32xf32>
    %131 = vector.extract_strided_slice %128 {offsets = [32, 0], sizes = [16, 32], strides = [1, 1]} : vector<64x32xf32> to vector<16x32xf32>
    %cst_92 = arith.constant dense<0.000000e+00> : vector<8x32xf32>
    %132 = tpu.matmul %125, %131, %cst_92 {dimension_numbers = #tpu.dot_dimension_numbers<[1], [0], [0], [1], [0, 0, 1, 1], [], []>} : vector<8x16xf32>, vector<16x32xf32>, vector<8x32xf32> -> vector<8x32xf32>
    %133 = arith.addf %130, %132 : vector<8x32xf32>
    %134 = vector.extract_strided_slice %128 {offsets = [48, 0], sizes = [16, 32], strides = [1, 1]} : vector<64x32xf32> to vector<16x32xf32>
    %cst_93 = arith.constant dense<0.000000e+00> : vector<8x32xf32>
    %135 = tpu.matmul %127, %134, %cst_93 {dimension_numbers = #tpu.dot_dimension_numbers<[1], [0], [0], [1], [0, 0, 1, 1], [], []>} : vector<8x16xf32>, vector<16x32xf32>, vector<8x32xf32> -> vector<8x32xf32>
    %136 = arith.addf %133, %135 : vector<8x32xf32>
    %c0_94 = arith.constant 0 : index
    %c0_95 = arith.constant 0 : index
    %137 = vector.load %arg25[%c0_94, %c0_95] : memref<1x32xf32, #tpu.memory_space<vmem>>, vector<1x32xf32>
    %138 = vector.broadcast %137 : vector<1x32xf32> to vector<8x32xf32>
    %139 = arith.addf %136, %138 : vector<8x32xf32>
    %cst_96 = arith.constant 0.000000e+00 : f32
    %140 = vector.broadcast %cst_96 : f32 to vector<8x32xf32>
    %141 = arith.maximumf %139, %140 : vector<8x32xf32>
    %c0_97 = arith.constant 0 : index
    %c0_98 = arith.constant 0 : index
    %142 = vector.load %arg26[%c0_97, %c0_98] : memref<32x32xf32, #tpu.memory_space<vmem>>, vector<32x32xf32>
    %cst_99 = arith.constant dense<0.000000e+00> : vector<8x32xf32>
    %143 = tpu.matmul %141, %142, %cst_99 {dimension_numbers = #tpu.dot_dimension_numbers<[1], [0], [0], [1], [0, 0, 1, 1], [], []>} : vector<8x32xf32>, vector<32x32xf32>, vector<8x32xf32> -> vector<8x32xf32>
    %c0_100 = arith.constant 0 : index
    %c0_101 = arith.constant 0 : index
    %144 = vector.load %arg27[%c0_100, %c0_101] : memref<1x32xf32, #tpu.memory_space<vmem>>, vector<1x32xf32>
    %145 = vector.broadcast %144 : vector<1x32xf32> to vector<8x32xf32>
    %146 = arith.addf %143, %145 : vector<8x32xf32>
    %c0_102 = arith.constant 0 : index
    %c0_103 = arith.constant 0 : index
    %147 = vector.load %arg28[%c0_102, %c0_103] : memref<32x128xf32, #tpu.memory_space<vmem>>, vector<32x128xf32>
    %cst_104 = arith.constant dense<0.000000e+00> : vector<8x128xf32>
    %148 = tpu.matmul %146, %147, %cst_104 {dimension_numbers = #tpu.dot_dimension_numbers<[1], [0], [0], [1], [0, 0, 1, 1], [], []>} : vector<8x32xf32>, vector<32x128xf32>, vector<8x128xf32> -> vector<8x128xf32>
    %c0_105 = arith.constant 0 : index
    %c0_106 = arith.constant 0 : index
    %149 = vector.load %arg29[%c0_105, %c0_106] : memref<1x128xf32, #tpu.memory_space<vmem>>, vector<1x128xf32>
    %150 = vector.broadcast %149 : vector<1x128xf32> to vector<8x128xf32>
    %151 = arith.addf %148, %150 : vector<8x128xf32>
    %c0_107 = arith.constant 0 : index
    %c0_108 = arith.constant 0 : index
    %152 = vector.load %arg30[%c0_107, %c0_108] : memref<8x128xf32, #tpu.memory_space<vmem>>, vector<8x128xf32>
    tpu.vector_store %arg30[%c0_107, %c0_108], %151 {strides = array<i32>} : memref<8x128xf32, #tpu.memory_space<vmem>>, vector<8x128xf32>,
    return
  }
  func.func @transform_0(%arg0: i32) -> (i32, i32, i32) {
    %c0_i32 = arith.constant 0 : i32
    %c0_i32_0 = arith.constant 0 : i32
    %c0_i32_1 = arith.constant 0 : i32
    return %c0_i32, %arg0, %c0_i32_0 : i32, i32, i32
  }
  func.func @transform_1(%arg0: i32) -> (i32, i32, i32) {
    %c0_i32 = arith.constant 0 : i32
    %c0_i32_0 = arith.constant 0 : i32
    %c0_i32_1 = arith.constant 0 : i32
    return %c0_i32, %arg0, %c0_i32_0 : i32, i32, i32
  }
  func.func @transform_2(%arg0: i32) -> (i32, i32) {
    %c0_i32 = arith.constant 0 : i32
    %c0_i32_0 = arith.constant 0 : i32
    return %arg0, %c0_i32 : i32, i32
  }
  func.func @transform_3(%arg0: i32) -> (i32, i32) {
    %c0_i32 = arith.constant 0 : i32
    %c0_i32_0 = arith.constant 0 : i32
    %c0_i32_1 = arith.constant 0 : i32
    return %c0_i32, %c0_i32_0 : i32, i32
  }
  func.func @transform_4(%arg0: i32) -> (i32, i32) {
    %c0_i32 = arith.constant 0 : i32
    %c0_i32_0 = arith.constant 0 : i32
    %c0_i32_1 = arith.constant 0 : i32
    return %c0_i32, %c0_i32_0 : i32, i32
  }
  func.func @transform_5(%arg0: i32) -> (i32, i32) {
    %c0_i32 = arith.constant 0 : i32
    %c0_i32_0 = arith.constant 0 : i32
    %c0_i32_1 = arith.constant 0 : i32
    return %c0_i32, %c0_i32_0 : i32, i32
  }
  func.func @transform_6(%arg0: i32) -> (i32, i32) {
    %c0_i32 = arith.constant 0 : i32
    %c0_i32_0 = arith.constant 0 : i32
    %c0_i32_1 = arith.constant 0 : i32
    return %c0_i32, %c0_i32_0 : i32, i32
  }
  func.func @transform_7(%arg0: i32) -> (i32, i32) {
    %c0_i32 = arith.constant 0 : i32
    %c0_i32_0 = arith.constant 0 : i32
    %c0_i32_1 = arith.constant 0 : i32
    return %c0_i32, %c0_i32_0 : i32, i32
  }
  func.func @transform_8(%arg0: i32) -> (i32, i32) {
    %c0_i32 = arith.constant 0 : i32
    %c0_i32_0 = arith.constant 0 : i32
    %c0_i32_1 = arith.constant 0 : i32
    return %c0_i32, %c0_i32_0 : i32, i32
  }
  func.func @transform_9(%arg0: i32) -> (i32, i32) {
    %c0_i32 = arith.constant 0 : i32
    %c0_i32_0 = arith.constant 0 : i32
    %c0_i32_1 = arith.constant 0 : i32
    return %c0_i32, %c0_i32_0 : i32, i32
  }
  func.func @transform_10(%arg0: i32) -> (i32, i32) {
    %c0_i32 = arith.constant 0 : i32
    %c0_i32_0 = arith.constant 0 : i32
    %c0_i32_1 = arith.constant 0 : i32
    return %c0_i32, %c0_i32_0 : i32, i32
  }
  func.func @transform_11(%arg0: i32) -> (i32, i32) {
    %c0_i32 = arith.constant 0 : i32
    %c0_i32_0 = arith.constant 0 : i32
    %c0_i32_1 = arith.constant 0 : i32
    return %c0_i32, %c0_i32_0 : i32, i32
  }
  func.func @transform_12(%arg0: i32) -> (i32, i32) {
    %c0_i32 = arith.constant 0 : i32
    %c0_i32_0 = arith.constant 0 : i32
    %c0_i32_1 = arith.constant 0 : i32
    return %c0_i32, %c0_i32_0 : i32, i32
  }
  func.func @transform_13(%arg0: i32) -> (i32, i32) {
    %c0_i32 = arith.constant 0 : i32
    %c0_i32_0 = arith.constant 0 : i32
    %c0_i32_1 = arith.constant 0 : i32
    return %c0_i32, %c0_i32_0 : i32, i32
  }
  func.func @transform_14(%arg0: i32) -> (i32, i32) {
    %c0_i32 = arith.constant 0 : i32
    %c0_i32_0 = arith.constant 0 : i32
    %c0_i32_1 = arith.constant 0 : i32
    return %c0_i32, %c0_i32_0 : i32, i32
  }
  func.func @transform_15(%arg0: i32) -> (i32, i32) {
    %c0_i32 = arith.constant 0 : i32
    %c0_i32_0 = arith.constant 0 : i32
    %c0_i32_1 = arith.constant 0 : i32
    return %c0_i32, %c0_i32_0 : i32, i32
  }
  func.func @transform_16(%arg0: i32) -> (i32, i32) {
    %c0_i32 = arith.constant 0 : i32
    %c0_i32_0 = arith.constant 0 : i32
    %c0_i32_1 = arith.constant 0 : i32
    return %c0_i32, %c0_i32_0 : i32, i32
  }
  func.func @transform_17(%arg0: i32) -> (i32, i32) {
    %c0_i32 = arith.constant 0 : i32
    %c0_i32_0 = arith.constant 0 : i32
    %c0_i32_1 = arith.constant 0 : i32
    return %c0_i32, %c0_i32_0 : i32, i32
  }
  func.func @transform_18(%arg0: i32) -> (i32, i32) {
    %c0_i32 = arith.constant 0 : i32
    %c0_i32_0 = arith.constant 0 : i32
    %c0_i32_1 = arith.constant 0 : i32
    return %c0_i32, %c0_i32_0 : i32, i32
  }
  func.func @transform_19(%arg0: i32) -> (i32, i32) {
    %c0_i32 = arith.constant 0 : i32
    %c0_i32_0 = arith.constant 0 : i32
    %c0_i32_1 = arith.constant 0 : i32
    return %c0_i32, %c0_i32_0 : i32, i32
  }
  func.func @transform_20(%arg0: i32) -> (i32, i32) {
    %c0_i32 = arith.constant 0 : i32
    %c0_i32_0 = arith.constant 0 : i32
    %c0_i32_1 = arith.constant 0 : i32
    return %c0_i32, %c0_i32_0 : i32, i32
  }
  func.func @transform_21(%arg0: i32) -> (i32, i32) {
    %c0_i32 = arith.constant 0 : i32
    %c0_i32_0 = arith.constant 0 : i32
    %c0_i32_1 = arith.constant 0 : i32
    return %c0_i32, %c0_i32_0 : i32, i32
  }
  func.func @transform_22(%arg0: i32) -> (i32, i32) {
    %c0_i32 = arith.constant 0 : i32
    %c0_i32_0 = arith.constant 0 : i32
    %c0_i32_1 = arith.constant 0 : i32
    return %c0_i32, %c0_i32_0 : i32, i32
  }
  func.func @transform_23(%arg0: i32) -> (i32, i32) {
    %c0_i32 = arith.constant 0 : i32
    %c0_i32_0 = arith.constant 0 : i32
    %c0_i32_1 = arith.constant 0 : i32
    return %c0_i32, %c0_i32_0 : i32, i32
  }
  func.func @transform_24(%arg0: i32) -> (i32, i32) {
    %c0_i32 = arith.constant 0 : i32
    %c0_i32_0 = arith.constant 0 : i32
    %c0_i32_1 = arith.constant 0 : i32
    return %c0_i32, %c0_i32_0 : i32, i32
  }
  func.func @transform_25(%arg0: i32) -> (i32, i32) {
    %c0_i32 = arith.constant 0 : i32
    %c0_i32_0 = arith.constant 0 : i32
    %c0_i32_1 = arith.constant 0 : i32
    return %c0_i32, %c0_i32_0 : i32, i32
  }
  func.func @transform_26(%arg0: i32) -> (i32, i32) {
    %c0_i32 = arith.constant 0 : i32
    %c0_i32_0 = arith.constant 0 : i32
    %c0_i32_1 = arith.constant 0 : i32
    return %c0_i32, %c0_i32_0 : i32, i32
  }
  func.func @transform_27(%arg0: i32) -> (i32, i32) {
    %c0_i32 = arith.constant 0 : i32
    %c0_i32_0 = arith.constant 0 : i32
    %c0_i32_1 = arith.constant 0 : i32
    return %c0_i32, %c0_i32_0 : i32, i32
  }
  func.func @transform_28(%arg0: i32) -> (i32, i32) {
    %c0_i32 = arith.constant 0 : i32
    %c0_i32_0 = arith.constant 0 : i32
    %c0_i32_1 = arith.constant 0 : i32
    return %c0_i32, %c0_i32_0 : i32, i32
  }
  func.func @transform_29(%arg0: i32) -> (i32, i32) {
    %c0_i32 = arith.constant 0 : i32
    %c0_i32_0 = arith.constant 0 : i32
    return %arg0, %c0_i32 : i32, i32
  }
}

</mosaic_0001>

<llo_original>
// kernel: base_sim_model3_forward.1
$region0: #{base_sim_model3_forward.1}
  #allocation0 [shape = 'u32[]', space=smem, size = 0x4, offset = 0x4, fixed_abs, tag = 'smem constant byte address 0x4 - core index']
  #allocation1 [shape = 'u32[144,128]{1,0:T(1,128)}', space=vmem, size = 0x12000, scoped, tag = 'internal scratch']
  %s0 = inlined_call_operand.smem [shape: u32[30], index: -1, kind: input, shape index: {}]
  %s1 = sld [smem:[%s0]]
  %s2 = scalar_lea.smem %s0, 1
  %s3 = sld [smem:[%s2]]
  %s4 = scalar_lea.smem %s0, 2
  %s5 = sld [smem:[%s4]]
  %s6 = scalar_lea.smem %s0, 3
  %s7 = sld [smem:[%s6]]
  %s8 = scalar_lea.smem %s0, 4
  %s9 = sld [smem:[%s8]]
  %s10 = scalar_lea.smem %s0, 5
  %s11 = sld [smem:[%s10]]
  %s12 = scalar_lea.smem %s0, 6
  %s13 = sld [smem:[%s12]]
  %s14 = scalar_lea.smem %s0, 7
  %s15 = sld [smem:[%s14]]
  %s16 = scalar_lea.smem %s0, 8
  %s17 = sld [smem:[%s16]]
  %s18 = scalar_lea.smem %s0, 9
  %s19 = sld [smem:[%s18]]
  %s20 = scalar_lea.smem %s0, 10
  %s21 = sld [smem:[%s20]]
  %s22 = scalar_lea.smem %s0, 11
  %s23 = sld [smem:[%s22]]
  %s24 = scalar_lea.smem %s0, 12
  %s25 = sld [smem:[%s24]]
  %s26 = scalar_lea.smem %s0, 13
  %s27 = sld [smem:[%s26]]
  %s28 = scalar_lea.smem %s0, 14
  %s29 = sld [smem:[%s28]]
  %s30 = scalar_lea.smem %s0, 15
  %s31 = sld [smem:[%s30]]
  %s32 = scalar_lea.smem %s0, 16
  %s33 = sld [smem:[%s32]]
  %s34 = scalar_lea.smem %s0, 17
  %s35 = sld [smem:[%s34]]
  %s36 = scalar_lea.smem %s0, 18
  %s37 = sld [smem:[%s36]]
  %s38 = scalar_lea.smem %s0, 19
  %s39 = sld [smem:[%s38]]
  %s40 = scalar_lea.smem %s0, 20
  %s41 = sld [smem:[%s40]]
  %s42 = scalar_lea.smem %s0, 21
  %s43 = sld [smem:[%s42]]
  %s44 = scalar_lea.smem %s0, 22
  %s45 = sld [smem:[%s44]]
  %s46 = scalar_lea.smem %s0, 23
  %s47 = sld [smem:[%s46]]
  %s48 = scalar_lea.smem %s0, 24
  %s49 = sld [smem:[%s48]]
  %s50 = scalar_lea.smem %s0, 25
  %s51 = sld [smem:[%s50]]
  %s52 = scalar_lea.smem %s0, 26
  %s53 = sld [smem:[%s52]]
  %s54 = scalar_lea.smem %s0, 27
  %s55 = sld [smem:[%s54]]
  %s56 = scalar_lea.smem %s0, 28
  %s57 = sld [smem:[%s56]]
  %s58 = scalar_lea.smem %s0, 29
  %s59 = sld [smem:[%s58]]
  %s60 = sld [smem:[#allocation0]]
  $region225: #{base_sim_model3_forward.1} parent=0
    _
  %s62 = ssub.s32 1, %s60
  %s63 = scalar_select 0, %s62, %s60
  $region1: #{base_sim_model3_forward.1} parent=0
    #allocation2 [shape = 'u8[49152]{0}', space=vmem, size = 0xc000, scoped, tag = 'input window, operand 0']
    #allocation3 [shape = 'u8[32768]{0}', space=vmem, size = 0x8000, scoped, tag = 'input window, operand 1']
    loop: start=0, step=1, limit=4
    $region2: #{base_sim_model3_forward.1} parent=1 // loop_pre_header
      _
    $region3: #{base_sim_model3_forward.1} parent=1 // loop_header
      %s65 = sphi 0, %s69
      %p66 = scmp.ge.s32.totalorder %s65, 4
      %s75 = sphi 0, %s77
      %s78 = sphi 0, %s75
      %s79 = sphi 0, %s78
      %s95 = sphi 0, %s79
      %s101 = sphi 0, %s103
      %s104 = sphi 0, %s101
      %s105 = sphi 0, %s104
      %s121 = sphi 0, %s105
      %s127 = sphi 0, %s129
      %s130 = sphi 0, %s127
      %s131 = sphi 0, %s130
      %s147 = sphi 0, %s131
      %s151 = sphi 0, %s151
      %s153 = sphi 0, %s151
      %s154 = sphi 0, %s153
      %s168 = sphi 0, %s154
      %s172 = sphi 0, %s172
      %s174 = sphi 0, %s172
      %s175 = sphi 0, %s174
      %s189 = sphi 0, %s175
      %s193 = sphi 0, %s193
      %s195 = sphi 0, %s193
      %s196 = sphi 0, %s195
      %s210 = sphi 0, %s196
      %s214 = sphi 0, %s214
      %s216 = sphi 0, %s214
      %s217 = sphi 0, %s216
      %s231 = sphi 0, %s217
      %s235 = sphi 0, %s235
      %s237 = sphi 0, %s235
      %s238 = sphi 0, %s237
      %s252 = sphi 0, %s238
      %s256 = sphi 0, %s256
      %s258 = sphi 0, %s256
      %s259 = sphi 0, %s258
      %s273 = sphi 0, %s259
      %s277 = sphi 0, %s277
      %s279 = sphi 0, %s277
      %s280 = sphi 0, %s279
      %s294 = sphi 0, %s280
      %s298 = sphi 0, %s298
      %s300 = sphi 0, %s298
      %s301 = sphi 0, %s300
      %s315 = sphi 0, %s301
      %s319 = sphi 0, %s319
      %s321 = sphi 0, %s319
      %s322 = sphi 0, %s321
      %s336 = sphi 0, %s322
      %s340 = sphi 0, %s340
      %s342 = sphi 0, %s340
      %s343 = sphi 0, %s342
      %s357 = sphi 0, %s343
      %s361 = sphi 0, %s361
      %s363 = sphi 0, %s361
      %s364 = sphi 0, %s363
      %s378 = sphi 0, %s364
      %s382 = sphi 0, %s382
      %s384 = sphi 0, %s382
      %s385 = sphi 0, %s384
      %s399 = sphi 0, %s385
      %s403 = sphi 0, %s403
      %s405 = sphi 0, %s403
      %s406 = sphi 0, %s405
      %s420 = sphi 0, %s406
      %s424 = sphi 0, %s424
      %s426 = sphi 0, %s424
      %s427 = sphi 0, %s426
      %s441 = sphi 0, %s427
      %s445 = sphi 0, %s445
      %s447 = sphi 0, %s445
      %s448 = sphi 0, %s447
      %s462 = sphi 0, %s448
      %s466 = sphi 0, %s466
      %s468 = sphi 0, %s466
      %s469 = sphi 0, %s468
      %s483 = sphi 0, %s469
      %s487 = sphi 0, %s487
      %s489 = sphi 0, %s487
      %s490 = sphi 0, %s489
      %s504 = sphi 0, %s490
      %s508 = sphi 0, %s508
      %s510 = sphi 0, %s508
      %s511 = sphi 0, %s510
      %s525 = sphi 0, %s511
      %s529 = sphi 0, %s529
      %s531 = sphi 0, %s529
      %s532 = sphi 0, %s531
      %s546 = sphi 0, %s532
      %s550 = sphi 0, %s550
      %s552 = sphi 0, %s550
      %s553 = sphi 0, %s552
      %s567 = sphi 0, %s553
      %s571 = sphi 0, %s571
      %s573 = sphi 0, %s571
      %s574 = sphi 0, %s573
      %s588 = sphi 0, %s574
      %s592 = sphi 0, %s592
      %s594 = sphi 0, %s592
      %s595 = sphi 0, %s594
      %s609 = sphi 0, %s595
      %s613 = sphi 0, %s613
      %s615 = sphi 0, %s613
      %s616 = sphi 0, %s615
      %s630 = sphi 0, %s616
      %s634 = sphi 0, %s634
      %s636 = sphi 0, %s634
      %s637 = sphi 0, %s636
      %s651 = sphi 0, %s637
      %s655 = sphi 0, %s655
      %s657 = sphi 0, %s655
      %s658 = sphi 0, %s657
      %s672 = sphi 0, %s658
      %s676 = sphi 0, %s676
      %s678 = sphi 0, %s676
      %s679 = sphi 0, %s678
      %s693 = sphi 0, %s679
      %s699 = sphi 0, %s701
      %s702 = sphi 0, %s699
      %s703 = sphi 0, %s702
      %s719 = sphi 0, %s703
    $region4: #{base_sim_model3_forward.1} parent=1 // loop_header_branch
      %68 = sbr.rel (%p66) target = $region8
    $region5: #{base_sim_model3_forward.1} parent=1 // loop_body
      %s70 = ssub.s32 %s65, 1
      %s71 = ssub.s32 %s65, 2
      %s72 = sadd.s32 %s65, 1
      %s73 = ssub.s32 %s65, %s72
      %p74 = scmp.eq.s32.totalorder %s73, 0
      %s76 = sadd.s32 %s75, 1
      %s77 = scalar_select %p74, %s75, %s76
      %p80 = pneg %p74
      %p81 = scmp.eq.s32.totalorder %s65, 1
      %p82 = por %p80, %p81
      %p83 = scmp.ne.s32.totalorder %s75, %s78
      %p84 = scmp.eq.s32.totalorder %s65, 0
      %p85 = por %p83, %p84
      %p86 = scmp.ne.s32.totalorder %s75, %s78
      %p87 = scmp.eq.s32.totalorder %s70, 1
      %p88 = por %p86, %p87
      %p89 = scmp.ne.s32.totalorder %s78, %s79
      %p90 = scmp.eq.s32.totalorder %s70, 0
      %p91 = por %p89, %p90
      %p92 = scmp.ne.s32.totalorder %s78, %s79
      %p93 = scmp.eq.s32.totalorder %s71, 1
      %p94 = por %p92, %p93
      %p96 = scmp.ne.s32.totalorder %s79, %s95
      %p97 = scmp.eq.s32.totalorder %s71, 0
      %p98 = por %p96, %p97
      %s99 = ssub.s32 %s65, %s72
      %p100 = scmp.eq.s32.totalorder %s99, 0
      %s102 = sadd.s32 %s101, 1
      %s103 = scalar_select %p100, %s101, %s102
      %p106 = pneg %p100
      %p107 = scmp.eq.s32.totalorder %s65, 1
      %p108 = por %p106, %p107
      %p109 = scmp.ne.s32.totalorder %s101, %s104
      %p110 = scmp.eq.s32.totalorder %s65, 0
      %p111 = por %p109, %p110
      %p112 = scmp.ne.s32.totalorder %s101, %s104
      %p113 = scmp.eq.s32.totalorder %s70, 1
      %p114 = por %p112, %p113
      %p115 = scmp.ne.s32.totalorder %s104, %s105
      %p116 = scmp.eq.s32.totalorder %s70, 0
      %p117 = por %p115, %p116
      %p118 = scmp.ne.s32.totalorder %s104, %s105
      %p119 = scmp.eq.s32.totalorder %s71, 1
      %p120 = por %p118, %p119
      %p122 = scmp.ne.s32.totalorder %s105, %s121
      %p123 = scmp.eq.s32.totalorder %s71, 0
      %p124 = por %p122, %p123
      %s125 = ssub.s32 %s65, %s72
      %p126 = scmp.eq.s32.totalorder %s125, 0
      %s128 = sadd.s32 %s127, 1
      %s129 = scalar_select %p126, %s127, %s128
      %p132 = pneg %p126
      %p133 = scmp.eq.s32.totalorder %s65, 1
      %p134 = por %p132, %p133
      %p135 = scmp.ne.s32.totalorder %s127, %s130
      %p136 = scmp.eq.s32.totalorder %s65, 0
      %p137 = por %p135, %p136
      %p138 = scmp.ne.s32.totalorder %s127, %s130
      %p139 = scmp.eq.s32.totalorder %s70, 1
      %p140 = por %p138, %p139
      %p141 = scmp.ne.s32.totalorder %s130, %s131
      %p142 = scmp.eq.s32.totalorder %s70, 0
      %p143 = por %p141, %p142
      %p144 = scmp.ne.s32.totalorder %s130, %s131
      %p145 = scmp.eq.s32.totalorder %s71, 1
      %p146 = por %p144, %p145
      %p148 = scmp.ne.s32.totalorder %s131, %s147
      %p149 = scmp.eq.s32.totalorder %s71, 0
      %p150 = por %p148, %p149
      %s152 = sadd.s32 %s151, 1
      %p155 = scmp.eq.s32.totalorder %s65, 1
      %p156 = scmp.ne.s32.totalorder %s151, %s153
      %p157 = scmp.eq.s32.totalorder %s65, 0
      %p158 = por %p156, %p157
      %p159 = scmp.ne.s32.totalorder %s151, %s153
      %p160 = scmp.eq.s32.totalorder %s70, 1
      %p161 = por %p159, %p160
      %p162 = scmp.ne.s32.totalorder %s153, %s154
      %p163 = scmp.eq.s32.totalorder %s70, 0
      %p164 = por %p162, %p163
      %p165 = scmp.ne.s32.totalorder %s153, %s154
      %p166 = scmp.eq.s32.totalorder %s71, 1
      %p167 = por %p165, %p166
      %p169 = scmp.ne.s32.totalorder %s154, %s168
      %p170 = scmp.eq.s32.totalorder %s71, 0
      %p171 = por %p169, %p170
      %s173 = sadd.s32 %s172, 1
      %p176 = scmp.eq.s32.totalorder %s65, 1
      %p177 = scmp.ne.s32.totalorder %s172, %s174
      %p178 = scmp.eq.s32.totalorder %s65, 0
      %p179 = por %p177, %p178
      %p180 = scmp.ne.s32.totalorder %s172, %s174
      %p181 = scmp.eq.s32.totalorder %s70, 1
      %p182 = por %p180, %p181
      %p183 = scmp.ne.s32.totalorder %s174, %s175
      %p184 = scmp.eq.s32.totalorder %s70, 0
      %p185 = por %p183, %p184
      %p186 = scmp.ne.s32.totalorder %s174, %s175
      %p187 = scmp.eq.s32.totalorder %s71, 1
      %p188 = por %p186, %p187
      %p190 = scmp.ne.s32.totalorder %s175, %s189
      %p191 = scmp.eq.s32.totalorder %s71, 0
      %p192 = por %p190, %p191
      %s194 = sadd.s32 %s193, 1
      %p197 = scmp.eq.s32.totalorder %s65, 1
      %p198 = scmp.ne.s32.totalorder %s193, %s195
      %p199 = scmp.eq.s32.totalorder %s65, 0
      %p200 = por %p198, %p199
      %p201 = scmp.ne.s32.totalorder %s193, %s195
      %p202 = scmp.eq.s32.totalorder %s70, 1
      %p203 = por %p201, %p202
      %p204 = scmp.ne.s32.totalorder %s195, %s196
      %p205 = scmp.eq.s32.totalorder %s70, 0
      %p206 = por %p204, %p205
      %p207 = scmp.ne.s32.totalorder %s195, %s196
      %p208 = scmp.eq.s32.totalorder %s71, 1
      %p209 = por %p207, %p208
      %p211 = scmp.ne.s32.totalorder %s196, %s210
      %p212 = scmp.eq.s32.totalorder %s71, 0
      %p213 = por %p211, %p212
      %s215 = sadd.s32 %s214, 1
      %p218 = scmp.eq.s32.totalorder %s65, 1
      %p219 = scmp.ne.s32.totalorder %s214, %s216
      %p220 = scmp.eq.s32.totalorder %s65, 0
      %p221 = por %p219, %p220
      %p222 = scmp.ne.s32.totalorder %s214, %s216
      %p223 = scmp.eq.s32.totalorder %s70, 1
      %p224 = por %p222, %p223
      %p225 = scmp.ne.s32.totalorder %s216, %s217
      %p226 = scmp.eq.s32.totalorder %s70, 0
      %p227 = por %p225, %p226
      %p228 = scmp.ne.s32.totalorder %s216, %s217
      %p229 = scmp.eq.s32.totalorder %s71, 1
      %p230 = por %p228, %p229
      %p232 = scmp.ne.s32.totalorder %s217, %s231
      %p233 = scmp.eq.s32.totalorder %s71, 0
      %p234 = por %p232, %p233
      %s236 = sadd.s32 %s235, 1
      %p239 = scmp.eq.s32.totalorder %s65, 1
      %p240 = scmp.ne.s32.totalorder %s235, %s237
      %p241 = scmp.eq.s32.totalorder %s65, 0
      %p242 = por %p240, %p241
      %p243 = scmp.ne.s32.totalorder %s235, %s237
      %p244 = scmp.eq.s32.totalorder %s70, 1
      %p245 = por %p243, %p244
      %p246 = scmp.ne.s32.totalorder %s237, %s238
      %p247 = scmp.eq.s32.totalorder %s70, 0
      %p248 = por %p246, %p247
      %p249 = scmp.ne.s32.totalorder %s237, %s238
      %p250 = scmp.eq.s32.totalorder %s71, 1
      %p251 = por %p249, %p250
      %p253 = scmp.ne.s32.totalorder %s238, %s252
      %p254 = scmp.eq.s32.totalorder %s71, 0
      %p255 = por %p253, %p254
      %s257 = sadd.s32 %s256, 1
      %p260 = scmp.eq.s32.totalorder %s65, 1
      %p261 = scmp.ne.s32.totalorder %s256, %s258
      %p262 = scmp.eq.s32.totalorder %s65, 0
      %p263 = por %p261, %p262
      %p264 = scmp.ne.s32.totalorder %s256, %s258
      %p265 = scmp.eq.s32.totalorder %s70, 1
      %p266 = por %p264, %p265
      %p267 = scmp.ne.s32.totalorder %s258, %s259
      %p268 = scmp.eq.s32.totalorder %s70, 0
      %p269 = por %p267, %p268
      %p270 = scmp.ne.s32.totalorder %s258, %s259
      %p271 = scmp.eq.s32.totalorder %s71, 1
      %p272 = por %p270, %p271
      %p274 = scmp.ne.s32.totalorder %s259, %s273
      %p275 = scmp.eq.s32.totalorder %s71, 0
      %p276 = por %p274, %p275
      %s278 = sadd.s32 %s277, 1
      %p281 = scmp.eq.s32.totalorder %s65, 1
      %p282 = scmp.ne.s32.totalorder %s277, %s279
      %p283 = scmp.eq.s32.totalorder %s65, 0
      %p284 = por %p282, %p283
      %p285 = scmp.ne.s32.totalorder %s277, %s279
      %p286 = scmp.eq.s32.totalorder %s70, 1
      %p287 = por %p285, %p286
      %p288 = scmp.ne.s32.totalorder %s279, %s280
      %p289 = scmp.eq.s32.totalorder %s70, 0
      %p290 = por %p288, %p289
      %p291 = scmp.ne.s32.totalorder %s279, %s280
      %p292 = scmp.eq.s32.totalorder %s71, 1
      %p293 = por %p291, %p292
      %p295 = scmp.ne.s32.totalorder %s280, %s294
      %p296 = scmp.eq.s32.totalorder %s71, 0
      %p297 = por %p295, %p296
      %s299 = sadd.s32 %s298, 1
      %p302 = scmp.eq.s32.totalorder %s65, 1
      %p303 = scmp.ne.s32.totalorder %s298, %s300
      %p304 = scmp.eq.s32.totalorder %s65, 0
      %p305 = por %p303, %p304
      %p306 = scmp.ne.s32.totalorder %s298, %s300
      %p307 = scmp.eq.s32.totalorder %s70, 1
      %p308 = por %p306, %p307
      %p309 = scmp.ne.s32.totalorder %s300, %s301
      %p310 = scmp.eq.s32.totalorder %s70, 0
      %p311 = por %p309, %p310
      %p312 = scmp.ne.s32.totalorder %s300, %s301
      %p313 = scmp.eq.s32.totalorder %s71, 1
      %p314 = por %p312, %p313
      %p316 = scmp.ne.s32.totalorder %s301, %s315
      %p317 = scmp.eq.s32.totalorder %s71, 0
      %p318 = por %p316, %p317
      %s320 = sadd.s32 %s319, 1
      %p323 = scmp.eq.s32.totalorder %s65, 1
      %p324 = scmp.ne.s32.totalorder %s319, %s321
      %p325 = scmp.eq.s32.totalorder %s65, 0
      %p326 = por %p324, %p325
      %p327 = scmp.ne.s32.totalorder %s319, %s321
      %p328 = scmp.eq.s32.totalorder %s70, 1
      %p329 = por %p327, %p328
      %p330 = scmp.ne.s32.totalorder %s321, %s322
      %p331 = scmp.eq.s32.totalorder %s70, 0
      %p332 = por %p330, %p331
      %p333 = scmp.ne.s32.totalorder %s321, %s322
      %p334 = scmp.eq.s32.totalorder %s71, 1
      %p335 = por %p333, %p334
      %p337 = scmp.ne.s32.totalorder %s322, %s336
      %p338 = scmp.eq.s32.totalorder %s71, 0
      %p339 = por %p337, %p338
      %s341 = sadd.s32 %s340, 1
      %p344 = scmp.eq.s32.totalorder %s65, 1
      %p345 = scmp.ne.s32.totalorder %s340, %s342
      %p346 = scmp.eq.s32.totalorder %s65, 0
      %p347 = por %p345, %p346
      %p348 = scmp.ne.s32.totalorder %s340, %s342
      %p349 = scmp.eq.s32.totalorder %s70, 1
      %p350 = por %p348, %p349
      %p351 = scmp.ne.s32.totalorder %s342, %s343
      %p352 = scmp.eq.s32.totalorder %s70, 0
      %p353 = por %p351, %p352
      %p354 = scmp.ne.s32.totalorder %s342, %s343
      %p355 = scmp.eq.s32.totalorder %s71, 1
      %p356 = por %p354, %p355
      %p358 = scmp.ne.s32.totalorder %s343, %s357
      %p359 = scmp.eq.s32.totalorder %s71, 0
      %p360 = por %p358, %p359
      %s362 = sadd.s32 %s361, 1
      %p365 = scmp.eq.s32.totalorder %s65, 1
      %p366 = scmp.ne.s32.totalorder %s361, %s363
      %p367 = scmp.eq.s32.totalorder %s65, 0
      %p368 = por %p366, %p367
      %p369 = scmp.ne.s32.totalorder %s361, %s363
      %p370 = scmp.eq.s32.totalorder %s70, 1
      %p371 = por %p369, %p370
      %p372 = scmp.ne.s32.totalorder %s363, %s364
      %p373 = scmp.eq.s32.totalorder %s70, 0
      %p374 = por %p372, %p373
      %p375 = scmp.ne.s32.totalorder %s363, %s364
      %p376 = scmp.eq.s32.totalorder %s71, 1
      %p377 = por %p375, %p376
      %p379 = scmp.ne.s32.totalorder %s364, %s378
      %p380 = scmp.eq.s32.totalorder %s71, 0
      %p381 = por %p379, %p380
      %s383 = sadd.s32 %s382, 1
      %p386 = scmp.eq.s32.totalorder %s65, 1
      %p387 = scmp.ne.s32.totalorder %s382, %s384
      %p388 = scmp.eq.s32.totalorder %s65, 0
      %p389 = por %p387, %p388
      %p390 = scmp.ne.s32.totalorder %s382, %s384
      %p391 = scmp.eq.s32.totalorder %s70, 1
      %p392 = por %p390, %p391
      %p393 = scmp.ne.s32.totalorder %s384, %s385
      %p394 = scmp.eq.s32.totalorder %s70, 0
      %p395 = por %p393, %p394
      %p396 = scmp.ne.s32.totalorder %s384, %s385
      %p397 = scmp.eq.s32.totalorder %s71, 1
      %p398 = por %p396, %p397
      %p400 = scmp.ne.s32.totalorder %s385, %s399
      %p401 = scmp.eq.s32.totalorder %s71, 0
      %p402 = por %p400, %p401
      %s404 = sadd.s32 %s403, 1
      %p407 = scmp.eq.s32.totalorder %s65, 1
      %p408 = scmp.ne.s32.totalorder %s403, %s405
      %p409 = scmp.eq.s32.totalorder %s65, 0
      %p410 = por %p408, %p409
      %p411 = scmp.ne.s32.totalorder %s403, %s405
      %p412 = scmp.eq.s32.totalorder %s70, 1
      %p413 = por %p411, %p412
      %p414 = scmp.ne.s32.totalorder %s405, %s406
      %p415 = scmp.eq.s32.totalorder %s70, 0
      %p416 = por %p414, %p415
      %p417 = scmp.ne.s32.totalorder %s405, %s406
      %p418 = scmp.eq.s32.totalorder %s71, 1
      %p419 = por %p417, %p418
      %p421 = scmp.ne.s32.totalorder %s406, %s420
      %p422 = scmp.eq.s32.totalorder %s71, 0
      %p423 = por %p421, %p422
      %s425 = sadd.s32 %s424, 1
      %p428 = scmp.eq.s32.totalorder %s65, 1
      %p429 = scmp.ne.s32.totalorder %s424, %s426
      %p430 = scmp.eq.s32.totalorder %s65, 0
      %p431 = por %p429, %p430
      %p432 = scmp.ne.s32.totalorder %s424, %s426
      %p433 = scmp.eq.s32.totalorder %s70, 1
      %p434 = por %p432, %p433
      %p435 = scmp.ne.s32.totalorder %s426, %s427
      %p436 = scmp.eq.s32.totalorder %s70, 0
      %p437 = por %p435, %p436
      %p438 = scmp.ne.s32.totalorder %s426, %s427
      %p439 = scmp.eq.s32.totalorder %s71, 1
      %p440 = por %p438, %p439
      %p442 = scmp.ne.s32.totalorder %s427, %s441
      %p443 = scmp.eq.s32.totalorder %s71, 0
      %p444 = por %p442, %p443
      %s446 = sadd.s32 %s445, 1
      %p449 = scmp.eq.s32.totalorder %s65, 1
      %p450 = scmp.ne.s32.totalorder %s445, %s447
      %p451 = scmp.eq.s32.totalorder %s65, 0
      %p452 = por %p450, %p451
      %p453 = scmp.ne.s32.totalorder %s445, %s447
      %p454 = scmp.eq.s32.totalorder %s70, 1
      %p455 = por %p453, %p454
      %p456 = scmp.ne.s32.totalorder %s447, %s448
      %p457 = scmp.eq.s32.totalorder %s70, 0
      %p458 = por %p456, %p457
      %p459 = scmp.ne.s32.totalorder %s447, %s448
      %p460 = scmp.eq.s32.totalorder %s71, 1
      %p461 = por %p459, %p460
      %p463 = scmp.ne.s32.totalorder %s448, %s462
      %p464 = scmp.eq.s32.totalorder %s71, 0
      %p465 = por %p463, %p464
      %s467 = sadd.s32 %s466, 1
      %p470 = scmp.eq.s32.totalorder %s65, 1
      %p471 = scmp.ne.s32.totalorder %s466, %s468
      %p472 = scmp.eq.s32.totalorder %s65, 0
      %p473 = por %p471, %p472
      %p474 = scmp.ne.s32.totalorder %s466, %s468
      %p475 = scmp.eq.s32.totalorder %s70, 1
      %p476 = por %p474, %p475
      %p477 = scmp.ne.s32.totalorder %s468, %s469
      %p478 = scmp.eq.s32.totalorder %s70, 0
      %p479 = por %p477, %p478
      %p480 = scmp.ne.s32.totalorder %s468, %s469
      %p481 = scmp.eq.s32.totalorder %s71, 1
      %p482 = por %p480, %p481
      %p484 = scmp.ne.s32.totalorder %s469, %s483
      %p485 = scmp.eq.s32.totalorder %s71, 0
      %p486 = por %p484, %p485
      %s488 = sadd.s32 %s487, 1
      %p491 = scmp.eq.s32.totalorder %s65, 1
      %p492 = scmp.ne.s32.totalorder %s487, %s489
      %p493 = scmp.eq.s32.totalorder %s65, 0
      %p494 = por %p492, %p493
      %p495 = scmp.ne.s32.totalorder %s487, %s489
      %p496 = scmp.eq.s32.totalorder %s70, 1
      %p497 = por %p495, %p496
      %p498 = scmp.ne.s32.totalorder %s489, %s490
      %p499 = scmp.eq.s32.totalorder %s70, 0
      %p500 = por %p498, %p499
      %p501 = scmp.ne.s32.totalorder %s489, %s490
      %p502 = scmp.eq.s32.totalorder %s71, 1
      %p503 = por %p501, %p502
      %p505 = scmp.ne.s32.totalorder %s490, %s504
      %p506 = scmp.eq.s32.totalorder %s71, 0
      %p507 = por %p505, %p506
      %s509 = sadd.s32 %s508, 1
      %p512 = scmp.eq.s32.totalorder %s65, 1
      %p513 = scmp.ne.s32.totalorder %s508, %s510
      %p514 = scmp.eq.s32.totalorder %s65, 0
      %p515 = por %p513, %p514
      %p516 = scmp.ne.s32.totalorder %s508, %s510
      %p517 = scmp.eq.s32.totalorder %s70, 1
      %p518 = por %p516, %p517
      %p519 = scmp.ne.s32.totalorder %s510, %s511
      %p520 = scmp.eq.s32.totalorder %s70, 0
      %p521 = por %p519, %p520
      %p522 = scmp.ne.s32.totalorder %s510, %s511
      %p523 = scmp.eq.s32.totalorder %s71, 1
      %p524 = por %p522, %p523
      %p526 = scmp.ne.s32.totalorder %s511, %s525
      %p527 = scmp.eq.s32.totalorder %s71, 0
      %p528 = por %p526, %p527
      %s530 = sadd.s32 %s529, 1
      %p533 = scmp.eq.s32.totalorder %s65, 1
      %p534 = scmp.ne.s32.totalorder %s529, %s531
      %p535 = scmp.eq.s32.totalorder %s65, 0
      %p536 = por %p534, %p535
      %p537 = scmp.ne.s32.totalorder %s529, %s531
      %p538 = scmp.eq.s32.totalorder %s70, 1
      %p539 = por %p537, %p538
      %p540 = scmp.ne.s32.totalorder %s531, %s532
      %p541 = scmp.eq.s32.totalorder %s70, 0
      %p542 = por %p540, %p541
      %p543 = scmp.ne.s32.totalorder %s531, %s532
      %p544 = scmp.eq.s32.totalorder %s71, 1
      %p545 = por %p543, %p544
      %p547 = scmp.ne.s32.totalorder %s532, %s546
      %p548 = scmp.eq.s32.totalorder %s71, 0
      %p549 = por %p547, %p548
      %s551 = sadd.s32 %s550, 1
      %p554 = scmp.eq.s32.totalorder %s65, 1
      %p555 = scmp.ne.s32.totalorder %s550, %s552
      %p556 = scmp.eq.s32.totalorder %s65, 0
      %p557 = por %p555, %p556
      %p558 = scmp.ne.s32.totalorder %s550, %s552
      %p559 = scmp.eq.s32.totalorder %s70, 1
      %p560 = por %p558, %p559
      %p561 = scmp.ne.s32.totalorder %s552, %s553
      %p562 = scmp.eq.s32.totalorder %s70, 0
      %p563 = por %p561, %p562
      %p564 = scmp.ne.s32.totalorder %s552, %s553
      %p565 = scmp.eq.s32.totalorder %s71, 1
      %p566 = por %p564, %p565
      %p568 = scmp.ne.s32.totalorder %s553, %s567
      %p569 = scmp.eq.s32.totalorder %s71, 0
      %p570 = por %p568, %p569
      %s572 = sadd.s32 %s571, 1
      %p575 = scmp.eq.s32.totalorder %s65, 1
      %p576 = scmp.ne.s32.totalorder %s571, %s573
      %p577 = scmp.eq.s32.totalorder %s65, 0
      %p578 = por %p576, %p577
      %p579 = scmp.ne.s32.totalorder %s571, %s573
      %p580 = scmp.eq.s32.totalorder %s70, 1
      %p581 = por %p579, %p580
      %p582 = scmp.ne.s32.totalorder %s573, %s574
      %p583 = scmp.eq.s32.totalorder %s70, 0
      %p584 = por %p582, %p583
      %p585 = scmp.ne.s32.totalorder %s573, %s574
      %p586 = scmp.eq.s32.totalorder %s71, 1
      %p587 = por %p585, %p586
      %p589 = scmp.ne.s32.totalorder %s574, %s588
      %p590 = scmp.eq.s32.totalorder %s71, 0
      %p591 = por %p589, %p590
      %s593 = sadd.s32 %s592, 1
      %p596 = scmp.eq.s32.totalorder %s65, 1
      %p597 = scmp.ne.s32.totalorder %s592, %s594
      %p598 = scmp.eq.s32.totalorder %s65, 0
      %p599 = por %p597, %p598
      %p600 = scmp.ne.s32.totalorder %s592, %s594
      %p601 = scmp.eq.s32.totalorder %s70, 1
      %p602 = por %p600, %p601
      %p603 = scmp.ne.s32.totalorder %s594, %s595
      %p604 = scmp.eq.s32.totalorder %s70, 0
      %p605 = por %p603, %p604
      %p606 = scmp.ne.s32.totalorder %s594, %s595
      %p607 = scmp.eq.s32.totalorder %s71, 1
      %p608 = por %p606, %p607
      %p610 = scmp.ne.s32.totalorder %s595, %s609
      %p611 = scmp.eq.s32.totalorder %s71, 0
      %p612 = por %p610, %p611
      %s614 = sadd.s32 %s613, 1
      %p617 = scmp.eq.s32.totalorder %s65, 1
      %p618 = scmp.ne.s32.totalorder %s613, %s615
      %p619 = scmp.eq.s32.totalorder %s65, 0
      %p620 = por %p618, %p619
      %p621 = scmp.ne.s32.totalorder %s613, %s615
      %p622 = scmp.eq.s32.totalorder %s70, 1
      %p623 = por %p621, %p622
      %p624 = scmp.ne.s32.totalorder %s615, %s616
      %p625 = scmp.eq.s32.totalorder %s70, 0
      %p626 = por %p624, %p625
      %p627 = scmp.ne.s32.totalorder %s615, %s616
      %p628 = scmp.eq.s32.totalorder %s71, 1
      %p629 = por %p627, %p628
      %p631 = scmp.ne.s32.totalorder %s616, %s630
      %p632 = scmp.eq.s32.totalorder %s71, 0
      %p633 = por %p631, %p632
      %s635 = sadd.s32 %s634, 1
      %p638 = scmp.eq.s32.totalorder %s65, 1
      %p639 = scmp.ne.s32.totalorder %s634, %s636
      %p640 = scmp.eq.s32.totalorder %s65, 0
      %p641 = por %p639, %p640
      %p642 = scmp.ne.s32.totalorder %s634, %s636
      %p643 = scmp.eq.s32.totalorder %s70, 1
      %p644 = por %p642, %p643
      %p645 = scmp.ne.s32.totalorder %s636, %s637
      %p646 = scmp.eq.s32.totalorder %s70, 0
      %p647 = por %p645, %p646
      %p648 = scmp.ne.s32.totalorder %s636, %s637
      %p649 = scmp.eq.s32.totalorder %s71, 1
      %p650 = por %p648, %p649
      %p652 = scmp.ne.s32.totalorder %s637, %s651
      %p653 = scmp.eq.s32.totalorder %s71, 0
      %p654 = por %p652, %p653
      %s656 = sadd.s32 %s655, 1
      %p659 = scmp.eq.s32.totalorder %s65, 1
      %p660 = scmp.ne.s32.totalorder %s655, %s657
      %p661 = scmp.eq.s32.totalorder %s65, 0
      %p662 = por %p660, %p661
      %p663 = scmp.ne.s32.totalorder %s655, %s657
      %p664 = scmp.eq.s32.totalorder %s70, 1
      %p665 = por %p663, %p664
      %p666 = scmp.ne.s32.totalorder %s657, %s658
      %p667 = scmp.eq.s32.totalorder %s70, 0
      %p668 = por %p666, %p667
      %p669 = scmp.ne.s32.totalorder %s657, %s658
      %p670 = scmp.eq.s32.totalorder %s71, 1
      %p671 = por %p669, %p670
      %p673 = scmp.ne.s32.totalorder %s658, %s672
      %p674 = scmp.eq.s32.totalorder %s71, 0
      %p675 = por %p673, %p674
      %s677 = sadd.s32 %s676, 1
      %p680 = scmp.eq.s32.totalorder %s65, 1
      %p681 = scmp.ne.s32.totalorder %s676, %s678
      %p682 = scmp.eq.s32.totalorder %s65, 0
      %p683 = por %p681, %p682
      %p684 = scmp.ne.s32.totalorder %s676, %s678
      %p685 = scmp.eq.s32.totalorder %s70, 1
      %p686 = por %p684, %p685
      %p687 = scmp.ne.s32.totalorder %s678, %s679
      %p688 = scmp.eq.s32.totalorder %s70, 0
      %p689 = por %p687, %p688
      %p690 = scmp.ne.s32.totalorder %s678, %s679
      %p691 = scmp.eq.s32.totalorder %s71, 1
      %p692 = por %p690, %p691
      %p694 = scmp.ne.s32.totalorder %s679, %s693
      %p695 = scmp.eq.s32.totalorder %s71, 0
      %p696 = por %p694, %p695
      %s697 = ssub.s32 %s65, %s72
      %p698 = scmp.eq.s32.totalorder %s697, 0
      %s700 = sadd.s32 %s699, 1
      %s701 = scalar_select %p698, %s699, %s700
      %p704 = pneg %p698
      %p705 = scmp.eq.s32.totalorder %s65, 1
      %p706 = por %p704, %p705
      %p707 = scmp.ne.s32.totalorder %s699, %s702
      %p708 = scmp.eq.s32.totalorder %s65, 0
      %p709 = por %p707, %p708
      %p710 = scmp.ne.s32.totalorder %s699, %s702
      %p711 = scmp.eq.s32.totalorder %s70, 1
      %p712 = por %p710, %p711
      %p713 = scmp.ne.s32.totalorder %s702, %s703
      %p714 = scmp.eq.s32.totalorder %s70, 0
      %p715 = por %p713, %p714
      %p716 = scmp.ne.s32.totalorder %s702, %s703
      %p717 = scmp.eq.s32.totalorder %s71, 1
      %p718 = por %p716, %p717
      %p720 = scmp.ne.s32.totalorder %s703, %s719
      %p721 = scmp.eq.s32.totalorder %s71, 0
      %p722 = por %p720, %p721
      %p723 = scmp.le.s32.totalorder 1, %s65
      %p724 = scmp.lt.s32.totalorder %s65, 3
      %p725 = pnand %p723, %p724
      %p726 = pneg %p725
      // Predicated region
      $region9: #{base_sim_model3_forward.1} parent=5 // pred_check
        _
      $region10: #{base_sim_model3_forward.1} parent=5 // pred_check_branch
        %728 = sbr.rel (%p725) target = $region12
      $region11: #{base_sim_model3_forward.1} parent=5 // pred_region
        %s729 = ssub.s32 %s65, 1
        // Predicated region
        $region13: #{base_sim_model3_forward.1} parent=11 // pred_check
          %p730 = pneg %p164
        $region14: #{base_sim_model3_forward.1} parent=11 // pred_check_branch
          %732 = sbr.rel (%p730) target = $region16
        $region15: #{base_sim_model3_forward.1} parent=11 // pred_region
          _
        $region16: #{base_sim_model3_forward.1} parent=11 // pred_fallthru
          _
        // Predicated region
        $region17: #{base_sim_model3_forward.1} parent=11 // pred_check
          %p733 = pneg %p185
        $region18: #{base_sim_model3_forward.1} parent=11 // pred_check_branch
          %735 = sbr.rel (%p733) target = $region20
        $region19: #{base_sim_model3_forward.1} parent=11 // pred_region
          _
        $region20: #{base_sim_model3_forward.1} parent=11 // pred_fallthru
          _
        // Predicated region
        $region21: #{base_sim_model3_forward.1} parent=11 // pred_check
          %p736 = pneg %p206
        $region22: #{base_sim_model3_forward.1} parent=11 // pred_check_branch
          %738 = sbr.rel (%p736) target = $region24
        $region23: #{base_sim_model3_forward.1} parent=11 // pred_region
          _
        $region24: #{base_sim_model3_forward.1} parent=11 // pred_fallthru
          _
        // Predicated region
        $region25: #{base_sim_model3_forward.1} parent=11 // pred_check
          %p739 = pneg %p227
        $region26: #{base_sim_model3_forward.1} parent=11 // pred_check_branch
          %741 = sbr.rel (%p739) target = $region28
        $region27: #{base_sim_model3_forward.1} parent=11 // pred_region
          _
        $region28: #{base_sim_model3_forward.1} parent=11 // pred_fallthru
          _
        // Predicated region
        $region29: #{base_sim_model3_forward.1} parent=11 // pred_check
          %p742 = pneg %p248
        $region30: #{base_sim_model3_forward.1} parent=11 // pred_check_branch
          %744 = sbr.rel (%p742) target = $region32
        $region31: #{base_sim_model3_forward.1} parent=11 // pred_region
          _
        $region32: #{base_sim_model3_forward.1} parent=11 // pred_fallthru
          _
        // Predicated region
        $region33: #{base_sim_model3_forward.1} parent=11 // pred_check
          %p745 = pneg %p269
        $region34: #{base_sim_model3_forward.1} parent=11 // pred_check_branch
          %747 = sbr.rel (%p745) target = $region36
        $region35: #{base_sim_model3_forward.1} parent=11 // pred_region
          _
        $region36: #{base_sim_model3_forward.1} parent=11 // pred_fallthru
          _
        // Predicated region
        $region37: #{base_sim_model3_forward.1} parent=11 // pred_check
          %p748 = pneg %p290
        $region38: #{base_sim_model3_forward.1} parent=11 // pred_check_branch
          %750 = sbr.rel (%p748) target = $region40
        $region39: #{base_sim_model3_forward.1} parent=11 // pred_region
          _
        $region40: #{base_sim_model3_forward.1} parent=11 // pred_fallthru
          _
        // Predicated region
        $region41: #{base_sim_model3_forward.1} parent=11 // pred_check
          %p751 = pneg %p311
        $region42: #{base_sim_model3_forward.1} parent=11 // pred_check_branch
          %753 = sbr.rel (%p751) target = $region44
        $region43: #{base_sim_model3_forward.1} parent=11 // pred_region
          _
        $region44: #{base_sim_model3_forward.1} parent=11 // pred_fallthru
          _
        // Predicated region
        $region45: #{base_sim_model3_forward.1} parent=11 // pred_check
          %p754 = pneg %p332
        $region46: #{base_sim_model3_forward.1} parent=11 // pred_check_branch
          %756 = sbr.rel (%p754) target = $region48
        $region47: #{base_sim_model3_forward.1} parent=11 // pred_region
          _
        $region48: #{base_sim_model3_forward.1} parent=11 // pred_fallthru
          _
        // Predicated region
        $region49: #{base_sim_model3_forward.1} parent=11 // pred_check
          %p757 = pneg %p353
        $region50: #{base_sim_model3_forward.1} parent=11 // pred_check_branch
          %759 = sbr.rel (%p757) target = $region52
        $region51: #{base_sim_model3_forward.1} parent=11 // pred_region
          _
        $region52: #{base_sim_model3_forward.1} parent=11 // pred_fallthru
          _
        // Predicated region
        $region53: #{base_sim_model3_forward.1} parent=11 // pred_check
          %p760 = pneg %p374
        $region54: #{base_sim_model3_forward.1} parent=11 // pred_check_branch
          %762 = sbr.rel (%p760) target = $region56
        $region55: #{base_sim_model3_forward.1} parent=11 // pred_region
          _
        $region56: #{base_sim_model3_forward.1} parent=11 // pred_fallthru
          _
        // Predicated region
        $region57: #{base_sim_model3_forward.1} parent=11 // pred_check
          %p763 = pneg %p395
        $region58: #{base_sim_model3_forward.1} parent=11 // pred_check_branch
          %765 = sbr.rel (%p763) target = $region60
        $region59: #{base_sim_model3_forward.1} parent=11 // pred_region
          _
        $region60: #{base_sim_model3_forward.1} parent=11 // pred_fallthru
          _
        // Predicated region
        $region61: #{base_sim_model3_forward.1} parent=11 // pred_check
          %p766 = pneg %p416
        $region62: #{base_sim_model3_forward.1} parent=11 // pred_check_branch
          %768 = sbr.rel (%p766) target = $region64
        $region63: #{base_sim_model3_forward.1} parent=11 // pred_region
          _
        $region64: #{base_sim_model3_forward.1} parent=11 // pred_fallthru
          _
        // Predicated region
        $region65: #{base_sim_model3_forward.1} parent=11 // pred_check
          %p769 = pneg %p437
        $region66: #{base_sim_model3_forward.1} parent=11 // pred_check_branch
          %771 = sbr.rel (%p769) target = $region68
        $region67: #{base_sim_model3_forward.1} parent=11 // pred_region
          _
        $region68: #{base_sim_model3_forward.1} parent=11 // pred_fallthru
          _
        // Predicated region
        $region69: #{base_sim_model3_forward.1} parent=11 // pred_check
          %p772 = pneg %p458
        $region70: #{base_sim_model3_forward.1} parent=11 // pred_check_branch
          %774 = sbr.rel (%p772) target = $region72
        $region71: #{base_sim_model3_forward.1} parent=11 // pred_region
          _
        $region72: #{base_sim_model3_forward.1} parent=11 // pred_fallthru
          _
        // Predicated region
        $region73: #{base_sim_model3_forward.1} parent=11 // pred_check
          %p775 = pneg %p479
        $region74: #{base_sim_model3_forward.1} parent=11 // pred_check_branch
          %777 = sbr.rel (%p775) target = $region76
        $region75: #{base_sim_model3_forward.1} parent=11 // pred_region
          _
        $region76: #{base_sim_model3_forward.1} parent=11 // pred_fallthru
          _
        // Predicated region
        $region77: #{base_sim_model3_forward.1} parent=11 // pred_check
          %p778 = pneg %p500
        $region78: #{base_sim_model3_forward.1} parent=11 // pred_check_branch
          %780 = sbr.rel (%p778) target = $region80
        $region79: #{base_sim_model3_forward.1} parent=11 // pred_region
          _
        $region80: #{base_sim_model3_forward.1} parent=11 // pred_fallthru
          _
        // Predicated region
        $region81: #{base_sim_model3_forward.1} parent=11 // pred_check
          %p781 = pneg %p521
        $region82: #{base_sim_model3_forward.1} parent=11 // pred_check_branch
          %783 = sbr.rel (%p781) target = $region84
        $region83: #{base_sim_model3_forward.1} parent=11 // pred_region
          _
        $region84: #{base_sim_model3_forward.1} parent=11 // pred_fallthru
          _
        // Predicated region
        $region85: #{base_sim_model3_forward.1} parent=11 // pred_check
          %p784 = pneg %p542
        $region86: #{base_sim_model3_forward.1} parent=11 // pred_check_branch
          %786 = sbr.rel (%p784) target = $region88
        $region87: #{base_sim_model3_forward.1} parent=11 // pred_region
          _
        $region88: #{base_sim_model3_forward.1} parent=11 // pred_fallthru
          _
        // Predicated region
        $region89: #{base_sim_model3_forward.1} parent=11 // pred_check
          %p787 = pneg %p563
        $region90: #{base_sim_model3_forward.1} parent=11 // pred_check_branch
          %789 = sbr.rel (%p787) target = $region92
        $region91: #{base_sim_model3_forward.1} parent=11 // pred_region
          _
        $region92: #{base_sim_model3_forward.1} parent=11 // pred_fallthru
          _
        // Predicated region
        $region93: #{base_sim_model3_forward.1} parent=11 // pred_check
          %p790 = pneg %p584
        $region94: #{base_sim_model3_forward.1} parent=11 // pred_check_branch
          %792 = sbr.rel (%p790) target = $region96
        $region95: #{base_sim_model3_forward.1} parent=11 // pred_region
          _
        $region96: #{base_sim_model3_forward.1} parent=11 // pred_fallthru
          _
        // Predicated region
        $region97: #{base_sim_model3_forward.1} parent=11 // pred_check
          %p793 = pneg %p605
        $region98: #{base_sim_model3_forward.1} parent=11 // pred_check_branch
          %795 = sbr.rel (%p793) target = $region100
        $region99: #{base_sim_model3_forward.1} parent=11 // pred_region
          _
        $region100: #{base_sim_model3_forward.1} parent=11 // pred_fallthru
          _
        // Predicated region
        $region101: #{base_sim_model3_forward.1} parent=11 // pred_check
          %p796 = pneg %p626
        $region102: #{base_sim_model3_forward.1} parent=11 // pred_check_branch
          %798 = sbr.rel (%p796) target = $region104
        $region103: #{base_sim_model3_forward.1} parent=11 // pred_region
          _
        $region104: #{base_sim_model3_forward.1} parent=11 // pred_fallthru
          _
        // Predicated region
        $region105: #{base_sim_model3_forward.1} parent=11 // pred_check
          %p799 = pneg %p647
        $region106: #{base_sim_model3_forward.1} parent=11 // pred_check_branch
          %801 = sbr.rel (%p799) target = $region108
        $region107: #{base_sim_model3_forward.1} parent=11 // pred_region
          _
        $region108: #{base_sim_model3_forward.1} parent=11 // pred_fallthru
          _
        // Predicated region
        $region109: #{base_sim_model3_forward.1} parent=11 // pred_check
          %p802 = pneg %p668
        $region110: #{base_sim_model3_forward.1} parent=11 // pred_check_branch
          %804 = sbr.rel (%p802) target = $region112
        $region111: #{base_sim_model3_forward.1} parent=11 // pred_region
          _
        $region112: #{base_sim_model3_forward.1} parent=11 // pred_fallthru
          _
        // Predicated region
        $region113: #{base_sim_model3_forward.1} parent=11 // pred_check
          %p805 = pneg %p689
        $region114: #{base_sim_model3_forward.1} parent=11 // pred_check_branch
          %807 = sbr.rel (%p805) target = $region116
        $region115: #{base_sim_model3_forward.1} parent=11 // pred_region
          _
        $region116: #{base_sim_model3_forward.1} parent=11 // pred_fallthru
          _
      $region12: #{base_sim_model3_forward.1} parent=5 // pred_fallthru
        _
      %p808 = scmp.lt.s32.totalorder %s65, 2
      // Predicated region
      $region117: #{base_sim_model3_forward.1} parent=5 // pred_check
        %p809 = pneg %p808
      $region118: #{base_sim_model3_forward.1} parent=5 // pred_check_branch
        %811 = sbr.rel (%p809) target = $region120
      $region119: #{base_sim_model3_forward.1} parent=5 // pred_region
        // Predicated region
        $region121: #{base_sim_model3_forward.1} parent=119 // pred_check
          %p812 = pneg %p85
        $region122: #{base_sim_model3_forward.1} parent=119 // pred_check_branch
          %814 = sbr.rel (%p812) target = $region124
        $region123: #{base_sim_model3_forward.1} parent=119 // pred_region
          %s815 = sand.u32 %s75, 1
          %s816 = sand.u32 %s75, 1
          %s817 = smul.addr %s816, 48
          %s818 = scalar_lea.vmem [#allocation2], %s817
          %s819 = smul.addr %s65, 8
          %s820 = scalar_lea.vmem %s1, %s819
          // Predicated region
          $region125: #{base_sim_model3_forward.1} parent=123 // pred_check
            _
          $region126: #{base_sim_model3_forward.1} parent=123 // pred_check_branch
            %822 = sbr.rel (0) target = $region128
          $region127: #{base_sim_model3_forward.1} parent=123 // pred_region
            // Predicated region
            $region129: #{base_sim_model3_forward.1} parent=127 // pred_check
              _
            $region130: #{base_sim_model3_forward.1} parent=127 // pred_check_branch
              %824 = sbr.rel (0) target = $region132
            $region131: #{base_sim_model3_forward.1} parent=127 // pred_region
              // Predicated region
              $region144: #{base_sim_model3_forward.1} parent=131 // pred_check
                _
              $region145: #{base_sim_model3_forward.1} parent=131 // pred_check_branch
                %850 = sbr.rel (0) target = $region147
              $region146: #{base_sim_model3_forward.1} parent=131 // pred_region
                loop: start=0, step=1, limit=1
                $region148: #{base_sim_model3_forward.1} parent=146 // loop_pre_header
                  _
                $region149: #{base_sim_model3_forward.1} parent=146 // loop_header
                  %s852 = sphi 0, %s856
                  %p853 = scmp.ge.s32.totalorder %s852, 1
                  %s857 = sphi %s820, %s820
                  %s858 = sphi %s818, %s818
                $region150: #{base_sim_model3_forward.1} parent=146 // loop_header_branch
                  %855 = sbr.rel (%p853) target = $region154
                $region151: #{base_sim_model3_forward.1} parent=146 // loop_body
                  %v859 = vld [vmem:[%s857] sm:$0xff]
                  %860 = vst [vmem:[%s858] sm:$0xff] %v859
                  %v861 = vld [vmem:[%s857 + $0x10] sm:$0xff]
                  %862 = vst [vmem:[%s858 + $0x8] sm:$0xff] %v861
                  %v863 = vld [vmem:[%s857 + $0x20] sm:$0xff]
                  %864 = vst [vmem:[%s858 + $0x10] sm:$0xff] %v863
                  %v865 = vld [vmem:[%s857 + $0x30] sm:$0xff]
                  %866 = vst [vmem:[%s858 + $0x18] sm:$0xff] %v865
                  %v867 = vld [vmem:[%s857 + $0x40] sm:$0xff]
                  %868 = vst [vmem:[%s858 + $0x20] sm:$0xff] %v867
                  %v869 = vld [vmem:[%s857 + $0x50] sm:$0xff]
                  %870 = vst [vmem:[%s858 + $0x28] sm:$0xff] %v869
                $region152: #{base_sim_model3_forward.1} parent=146 // loop_footer
                  %s856 = sadd.s32 1, %s852
                $region153: #{base_sim_model3_forward.1} parent=146 // loop_footer_branch
                  %851 = sbr.rel target = $region149
                $region154: #{base_sim_model3_forward.1} parent=146 // loop_exit
                  _
              $region147: #{base_sim_model3_forward.1} parent=131 // pred_fallthru
                _
              // Predicated region
              $region155: #{base_sim_model3_forward.1} parent=131 // pred_check
                _
              $region156: #{base_sim_model3_forward.1} parent=131 // pred_check_branch
                %872 = sbr.rel target = $region158
              $region157: #{base_sim_model3_forward.1} parent=131 // pred_region
                _
              $region158: #{base_sim_model3_forward.1} parent=131 // pred_fallthru
                _
            $region132: #{base_sim_model3_forward.1} parent=127 // pred_fallthru
              _
            // Predicated region
            $region133: #{base_sim_model3_forward.1} parent=127 // pred_check
              _
            $region134: #{base_sim_model3_forward.1} parent=127 // pred_check_branch
              %826 = sbr.rel target = $region136
            $region135: #{base_sim_model3_forward.1} parent=127 // pred_region
              %s828 = ssub.s32 256, 1
              loop: start=0, step=1, limit=1
              $region137: #{base_sim_model3_forward.1} parent=135 // loop_pre_header
                _
              $region138: #{base_sim_model3_forward.1} parent=135 // loop_header
                %s830 = sphi 0, %s834
                %p831 = scmp.ge.s32.totalorder %s830, 1
                %s835 = sphi %s820, %s820
                %s836 = sphi %s818, %s818
              $region139: #{base_sim_model3_forward.1} parent=135 // loop_header_branch
                %833 = sbr.rel (%p831) target = $region143
              $region140: #{base_sim_model3_forward.1} parent=135 // loop_body
                %v837 = vld [vmem:[%s835] sm:%s828]
                %838 = vst [vmem:[%s836] sm:%s828] %v837
                %v839 = vld [vmem:[%s835 + $0x10] sm:%s828]
                %840 = vst [vmem:[%s836 + $0x8] sm:%s828] %v839
                %v841 = vld [vmem:[%s835 + $0x20] sm:%s828]
                %842 = vst [vmem:[%s836 + $0x10] sm:%s828] %v841
                %v843 = vld [vmem:[%s835 + $0x30] sm:%s828]
                %844 = vst [vmem:[%s836 + $0x18] sm:%s828] %v843
                %v845 = vld [vmem:[%s835 + $0x40] sm:%s828]
                %846 = vst [vmem:[%s836 + $0x20] sm:%s828] %v845
                %v847 = vld [vmem:[%s835 + $0x50] sm:%s828]
                %848 = vst [vmem:[%s836 + $0x28] sm:%s828] %v847
              $region141: #{base_sim_model3_forward.1} parent=135 // loop_footer
                %s834 = sadd.s32 1, %s830
              $region142: #{base_sim_model3_forward.1} parent=135 // loop_footer_branch
                %829 = sbr.rel target = $region138
              $region143: #{base_sim_model3_forward.1} parent=135 // loop_exit
                _
            $region136: #{base_sim_model3_forward.1} parent=127 // pred_fallthru
              _
          $region128: #{base_sim_model3_forward.1} parent=123 // pred_fallthru
            _
          %873 = vnop
        $region124: #{base_sim_model3_forward.1} parent=119 // pred_fallthru
          _
        // Predicated region
        $region159: #{base_sim_model3_forward.1} parent=119 // pred_check
          %p874 = pneg %p111
        $region160: #{base_sim_model3_forward.1} parent=119 // pred_check_branch
          %876 = sbr.rel (%p874) target = $region162
        $region161: #{base_sim_model3_forward.1} parent=119 // pred_region
          %s877 = sand.u32 %s101, 1
          %s878 = sand.u32 %s101, 1
          %s879 = smul.addr %s878, 32
          %s880 = scalar_lea.vmem [#allocation3], %s879
          %s881 = smul.addr %s65, 8
          %s882 = scalar_lea.vmem %s3, %s881
          // Predicated region
          $region163: #{base_sim_model3_forward.1} parent=161 // pred_check
            _
          $region164: #{base_sim_model3_forward.1} parent=161 // pred_check_branch
            %884 = sbr.rel (0) target = $region166
          $region165: #{base_sim_model3_forward.1} parent=161 // pred_region
            // Predicated region
            $region167: #{base_sim_model3_forward.1} parent=165 // pred_check
              _
            $region168: #{base_sim_model3_forward.1} parent=165 // pred_check_branch
              %886 = sbr.rel (0) target = $region170
            $region169: #{base_sim_model3_forward.1} parent=165 // pred_region
              // Predicated region
              $region182: #{base_sim_model3_forward.1} parent=169 // pred_check
                _
              $region183: #{base_sim_model3_forward.1} parent=169 // pred_check_branch
                %908 = sbr.rel (0) target = $region185
              $region184: #{base_sim_model3_forward.1} parent=169 // pred_region
                loop: start=0, step=1, limit=1
                $region186: #{base_sim_model3_forward.1} parent=184 // loop_pre_header
                  _
                $region187: #{base_sim_model3_forward.1} parent=184 // loop_header
                  %s910 = sphi 0, %s914
                  %p911 = scmp.ge.s32.totalorder %s910, 1
                  %s915 = sphi %s882, %s882
                  %s916 = sphi %s880, %s880
                $region188: #{base_sim_model3_forward.1} parent=184 // loop_header_branch
                  %913 = sbr.rel (%p911) target = $region192
                $region189: #{base_sim_model3_forward.1} parent=184 // loop_body
                  %v917 = vld [vmem:[%s915] sm:$0xff]
                  %918 = vst [vmem:[%s916] sm:$0xff] %v917
                  %v919 = vld [vmem:[%s915 + $0x10] sm:$0xff]
                  %920 = vst [vmem:[%s916 + $0x8] sm:$0xff] %v919
                  %v921 = vld [vmem:[%s915 + $0x20] sm:$0xff]
                  %922 = vst [vmem:[%s916 + $0x10] sm:$0xff] %v921
                  %v923 = vld [vmem:[%s915 + $0x30] sm:$0xff]
                  %924 = vst [vmem:[%s916 + $0x18] sm:$0xff] %v923
                $region190: #{base_sim_model3_forward.1} parent=184 // loop_footer
                  %s914 = sadd.s32 1, %s910
                $region191: #{base_sim_model3_forward.1} parent=184 // loop_footer_branch
                  %909 = sbr.rel target = $region187
                $region192: #{base_sim_model3_forward.1} parent=184 // loop_exit
                  _
              $region185: #{base_sim_model3_forward.1} parent=169 // pred_fallthru
                _
              // Predicated region
              $region193: #{base_sim_model3_forward.1} parent=169 // pred_check
                _
              $region194: #{base_sim_model3_forward.1} parent=169 // pred_check_branch
                %926 = sbr.rel target = $region196
              $region195: #{base_sim_model3_forward.1} parent=169 // pred_region
                _
              $region196: #{base_sim_model3_forward.1} parent=169 // pred_fallthru
                _
            $region170: #{base_sim_model3_forward.1} parent=165 // pred_fallthru
              _
            // Predicated region
            $region171: #{base_sim_model3_forward.1} parent=165 // pred_check
              _
            $region172: #{base_sim_model3_forward.1} parent=165 // pred_check_branch
              %888 = sbr.rel target = $region174
            $region173: #{base_sim_model3_forward.1} parent=165 // pred_region
              %s890 = ssub.s32 256, 1
              loop: start=0, step=1, limit=1
              $region175: #{base_sim_model3_forward.1} parent=173 // loop_pre_header
                _
              $region176: #{base_sim_model3_forward.1} parent=173 // loop_header
                %s892 = sphi 0, %s896
                %p893 = scmp.ge.s32.totalorder %s892, 1
                %s897 = sphi %s882, %s882
                %s898 = sphi %s880, %s880
              $region177: #{base_sim_model3_forward.1} parent=173 // loop_header_branch
                %895 = sbr.rel (%p893) target = $region181
              $region178: #{base_sim_model3_forward.1} parent=173 // loop_body
                %v899 = vld [vmem:[%s897] sm:%s890]
                %900 = vst [vmem:[%s898] sm:%s890] %v899
                %v901 = vld [vmem:[%s897 + $0x10] sm:%s890]
                %902 = vst [vmem:[%s898 + $0x8] sm:%s890] %v901
                %v903 = vld [vmem:[%s897 + $0x20] sm:%s890]
                %904 = vst [vmem:[%s898 + $0x10] sm:%s890] %v903
                %v905 = vld [vmem:[%s897 + $0x30] sm:%s890]
                %906 = vst [vmem:[%s898 + $0x18] sm:%s890] %v905
              $region179: #{base_sim_model3_forward.1} parent=173 // loop_footer
                %s896 = sadd.s32 1, %s892
              $region180: #{base_sim_model3_forward.1} parent=173 // loop_footer_branch
                %891 = sbr.rel target = $region176
              $region181: #{base_sim_model3_forward.1} parent=173 // loop_exit
                _
            $region174: #{base_sim_model3_forward.1} parent=165 // pred_fallthru
              _
          $region166: #{base_sim_model3_forward.1} parent=161 // pred_fallthru
            _
          %927 = vnop
        $region162: #{base_sim_model3_forward.1} parent=119 // pred_fallthru
          _
        // Predicated region
        $region197: #{base_sim_model3_forward.1} parent=119 // pred_check
          %p928 = pneg %p137
        $region198: #{base_sim_model3_forward.1} parent=119 // pred_check_branch
          %930 = sbr.rel (%p928) target = $region200
        $region199: #{base_sim_model3_forward.1} parent=119 // pred_region
          %p931 = scmp.lt.s32.totalorder %s65, 1
          %s932 = scalar_select %p931, %s65, 1
          %s933 = smul.addr %s932, 8
          %s934 = scalar_lea.vmem %s5, %s933
        $region200: #{base_sim_model3_forward.1} parent=119 // pred_fallthru
          _
      $region120: #{base_sim_model3_forward.1} parent=5 // pred_fallthru
        _
      %p935 = scmp.le.s32.totalorder 1, %s65
      %p936 = scmp.lt.s32.totalorder %s65, 3
      %p937 = pnand %p935, %p936
      %p938 = pneg %p937
      // Predicated region
      $region201: #{base_sim_model3_forward.1} parent=5 // pred_check
        _
      $region202: #{base_sim_model3_forward.1} parent=5 // pred_check_branch
        %940 = sbr.rel (%p937) target = $region204
      $region203: #{base_sim_model3_forward.1} parent=5 // pred_region
        %s941 = ssub.s32 %s65, 1
        %s942 = sand.u32 %s78, 1
        %s943 = sand.u32 %s78, 1
        %s944 = smul.addr %s943, 48
        %s945 = scalar_lea.vmem [#allocation2], %s944
        // Predicated region
        $region205: #{base_sim_model3_forward.1} parent=203 // pred_check
          %p946 = pneg %p91
        $region206: #{base_sim_model3_forward.1} parent=203 // pred_check_branch
          %948 = sbr.rel (%p946) target = $region208
        $region207: #{base_sim_model3_forward.1} parent=203 // pred_region
          _
        $region208: #{base_sim_model3_forward.1} parent=203 // pred_fallthru
          _
        %s949 = sand.u32 %s104, 1
        %s950 = sand.u32 %s104, 1
        %s951 = smul.addr %s950, 32
        %s952 = scalar_lea.vmem [#allocation3], %s951
        // Predicated region
        $region209: #{base_sim_model3_forward.1} parent=203 // pred_check
          %p953 = pneg %p117
        $region210: #{base_sim_model3_forward.1} parent=203 // pred_check_branch
          %955 = sbr.rel (%p953) target = $region212
        $region211: #{base_sim_model3_forward.1} parent=203 // pred_region
          _
        $region212: #{base_sim_model3_forward.1} parent=203 // pred_fallthru
          _
        %s956 = sand.u32 %s78, 1
        %s957 = sand.u32 %s78, 1
        %s958 = smul.addr %s957, 48
        %s959 = scalar_lea.vmem [#allocation2], %s958
        %p960 = pneg %p91
        %p961 = pneg %p88
        %s962 = sand.u32 %s104, 1
        %s963 = sand.u32 %s104, 1
        %s964 = smul.addr %s963, 32
        %s965 = scalar_lea.vmem [#allocation3], %s964
        %p966 = pneg %p117
        %p967 = pneg %p114
        %p968 = scmp.lt.s32.totalorder %s70, 1
        %s969 = scalar_select %p968, %s70, 1
        %s970 = smul.addr %s969, 8
        %s971 = scalar_lea.vmem %s5, %s970
        %p972 = pneg %p143
        %p973 = pneg %p140
        %p974 = pneg %p164
        %p975 = pneg %p161
        %p976 = pneg %p185
        %p977 = pneg %p182
        %p978 = pneg %p206
        %p979 = pneg %p203
        %p980 = pneg %p227
        %p981 = pneg %p224
        %p982 = pneg %p248
        %p983 = pneg %p245
        %p984 = pneg %p269
        %p985 = pneg %p266
        %p986 = pneg %p290
        %p987 = pneg %p287
        %p988 = pneg %p311
        %p989 = pneg %p308
        %p990 = pneg %p332
        %p991 = pneg %p329
        %p992 = pneg %p353
        %p993 = pneg %p350
        %p994 = pneg %p374
        %p995 = pneg %p371
        %p996 = pneg %p395
        %p997 = pneg %p392
        %p998 = pneg %p416
        %p999 = pneg %p413
        %p1000 = pneg %p437
        %p1001 = pneg %p434
        %p1002 = pneg %p458
        %p1003 = pneg %p455
        %p1004 = pneg %p479
        %p1005 = pneg %p476
        %p1006 = pneg %p500
        %p1007 = pneg %p497
        %p1008 = pneg %p521
        %p1009 = pneg %p518
        %p1010 = pneg %p542
        %p1011 = pneg %p539
        %p1012 = pneg %p563
        %p1013 = pneg %p560
        %p1014 = pneg %p584
        %p1015 = pneg %p581
        %p1016 = pneg %p605
        %p1017 = pneg %p602
        %p1018 = pneg %p626
        %p1019 = pneg %p623
        %p1020 = pneg %p647
        %p1021 = pneg %p644
        %p1022 = pneg %p668
        %p1023 = pneg %p665
        %p1024 = pneg %p689
        %p1025 = pneg %p686
        %p1026 = pneg %p715
        %p1027 = pneg %p712
        %p1028 = scmp.lt.s32.totalorder %s70, 1
        %s1029 = scalar_select %p1028, %s70, 1
        %s1030 = smul.addr %s1029, 8
        %s1031 = scalar_lea.vmem %s59, %s1030
        %p1032 = scmp.lt.s32.totalorder %s70, 1
        %s1033 = scalar_select %p1032, %s70, 1
        %s1034 = smul.addr %s1033, 8
        %s1035 = scalar_lea.vmem %s5, %s1034
        %p1036 = scmp.lt.s32.totalorder %s70, 1
        %s1037 = scalar_select %p1036, %s70, 1
        %s1038 = smul.addr %s1037, 8
        %s1039 = scalar_lea.vmem %s59, %s1038
        %v1040 = vld [vmem:[%s945] sm:$0xff]
        %s1041 = scalar_lea.vmem %s945, 8 [#allocation2]
        %v1042 = vld [vmem:[%s1041] sm:$0xff]
        %s1043 = scalar_lea.vmem %s945, 16 [#allocation2]
        %v1044 = vld [vmem:[%s1043] sm:$0xff]
        %s1045 = scalar_lea.vmem %s945, 24 [#allocation2]
        %v1046 = vld [vmem:[%s1045] sm:$0xff]
        %s1047 = scalar_lea.vmem %s945, 32 [#allocation2]
        %v1048 = vld [vmem:[%s1047] sm:$0xff]
        %s1049 = scalar_lea.vmem %s945, 40 [#allocation2]
        %v1050 = vld [vmem:[%s1049] sm:$0xff]
        %v1051 = vld [vmem:[%s7] sm:$0xff]
        %v1052 = vld [vmem:[%s9] sm:$0x1]
        %v1054 = vlaneseq
        %v1055 = vshrl.u32 %v1054, 7
        %v1056 = vsub.s32 0, %v1055
        %v1057 = vrot.slane %v1052, %v1056
        %vm1059 = vcmask 64512
        %v1061 = vsel %vm1059, %v1040, 0
        %v1064 = vsel %vm1059, %v1042, 0
        %v1067 = vsel %vm1059, %v1044, 0
        %v1070 = vsel %vm1059, %v1046, 0
        %v1073 = vsel %vm1059, %v1048, 0
        %v1076 = vsel %vm1059, %v1050, 0
        %1078 = vmatprep.subr.mxu0 0.0
        %1079 = vmatpush1.msra.mxu0 0.0
        %1080 = vmatprep.subr.mxu0 0.0
        %1081 = vmatpush1.msra.mxu0 0.0
        %1082 = vmatprep.subr.mxu0 0.0
        %1083 = vmatpush1.msra.mxu0 0.0
        %1084 = vmatprep.subr.mxu0 0.0
        %1085 = vmatpush1.msra.mxu0 0.0
        %1086 = vmatprep.subr.mxu0 0.0
        %1087 = vmatpush1.msra.mxu0 0.0
        %1088 = vmatprep.subr.mxu0 0.0
        %1089 = vmatpush1.msra.mxu0 0.0
        %1090 = vmatprep.subr.mxu0 0.0
        %1091 = vmatpush1.msra.mxu0 0.0
        %1092 = vmatprep.subr.mxu0 0.0
        %1093 = vmatpush1.msra.mxu0 0.0
        %1094 = vmatprep.subr.mxu0 0.0
        %1095 = vmatpush1.msra.mxu0 0.0
        %1096 = vmatprep.subr.mxu0 0.0
        %1097 = vmatpush1.msra.mxu0 0.0
        %1098 = vmatprep.subr.mxu0 0.0
        %1099 = vmatpush1.msra.mxu0 0.0
        %1100 = vmatprep.subr.mxu0 0.0
        %1101 = vmatpush1.msra.mxu0 0.0
        %1102 = vmatprep.subr.mxu0 0.0
        %1103 = vmatpush1.msra.mxu0 0.0
        %1104 = vmatprep.subr.mxu0 0.0
        %1105 = vmatpush1.msra.mxu0 0.0
        %1106 = vmatprep.subr.mxu0 0.0
        %1107 = vmatpush1.msra.mxu0 0.0
        %1108 = vmatprep.subr.mxu0 0.0
        %1109 = vmatpush1.msra.mxu0 %v1051
        %1110 = vmatprep.subr.mxu0 0.0
        %1111 = vmatpush2.msra.mxu0 0.0
        %1112 = vmatprep.subr.mxu0 0.0
        %1113 = vmatpush2.msra.mxu0 0.0
        %1114 = vmatprep.subr.mxu0 0.0
        %1115 = vmatpush2.msra.mxu0 0.0
        %1116 = vmatprep.subr.mxu0 0.0
        %1117 = vmatpush2.msra.mxu0 0.0
        %1118 = vmatprep.subr.mxu0 0.0
        %1119 = vmatpush2.msra.mxu0 0.0
        %1120 = vmatprep.subr.mxu0 0.0
        %1121 = vmatpush2.msra.mxu0 0.0
        %1122 = vmatprep.subr.mxu0 0.0
        %1123 = vmatpush2.msra.mxu0 0.0
        %1124 = vmatprep.subr.mxu0 0.0
        %1125 = vmatpush2.msra.mxu0 0.0
        %1126 = vmatprep.subr.mxu0 0.0
        %1127 = vmatpush2.msra.mxu0 0.0
        %1128 = vmatprep.subr.mxu0 0.0
        %1129 = vmatpush2.msra.mxu0 0.0
        %1130 = vmatprep.subr.mxu0 0.0
        %1131 = vmatpush2.msra.mxu0 0.0
        %1132 = vmatprep.subr.mxu0 0.0
        %1133 = vmatpush2.msra.mxu0 0.0
        %1134 = vmatprep.subr.mxu0 0.0
        %1135 = vmatpush2.msra.mxu0 0.0
        %1136 = vmatprep.subr.mxu0 0.0
        %1137 = vmatpush2.msra.mxu0 0.0
        %1138 = vmatprep.subr.mxu0 0.0
        %1139 = vmatpush2.msra.mxu0 0.0
        %1140 = vmatprep.subr.mxu0 0.0
        %1141 = vmatpush2.msra.mxu0 0.0
        %1142 = vmatprep.mubr.f32.mxu0 0.0
        %1143 = vmatmul.mubr.f32.gmra.mxu0 %v1061
        %v1144 = vpop.f32.mrf.mxu0
        %v1145 = vadd.f32 %v1057, %v1144
        %v1146 = vpop.f32.mrf.mxu0
        %1147 = vmatprep.mubr.f32.mxu0 0.0
        %1148 = vmatmul.mubr.f32.gmra.mxu0 %v1064
        %v1149 = vpop.f32.mrf.mxu0
        %v1150 = vadd.f32 %v1057, %v1149
        %v1151 = vpop.f32.mrf.mxu0
        %1152 = vmatprep.mubr.f32.mxu0 0.0
        %1153 = vmatmul.mubr.f32.gmra.mxu0 %v1067
        %v1154 = vpop.f32.mrf.mxu0
        %v1155 = vadd.f32 %v1057, %v1154
        %v1156 = vpop.f32.mrf.mxu0
        %1157 = vmatprep.mubr.f32.mxu0 0.0
        %1158 = vmatmul.mubr.f32.gmra.mxu0 %v1070
        %v1159 = vpop.f32.mrf.mxu0
        %v1160 = vadd.f32 %v1057, %v1159
        %v1161 = vpop.f32.mrf.mxu0
        %1162 = vmatprep.mubr.f32.mxu0 0.0
        %1163 = vmatmul.mubr.f32.gmra.mxu0 %v1073
        %v1164 = vpop.f32.mrf.mxu0
        %v1165 = vadd.f32 %v1057, %v1164
        %v1166 = vpop.f32.mrf.mxu0
        %1167 = vmatprep.mubr.f32.mxu0 0.0
        %1168 = vmatmul.mubr.f32.gmra.mxu0 %v1076
        %v1169 = vpop.f32.mrf.mxu0
        %v1170 = vadd.f32 %v1057, %v1169
        %v1171 = vpop.f32.mrf.mxu0
        %1172 = vdwg.mxu0
        %v1173 = vmax.f32 %v1145, 0.0
        %v1174 = vmax.f32 %v1150, 0.0
        %v1175 = vmax.f32 %v1155, 0.0
        %v1176 = vmax.f32 %v1160, 0.0
        %v1177 = vmax.f32 %v1165, 0.0
        %v1178 = vmax.f32 %v1170, 0.0
        %v1179 = vld [vmem:[%s11] sm:$0xff]
        %v1180 = vld [vmem:[%s11 + $0x8] sm:$0xff]
        %v1181 = vld [vmem:[%s11 + $0x10] sm:$0xff]
        %v1182 = vld [vmem:[%s11 + $0x18] sm:$0xff]
        %v1183 = vld [vmem:[%s13] sm:$0x1]
        %v1185 = vlaneseq
        %v1186 = vshrl.u32 %v1185, 7
        %v1187 = vsub.s32 0, %v1186
        %v1188 = vrot.slane %v1183, %v1187
        %vm1190 = vcmask 261120
        %v1192 = vsel %vm1190, %v1173, 0
        %v1195 = vsel %vm1190, %v1174, 0
        %v1198 = vsel %vm1190, %v1175, 0
        %v1201 = vsel %vm1190, %v1176, 0
        %v1204 = vsel %vm1190, %v1177, 0
        %v1207 = vsel %vm1190, %v1178, 0
        %1209 = vmatprep.subr.mxu0 0.0
        %1210 = vmatpush1.msra.mxu0 0.0
        %1211 = vmatprep.subr.mxu0 0.0
        %1212 = vmatpush1.msra.mxu0 0.0
        %1213 = vmatprep.subr.mxu0 0.0
        %1214 = vmatpush1.msra.mxu0 0.0
        %1215 = vmatprep.subr.mxu0 0.0
        %1216 = vmatpush1.msra.mxu0 0.0
        %1217 = vmatprep.subr.mxu0 0.0
        %1218 = vmatpush1.msra.mxu0 0.0
        %1219 = vmatprep.subr.mxu0 0.0
        %1220 = vmatpush1.msra.mxu0 0.0
        %1221 = vmatprep.subr.mxu0 0.0
        %1222 = vmatpush1.msra.mxu0 0.0
        %1223 = vmatprep.subr.mxu0 0.0
        %1224 = vmatpush1.msra.mxu0 0.0
        %1225 = vmatprep.subr.mxu0 0.0
        %1226 = vmatpush1.msra.mxu0 0.0
        %1227 = vmatprep.subr.mxu0 0.0
        %1228 = vmatpush1.msra.mxu0 0.0
        %1229 = vmatprep.subr.mxu0 0.0
        %1230 = vmatpush1.msra.mxu0 0.0
        %1231 = vmatprep.subr.mxu0 0.0
        %1232 = vmatpush1.msra.mxu0 0.0
        %1233 = vmatprep.subr.mxu0 0.0
        %1234 = vmatpush1.msra.mxu0 %v1182
        %1235 = vmatprep.subr.mxu0 0.0
        %1236 = vmatpush1.msra.mxu0 %v1181
        %1237 = vmatprep.subr.mxu0 0.0
        %1238 = vmatpush1.msra.mxu0 %v1180
        %1239 = vmatprep.subr.mxu0 0.0
        %1240 = vmatpush1.msra.mxu0 %v1179
        %1241 = vmatprep.subr.mxu0 0.0
        %1242 = vmatpush2.msra.mxu0 0.0
        %1243 = vmatprep.subr.mxu0 0.0
        %1244 = vmatpush2.msra.mxu0 0.0
        %1245 = vmatprep.subr.mxu0 0.0
        %1246 = vmatpush2.msra.mxu0 0.0
        %1247 = vmatprep.subr.mxu0 0.0
        %1248 = vmatpush2.msra.mxu0 0.0
        %1249 = vmatprep.subr.mxu0 0.0
        %1250 = vmatpush2.msra.mxu0 0.0
        %1251 = vmatprep.subr.mxu0 0.0
        %1252 = vmatpush2.msra.mxu0 0.0
        %1253 = vmatprep.subr.mxu0 0.0
        %1254 = vmatpush2.msra.mxu0 0.0
        %1255 = vmatprep.subr.mxu0 0.0
        %1256 = vmatpush2.msra.mxu0 0.0
        %1257 = vmatprep.subr.mxu0 0.0
        %1258 = vmatpush2.msra.mxu0 0.0
        %1259 = vmatprep.subr.mxu0 0.0
        %1260 = vmatpush2.msra.mxu0 0.0
        %1261 = vmatprep.subr.mxu0 0.0
        %1262 = vmatpush2.msra.mxu0 0.0
        %1263 = vmatprep.subr.mxu0 0.0
        %1264 = vmatpush2.msra.mxu0 0.0
        %1265 = vmatprep.subr.mxu0 0.0
        %1266 = vmatpush2.msra.mxu0 0.0
        %1267 = vmatprep.subr.mxu0 0.0
        %1268 = vmatpush2.msra.mxu0 0.0
        %1269 = vmatprep.subr.mxu0 0.0
        %1270 = vmatpush2.msra.mxu0 0.0
        %1271 = vmatprep.subr.mxu0 0.0
        %1272 = vmatpush2.msra.mxu0 0.0
        %1273 = vmatprep.mubr.f32.mxu0 0.0
        %1274 = vmatmul.mubr.f32.gmra.mxu0 %v1192
        %v1275 = vpop.f32.mrf.mxu0
        %v1276 = vadd.f32 %v1188, %v1275
        %v1277 = vpop.f32.mrf.mxu0
        %1278 = vmatprep.mubr.f32.mxu0 0.0
        %1279 = vmatmul.mubr.f32.gmra.mxu0 %v1195
        %v1280 = vpop.f32.mrf.mxu0
        %v1281 = vadd.f32 %v1188, %v1280
        %v1282 = vpop.f32.mrf.mxu0
        %1283 = vmatprep.mubr.f32.mxu0 0.0
        %1284 = vmatmul.mubr.f32.gmra.mxu0 %v1198
        %v1285 = vpop.f32.mrf.mxu0
        %v1286 = vadd.f32 %v1188, %v1285
        %v1287 = vpop.f32.mrf.mxu0
        %1288 = vmatprep.mubr.f32.mxu0 0.0
        %1289 = vmatmul.mubr.f32.gmra.mxu0 %v1201
        %v1290 = vpop.f32.mrf.mxu0
        %v1291 = vadd.f32 %v1188, %v1290
        %v1292 = vpop.f32.mrf.mxu0
        %1293 = vmatprep.mubr.f32.mxu0 0.0
        %1294 = vmatmul.mubr.f32.gmra.mxu0 %v1204
        %v1295 = vpop.f32.mrf.mxu0
        %v1296 = vadd.f32 %v1188, %v1295
        %v1297 = vpop.f32.mrf.mxu0
        %1298 = vmatprep.mubr.f32.mxu0 0.0
        %1299 = vmatmul.mubr.f32.gmra.mxu0 %v1207
        %v1300 = vpop.f32.mrf.mxu0
        %v1301 = vadd.f32 %v1188, %v1300
        %v1302 = vpop.f32.mrf.mxu0
        %1303 = vdwg.mxu0
        %v1304 = vld [vmem:[%s39] sm:$0xff]
        %v1305 = vld [vmem:[%s39 + $0x8] sm:$0xff]
        %v1306 = vld [vmem:[%s39 + $0x10] sm:$0xff]
        %v1307 = vld [vmem:[%s39 + $0x18] sm:$0xff]
        %v1308 = vld [vmem:[%s41] sm:$0x1]
        %v1310 = vlaneseq
        %v1311 = vshrl.u32 %v1310, 7
        %v1312 = vsub.s32 0, %v1311
        %v1313 = vrot.slane %v1308, %v1312
        %v1316 = vsel %vm1190, %v1276, 0
        %v1319 = vsel %vm1190, %v1281, 0
        %v1322 = vsel %vm1190, %v1286, 0
        %v1325 = vsel %vm1190, %v1291, 0
        %v1328 = vsel %vm1190, %v1296, 0
        %v1331 = vsel %vm1190, %v1301, 0
        %1333 = vmatprep.subr.mxu0 0.0
        %1334 = vmatpush1.msra.mxu0 0.0
        %1335 = vmatprep.subr.mxu0 0.0
        %1336 = vmatpush1.msra.mxu0 0.0
        %1337 = vmatprep.subr.mxu0 0.0
        %1338 = vmatpush1.msra.mxu0 0.0
        %1339 = vmatprep.subr.mxu0 0.0
        %1340 = vmatpush1.msra.mxu0 0.0
        %1341 = vmatprep.subr.mxu0 0.0
        %1342 = vmatpush1.msra.mxu0 0.0
        %1343 = vmatprep.subr.mxu0 0.0
        %1344 = vmatpush1.msra.mxu0 0.0
        %1345 = vmatprep.subr.mxu0 0.0
        %1346 = vmatpush1.msra.mxu0 0.0
        %1347 = vmatprep.subr.mxu0 0.0
        %1348 = vmatpush1.msra.mxu0 0.0
        %1349 = vmatprep.subr.mxu0 0.0
        %1350 = vmatpush1.msra.mxu0 0.0
        %1351 = vmatprep.subr.mxu0 0.0
        %1352 = vmatpush1.msra.mxu0 0.0
        %1353 = vmatprep.subr.mxu0 0.0
        %1354 = vmatpush1.msra.mxu0 0.0
        %1355 = vmatprep.subr.mxu0 0.0
        %1356 = vmatpush1.msra.mxu0 0.0
        %1357 = vmatprep.subr.mxu0 0.0
        %1358 = vmatpush1.msra.mxu0 %v1307
        %1359 = vmatprep.subr.mxu0 0.0
        %1360 = vmatpush1.msra.mxu0 %v1306
        %1361 = vmatprep.subr.mxu0 0.0
        %1362 = vmatpush1.msra.mxu0 %v1305
        %1363 = vmatprep.subr.mxu0 0.0
        %1364 = vmatpush1.msra.mxu0 %v1304
        %1365 = vmatprep.subr.mxu0 0.0
        %1366 = vmatpush2.msra.mxu0 0.0
        %1367 = vmatprep.subr.mxu0 0.0
        %1368 = vmatpush2.msra.mxu0 0.0
        %1369 = vmatprep.subr.mxu0 0.0
        %1370 = vmatpush2.msra.mxu0 0.0
        %1371 = vmatprep.subr.mxu0 0.0
        %1372 = vmatpush2.msra.mxu0 0.0
        %1373 = vmatprep.subr.mxu0 0.0
        %1374 = vmatpush2.msra.mxu0 0.0
        %1375 = vmatprep.subr.mxu0 0.0
        %1376 = vmatpush2.msra.mxu0 0.0
        %1377 = vmatprep.subr.mxu0 0.0
        %1378 = vmatpush2.msra.mxu0 0.0
        %1379 = vmatprep.subr.mxu0 0.0
        %1380 = vmatpush2.msra.mxu0 0.0
        %1381 = vmatprep.subr.mxu0 0.0
        %1382 = vmatpush2.msra.mxu0 0.0
        %1383 = vmatprep.subr.mxu0 0.0
        %1384 = vmatpush2.msra.mxu0 0.0
        %1385 = vmatprep.subr.mxu0 0.0
        %1386 = vmatpush2.msra.mxu0 0.0
        %1387 = vmatprep.subr.mxu0 0.0
        %1388 = vmatpush2.msra.mxu0 0.0
        %1389 = vmatprep.subr.mxu0 0.0
        %1390 = vmatpush2.msra.mxu0 0.0
        %1391 = vmatprep.subr.mxu0 0.0
        %1392 = vmatpush2.msra.mxu0 0.0
        %1393 = vmatprep.subr.mxu0 0.0
        %1394 = vmatpush2.msra.mxu0 0.0
        %1395 = vmatprep.subr.mxu0 0.0
        %1396 = vmatpush2.msra.mxu0 0.0
        %1397 = vmatprep.mubr.f32.mxu0 0.0
        %1398 = vmatmul.mubr.f32.gmra.mxu0 %v1316
        %v1399 = vpop.f32.mrf.mxu0
        %v1400 = vadd.f32 %v1313, %v1399
        %v1401 = vpop.f32.mrf.mxu0
        %1402 = vmatprep.mubr.f32.mxu0 0.0
        %1403 = vmatmul.mubr.f32.gmra.mxu0 %v1319
        %v1404 = vpop.f32.mrf.mxu0
        %v1405 = vadd.f32 %v1313, %v1404
        %v1406 = vpop.f32.mrf.mxu0
        %1407 = vmatprep.mubr.f32.mxu0 0.0
        %1408 = vmatmul.mubr.f32.gmra.mxu0 %v1322
        %v1409 = vpop.f32.mrf.mxu0
        %v1410 = vadd.f32 %v1313, %v1409
        %v1411 = vpop.f32.mrf.mxu0
        %1412 = vmatprep.mubr.f32.mxu0 0.0
        %1413 = vmatmul.mubr.f32.gmra.mxu0 %v1325
        %v1414 = vpop.f32.mrf.mxu0
        %v1415 = vadd.f32 %v1313, %v1414
        %v1416 = vpop.f32.mrf.mxu0
        %1417 = vmatprep.mubr.f32.mxu0 0.0
        %1418 = vmatmul.mubr.f32.gmra.mxu0 %v1328
        %v1419 = vpop.f32.mrf.mxu0
        %v1420 = vadd.f32 %v1313, %v1419
        %v1421 = vpop.f32.mrf.mxu0
        %1422 = vmatprep.mubr.f32.mxu0 0.0
        %1423 = vmatmul.mubr.f32.gmra.mxu0 %v1331
        %v1424 = vpop.f32.mrf.mxu0
        %v1425 = vadd.f32 %v1313, %v1424
        %v1426 = vpop.f32.mrf.mxu0
        %1427 = vdwg.mxu0
        %v1428 = vmax.f32 %v1400, 0.0
        %v1429 = vmax.f32 %v1405, 0.0
        %v1430 = vmax.f32 %v1410, 0.0
        %v1431 = vmax.f32 %v1415, 0.0
        %v1432 = vmax.f32 %v1420, 0.0
        %v1433 = vmax.f32 %v1425, 0.0
        %v1434 = vadd.f32 %v1428, %v1276
        %v1435 = vadd.f32 %v1429, %v1281
        %v1436 = vadd.f32 %v1430, %v1286
        %v1437 = vadd.f32 %v1431, %v1291
        %v1438 = vadd.f32 %v1432, %v1296
        %v1439 = vadd.f32 %v1433, %v1301
        %v1440 = vadd.f32 %v1434, %v1435
        %v1441 = vadd.f32 %v1440, %v1436
        %v1442 = vadd.f32 %v1441, %v1437
        %v1443 = vadd.f32 %v1442, %v1438
        %v1444 = vadd.f32 %v1443, %v1439
        %v1445 = vld [vmem:[%s952] sm:$0xff]
        %s1446 = scalar_lea.vmem %s952, 8 [#allocation3]
        %v1447 = vld [vmem:[%s1446] sm:$0xff]
        %s1448 = scalar_lea.vmem %s952, 16 [#allocation3]
        %v1449 = vld [vmem:[%s1448] sm:$0xff]
        %s1450 = scalar_lea.vmem %s952, 24 [#allocation3]
        %v1451 = vld [vmem:[%s1450] sm:$0xff]
        %v1452 = vld [vmem:[%s15] sm:$0x3f]
        %v1453 = vld [vmem:[%s17] sm:$0x1]
        %v1455 = vlaneseq
        %v1456 = vshrl.u32 %v1455, 7
        %v1457 = vsub.s32 0, %v1456
        %v1458 = vrot.slane %v1453, %v1457
        %vm1460 = vcmask 48128
        %v1462 = vsel %vm1460, %v1445, 0
        %v1465 = vsel %vm1460, %v1447, 0
        %v1468 = vsel %vm1460, %v1449, 0
        %v1471 = vsel %vm1460, %v1451, 0
        %vm1473 = vcmask 1045504
        %v1475 = vsel %vm1473, %v1452, 0
        %1477 = vmatprep.subr.mxu0 0.0
        %1478 = vmatpush1.msra.mxu0 0.0
        %1479 = vmatprep.subr.mxu0 0.0
        %1480 = vmatpush1.msra.mxu0 0.0
        %1481 = vmatprep.subr.mxu0 0.0
        %1482 = vmatpush1.msra.mxu0 0.0
        %1483 = vmatprep.subr.mxu0 0.0
        %1484 = vmatpush1.msra.mxu0 0.0
        %1485 = vmatprep.subr.mxu0 0.0
        %1486 = vmatpush1.msra.mxu0 0.0
        %1487 = vmatprep.subr.mxu0 0.0
        %1488 = vmatpush1.msra.mxu0 0.0
        %1489 = vmatprep.subr.mxu0 0.0
        %1490 = vmatpush1.msra.mxu0 0.0
        %1491 = vmatprep.subr.mxu0 0.0
        %1492 = vmatpush1.msra.mxu0 0.0
        %1493 = vmatprep.subr.mxu0 0.0
        %1494 = vmatpush1.msra.mxu0 0.0
        %1495 = vmatprep.subr.mxu0 0.0
        %1496 = vmatpush1.msra.mxu0 0.0
        %1497 = vmatprep.subr.mxu0 0.0
        %1498 = vmatpush1.msra.mxu0 0.0
        %1499 = vmatprep.subr.mxu0 0.0
        %1500 = vmatpush1.msra.mxu0 0.0
        %1501 = vmatprep.subr.mxu0 0.0
        %1502 = vmatpush1.msra.mxu0 0.0
        %1503 = vmatprep.subr.mxu0 0.0
        %1504 = vmatpush1.msra.mxu0 0.0
        %1505 = vmatprep.subr.mxu0 0.0
        %1506 = vmatpush1.msra.mxu0 0.0
        %1507 = vmatprep.subr.mxu0 0.0
        %1508 = vmatpush1.msra.mxu0 %v1475
        %1509 = vmatprep.subr.mxu0 0.0
        %1510 = vmatpush2.msra.mxu0 0.0
        %1511 = vmatprep.subr.mxu0 0.0
        %1512 = vmatpush2.msra.mxu0 0.0
        %1513 = vmatprep.subr.mxu0 0.0
        %1514 = vmatpush2.msra.mxu0 0.0
        %1515 = vmatprep.subr.mxu0 0.0
        %1516 = vmatpush2.msra.mxu0 0.0
        %1517 = vmatprep.subr.mxu0 0.0
        %1518 = vmatpush2.msra.mxu0 0.0
        %1519 = vmatprep.subr.mxu0 0.0
        %1520 = vmatpush2.msra.mxu0 0.0
        %1521 = vmatprep.subr.mxu0 0.0
        %1522 = vmatpush2.msra.mxu0 0.0
        %1523 = vmatprep.subr.mxu0 0.0
        %1524 = vmatpush2.msra.mxu0 0.0
        %1525 = vmatprep.subr.mxu0 0.0
        %1526 = vmatpush2.msra.mxu0 0.0
        %1527 = vmatprep.subr.mxu0 0.0
        %1528 = vmatpush2.msra.mxu0 0.0
        %1529 = vmatprep.subr.mxu0 0.0
        %1530 = vmatpush2.msra.mxu0 0.0
        %1531 = vmatprep.subr.mxu0 0.0
        %1532 = vmatpush2.msra.mxu0 0.0
        %1533 = vmatprep.subr.mxu0 0.0
        %1534 = vmatpush2.msra.mxu0 0.0
        %1535 = vmatprep.subr.mxu0 0.0
        %1536 = vmatpush2.msra.mxu0 0.0
        %1537 = vmatprep.subr.mxu0 0.0
        %1538 = vmatpush2.msra.mxu0 0.0
        %1539 = vmatprep.subr.mxu0 0.0
        %1540 = vmatpush2.msra.mxu0 0.0
        %1541 = vmatprep.mubr.f32.mxu0 0.0
        %1542 = vmatmul.mubr.f32.gmra.mxu0 %v1462
        %v1543 = vpop.f32.mrf.mxu0
        %v1544 = vadd.f32 %v1458, %v1543
        %v1545 = vpop.f32.mrf.mxu0
        %1546 = vmatprep.mubr.f32.mxu0 0.0
        %1547 = vmatmul.mubr.f32.gmra.mxu0 %v1465
        %v1548 = vpop.f32.mrf.mxu0
        %v1549 = vadd.f32 %v1458, %v1548
        %v1550 = vpop.f32.mrf.mxu0
        %1551 = vmatprep.mubr.f32.mxu0 0.0
        %1552 = vmatmul.mubr.f32.gmra.mxu0 %v1468
        %v1553 = vpop.f32.mrf.mxu0
        %v1554 = vadd.f32 %v1458, %v1553
        %v1555 = vpop.f32.mrf.mxu0
        %1556 = vmatprep.mubr.f32.mxu0 0.0
        %1557 = vmatmul.mubr.f32.gmra.mxu0 %v1471
        %v1558 = vpop.f32.mrf.mxu0
        %v1559 = vadd.f32 %v1458, %v1558
        %v1560 = vpop.f32.mrf.mxu0
        %1561 = vdwg.mxu0
        %v1562 = vmax.f32 %v1544, 0.0
        %v1563 = vmax.f32 %v1549, 0.0
        %v1564 = vmax.f32 %v1554, 0.0
        %v1565 = vmax.f32 %v1559, 0.0
        %v1566 = vld [vmem:[%s19] sm:$0xff]
        %v1567 = vld [vmem:[%s19 + $0x8] sm:$0xff]
        %v1568 = vld [vmem:[%s19 + $0x10] sm:$0xff]
        %v1569 = vld [vmem:[%s19 + $0x18] sm:$0xff]
        %v1570 = vld [vmem:[%s21] sm:$0x1]
        %v1572 = vlaneseq
        %v1573 = vshrl.u32 %v1572, 7
        %v1574 = vsub.s32 0, %v1573
        %v1575 = vrot.slane %v1570, %v1574
        %v1578 = vsel %vm1190, %v1562, 0
        %v1581 = vsel %vm1190, %v1563, 0
        %v1584 = vsel %vm1190, %v1564, 0
        %v1587 = vsel %vm1190, %v1565, 0
        %1589 = vmatprep.subr.mxu0 0.0
        %1590 = vmatpush1.msra.mxu0 0.0
        %1591 = vmatprep.subr.mxu0 0.0
        %1592 = vmatpush1.msra.mxu0 0.0
        %1593 = vmatprep.subr.mxu0 0.0
        %1594 = vmatpush1.msra.mxu0 0.0
        %1595 = vmatprep.subr.mxu0 0.0
        %1596 = vmatpush1.msra.mxu0 0.0
        %1597 = vmatprep.subr.mxu0 0.0
        %1598 = vmatpush1.msra.mxu0 0.0
        %1599 = vmatprep.subr.mxu0 0.0
        %1600 = vmatpush1.msra.mxu0 0.0
        %1601 = vmatprep.subr.mxu0 0.0
        %1602 = vmatpush1.msra.mxu0 0.0
        %1603 = vmatprep.subr.mxu0 0.0
        %1604 = vmatpush1.msra.mxu0 0.0
        %1605 = vmatprep.subr.mxu0 0.0
        %1606 = vmatpush1.msra.mxu0 0.0
        %1607 = vmatprep.subr.mxu0 0.0
        %1608 = vmatpush1.msra.mxu0 0.0
        %1609 = vmatprep.subr.mxu0 0.0
        %1610 = vmatpush1.msra.mxu0 0.0
        %1611 = vmatprep.subr.mxu0 0.0
        %1612 = vmatpush1.msra.mxu0 0.0
        %1613 = vmatprep.subr.mxu0 0.0
        %1614 = vmatpush1.msra.mxu0 %v1569
        %1615 = vmatprep.subr.mxu0 0.0
        %1616 = vmatpush1.msra.mxu0 %v1568
        %1617 = vmatprep.subr.mxu0 0.0
        %1618 = vmatpush1.msra.mxu0 %v1567
        %1619 = vmatprep.subr.mxu0 0.0
        %1620 = vmatpush1.msra.mxu0 %v1566
        %1621 = vmatprep.subr.mxu0 0.0
        %1622 = vmatpush2.msra.mxu0 0.0
        %1623 = vmatprep.subr.mxu0 0.0
        %1624 = vmatpush2.msra.mxu0 0.0
        %1625 = vmatprep.subr.mxu0 0.0
        %1626 = vmatpush2.msra.mxu0 0.0
        %1627 = vmatprep.subr.mxu0 0.0
        %1628 = vmatpush2.msra.mxu0 0.0
        %1629 = vmatprep.subr.mxu0 0.0
        %1630 = vmatpush2.msra.mxu0 0.0
        %1631 = vmatprep.subr.mxu0 0.0
        %1632 = vmatpush2.msra.mxu0 0.0
        %1633 = vmatprep.subr.mxu0 0.0
        %1634 = vmatpush2.msra.mxu0 0.0
        %1635 = vmatprep.subr.mxu0 0.0
        %1636 = vmatpush2.msra.mxu0 0.0
        %1637 = vmatprep.subr.mxu0 0.0
        %1638 = vmatpush2.msra.mxu0 0.0
        %1639 = vmatprep.subr.mxu0 0.0
        %1640 = vmatpush2.msra.mxu0 0.0
        %1641 = vmatprep.subr.mxu0 0.0
        %1642 = vmatpush2.msra.mxu0 0.0
        %1643 = vmatprep.subr.mxu0 0.0
        %1644 = vmatpush2.msra.mxu0 0.0
        %1645 = vmatprep.subr.mxu0 0.0
        %1646 = vmatpush2.msra.mxu0 0.0
        %1647 = vmatprep.subr.mxu0 0.0
        %1648 = vmatpush2.msra.mxu0 0.0
        %1649 = vmatprep.subr.mxu0 0.0
        %1650 = vmatpush2.msra.mxu0 0.0
        %1651 = vmatprep.subr.mxu0 0.0
        %1652 = vmatpush2.msra.mxu0 0.0
        %1653 = vmatprep.mubr.f32.mxu0 0.0
        %1654 = vmatmul.mubr.f32.gmra.mxu0 %v1578
        %v1655 = vpop.f32.mrf.mxu0
        %v1656 = vadd.f32 %v1575, %v1655
        %v1657 = vpop.f32.mrf.mxu0
        %1658 = vmatprep.mubr.f32.mxu0 0.0
        %1659 = vmatmul.mubr.f32.gmra.mxu0 %v1581
        %v1660 = vpop.f32.mrf.mxu0
        %v1661 = vadd.f32 %v1575, %v1660
        %v1662 = vpop.f32.mrf.mxu0
        %1663 = vmatprep.mubr.f32.mxu0 0.0
        %1664 = vmatmul.mubr.f32.gmra.mxu0 %v1584
        %v1665 = vpop.f32.mrf.mxu0
        %v1666 = vadd.f32 %v1575, %v1665
        %v1667 = vpop.f32.mrf.mxu0
        %1668 = vmatprep.mubr.f32.mxu0 0.0
        %1669 = vmatmul.mubr.f32.gmra.mxu0 %v1587
        %v1670 = vpop.f32.mrf.mxu0
        %v1671 = vadd.f32 %v1575, %v1670
        %v1672 = vpop.f32.mrf.mxu0
        %1673 = vdwg.mxu0
        %v1675 = vsel %vm1190, %v1656, 0
        %v1678 = vsel %vm1190, %v1661, 0
        %v1681 = vsel %vm1190, %v1666, 0
        %v1684 = vsel %vm1190, %v1671, 0
        %1686 = vmatprep.subr.mxu0 0.0
        %1687 = vmatpush1.msra.mxu0 0.0
        %1688 = vmatprep.subr.mxu0 0.0
        %1689 = vmatpush1.msra.mxu0 0.0
        %1690 = vmatprep.subr.mxu0 0.0
        %1691 = vmatpush1.msra.mxu0 0.0
        %1692 = vmatprep.subr.mxu0 0.0
        %1693 = vmatpush1.msra.mxu0 0.0
        %1694 = vmatprep.subr.mxu0 0.0
        %1695 = vmatpush1.msra.mxu0 0.0
        %1696 = vmatprep.subr.mxu0 0.0
        %1697 = vmatpush1.msra.mxu0 0.0
        %1698 = vmatprep.subr.mxu0 0.0
        %1699 = vmatpush1.msra.mxu0 0.0
        %1700 = vmatprep.subr.mxu0 0.0
        %1701 = vmatpush1.msra.mxu0 0.0
        %1702 = vmatprep.subr.mxu0 0.0
        %1703 = vmatpush1.msra.mxu0 0.0
        %1704 = vmatprep.subr.mxu0 0.0
        %1705 = vmatpush1.msra.mxu0 0.0
        %1706 = vmatprep.subr.mxu0 0.0
        %1707 = vmatpush1.msra.mxu0 0.0
        %1708 = vmatprep.subr.mxu0 0.0
        %1709 = vmatpush1.msra.mxu0 0.0
        %1710 = vmatprep.subr.mxu0 0.0
        %1711 = vmatpush1.msra.mxu0 %v1307
        %1712 = vmatprep.subr.mxu0 0.0
        %1713 = vmatpush1.msra.mxu0 %v1306
        %1714 = vmatprep.subr.mxu0 0.0
        %1715 = vmatpush1.msra.mxu0 %v1305
        %1716 = vmatprep.subr.mxu0 0.0
        %1717 = vmatpush1.msra.mxu0 %v1304
        %1718 = vmatprep.subr.mxu0 0.0
        %1719 = vmatpush2.msra.mxu0 0.0
        %1720 = vmatprep.subr.mxu0 0.0
        %1721 = vmatpush2.msra.mxu0 0.0
        %1722 = vmatprep.subr.mxu0 0.0
        %1723 = vmatpush2.msra.mxu0 0.0
        %1724 = vmatprep.subr.mxu0 0.0
        %1725 = vmatpush2.msra.mxu0 0.0
        %1726 = vmatprep.subr.mxu0 0.0
        %1727 = vmatpush2.msra.mxu0 0.0
        %1728 = vmatprep.subr.mxu0 0.0
        %1729 = vmatpush2.msra.mxu0 0.0
        %1730 = vmatprep.subr.mxu0 0.0
        %1731 = vmatpush2.msra.mxu0 0.0
        %1732 = vmatprep.subr.mxu0 0.0
        %1733 = vmatpush2.msra.mxu0 0.0
        %1734 = vmatprep.subr.mxu0 0.0
        %1735 = vmatpush2.msra.mxu0 0.0
        %1736 = vmatprep.subr.mxu0 0.0
        %1737 = vmatpush2.msra.mxu0 0.0
        %1738 = vmatprep.subr.mxu0 0.0
        %1739 = vmatpush2.msra.mxu0 0.0
        %1740 = vmatprep.subr.mxu0 0.0
        %1741 = vmatpush2.msra.mxu0 0.0
        %1742 = vmatprep.subr.mxu0 0.0
        %1743 = vmatpush2.msra.mxu0 0.0
        %1744 = vmatprep.subr.mxu0 0.0
        %1745 = vmatpush2.msra.mxu0 0.0
        %1746 = vmatprep.subr.mxu0 0.0
        %1747 = vmatpush2.msra.mxu0 0.0
        %1748 = vmatprep.subr.mxu0 0.0
        %1749 = vmatpush2.msra.mxu0 0.0
        %1750 = vmatprep.mubr.f32.mxu0 0.0
        %1751 = vmatmul.mubr.f32.gmra.mxu0 %v1675
        %v1752 = vpop.f32.mrf.mxu0
        %v1753 = vadd.f32 %v1313, %v1752
        %v1754 = vpop.f32.mrf.mxu0
        %1755 = vmatprep.mubr.f32.mxu0 0.0
        %1756 = vmatmul.mubr.f32.gmra.mxu0 %v1678
        %v1757 = vpop.f32.mrf.mxu0
        %v1758 = vadd.f32 %v1313, %v1757
        %v1759 = vpop.f32.mrf.mxu0
        %1760 = vmatprep.mubr.f32.mxu0 0.0
        %1761 = vmatmul.mubr.f32.gmra.mxu0 %v1681
        %v1762 = vpop.f32.mrf.mxu0
        %v1763 = vadd.f32 %v1313, %v1762
        %v1764 = vpop.f32.mrf.mxu0
        %1765 = vmatprep.mubr.f32.mxu0 0.0
        %1766 = vmatmul.mubr.f32.gmra.mxu0 %v1684
        %v1767 = vpop.f32.mrf.mxu0
        %v1768 = vadd.f32 %v1313, %v1767
        %v1769 = vpop.f32.mrf.mxu0
        %1770 = vdwg.mxu0
        %v1771 = vmax.f32 %v1753, 0.0
        %v1772 = vmax.f32 %v1758, 0.0
        %v1773 = vmax.f32 %v1763, 0.0
        %v1774 = vmax.f32 %v1768, 0.0
        %v1775 = vadd.f32 %v1771, %v1656
        %v1776 = vadd.f32 %v1772, %v1661
        %v1777 = vadd.f32 %v1773, %v1666
        %v1778 = vadd.f32 %v1774, %v1671
        %v1779 = vadd.f32 %v1444, %v1775
        %v1780 = vadd.f32 %v1779, %v1776
        %v1781 = vadd.f32 %v1780, %v1777
        %v1782 = vadd.f32 %v1781, %v1778
        %v1783 = vld [vmem:[%s1035] sm:$0xff]
        %v1784 = vmul.f32 %v1783, %v1783
        %vm1785 = vcmask 15360
        %v1786 = vsel %vm1785, %v1784, 0.0
        %1787 = vadd.xlane.f32.xlu0 %v1786
        %v1788 = vpop.xlane.xlu0 %1787
        %v1789 = vrsqrt.pop %v1788
        %v1790 = vmul.f32 %v1783, %v1789
        %v1791 = vld [vmem:[%s23] sm:$0xff]
        %v1792 = vld [vmem:[%s25] sm:$0x1]
        %v1794 = vlaneseq
        %v1795 = vshrl.u32 %v1794, 7
        %v1796 = vsub.s32 0, %v1795
        %v1797 = vrot.slane %v1792, %v1796
        %v1800 = vsel %vm1059, %v1790, 0
        %1802 = vmatprep.subr.mxu0 0.0
        %1803 = vmatpush1.msra.mxu0 0.0
        %1804 = vmatprep.subr.mxu0 0.0
        %1805 = vmatpush1.msra.mxu0 0.0
        %1806 = vmatprep.subr.mxu0 0.0
        %1807 = vmatpush1.msra.mxu0 0.0
        %1808 = vmatprep.subr.mxu0 0.0
        %1809 = vmatpush1.msra.mxu0 0.0
        %1810 = vmatprep.subr.mxu0 0.0
        %1811 = vmatpush1.msra.mxu0 0.0
        %1812 = vmatprep.subr.mxu0 0.0
        %1813 = vmatpush1.msra.mxu0 0.0
        %1814 = vmatprep.subr.mxu0 0.0
        %1815 = vmatpush1.msra.mxu0 0.0
        %1816 = vmatprep.subr.mxu0 0.0
        %1817 = vmatpush1.msra.mxu0 0.0
        %1818 = vmatprep.subr.mxu0 0.0
        %1819 = vmatpush1.msra.mxu0 0.0
        %1820 = vmatprep.subr.mxu0 0.0
        %1821 = vmatpush1.msra.mxu0 0.0
        %1822 = vmatprep.subr.mxu0 0.0
        %1823 = vmatpush1.msra.mxu0 0.0
        %1824 = vmatprep.subr.mxu0 0.0
        %1825 = vmatpush1.msra.mxu0 0.0
        %1826 = vmatprep.subr.mxu0 0.0
        %1827 = vmatpush1.msra.mxu0 0.0
        %1828 = vmatprep.subr.mxu0 0.0
        %1829 = vmatpush1.msra.mxu0 0.0
        %1830 = vmatprep.subr.mxu0 0.0
        %1831 = vmatpush1.msra.mxu0 0.0
        %1832 = vmatprep.subr.mxu0 0.0
        %1833 = vmatpush1.msra.mxu0 %v1791
        %1834 = vmatprep.subr.mxu0 0.0
        %1835 = vmatpush2.msra.mxu0 0.0
        %1836 = vmatprep.subr.mxu0 0.0
        %1837 = vmatpush2.msra.mxu0 0.0
        %1838 = vmatprep.subr.mxu0 0.0
        %1839 = vmatpush2.msra.mxu0 0.0
        %1840 = vmatprep.subr.mxu0 0.0
        %1841 = vmatpush2.msra.mxu0 0.0
        %1842 = vmatprep.subr.mxu0 0.0
        %1843 = vmatpush2.msra.mxu0 0.0
        %1844 = vmatprep.subr.mxu0 0.0
        %1845 = vmatpush2.msra.mxu0 0.0
        %1846 = vmatprep.subr.mxu0 0.0
        %1847 = vmatpush2.msra.mxu0 0.0
        %1848 = vmatprep.subr.mxu0 0.0
        %1849 = vmatpush2.msra.mxu0 0.0
        %1850 = vmatprep.subr.mxu0 0.0
        %1851 = vmatpush2.msra.mxu0 0.0
        %1852 = vmatprep.subr.mxu0 0.0
        %1853 = vmatpush2.msra.mxu0 0.0
        %1854 = vmatprep.subr.mxu0 0.0
        %1855 = vmatpush2.msra.mxu0 0.0
        %1856 = vmatprep.subr.mxu0 0.0
        %1857 = vmatpush2.msra.mxu0 0.0
        %1858 = vmatprep.subr.mxu0 0.0
        %1859 = vmatpush2.msra.mxu0 0.0
        %1860 = vmatprep.subr.mxu0 0.0
        %1861 = vmatpush2.msra.mxu0 0.0
        %1862 = vmatprep.subr.mxu0 0.0
        %1863 = vmatpush2.msra.mxu0 0.0
        %1864 = vmatprep.subr.mxu0 0.0
        %1865 = vmatpush2.msra.mxu0 0.0
        %1866 = vmatprep.mubr.f32.mxu0 0.0
        %1867 = vmatmul.mubr.f32.gmra.mxu0 %v1800
        %v1868 = vpop.f32.mrf.mxu0
        %v1869 = vadd.f32 %v1797, %v1868
        %v1870 = vpop.f32.mrf.mxu0
        %1871 = vdwg.mxu0
        %v1872 = vmax.f32 %v1869, 0.0
        %v1873 = vld [vmem:[%s27] sm:$0xff]
        %v1874 = vld [vmem:[%s27 + $0x8] sm:$0xff]
        %v1875 = vld [vmem:[%s29] sm:$0x1]
        %v1877 = vlaneseq
        %v1878 = vshrl.u32 %v1877, 7
        %v1879 = vsub.s32 0, %v1878
        %v1880 = vrot.slane %v1875, %v1879
        %vm1882 = vcmask 130048
        %v1884 = vsel %vm1882, %v1872, 0
        %1886 = vmatprep.subr.mxu0 0.0
        %1887 = vmatpush1.msra.mxu0 0.0
        %1888 = vmatprep.subr.mxu0 0.0
        %1889 = vmatpush1.msra.mxu0 0.0
        %1890 = vmatprep.subr.mxu0 0.0
        %1891 = vmatpush1.msra.mxu0 0.0
        %1892 = vmatprep.subr.mxu0 0.0
        %1893 = vmatpush1.msra.mxu0 0.0
        %1894 = vmatprep.subr.mxu0 0.0
        %1895 = vmatpush1.msra.mxu0 0.0
        %1896 = vmatprep.subr.mxu0 0.0
        %1897 = vmatpush1.msra.mxu0 0.0
        %1898 = vmatprep.subr.mxu0 0.0
        %1899 = vmatpush1.msra.mxu0 0.0
        %1900 = vmatprep.subr.mxu0 0.0
        %1901 = vmatpush1.msra.mxu0 0.0
        %1902 = vmatprep.subr.mxu0 0.0
        %1903 = vmatpush1.msra.mxu0 0.0
        %1904 = vmatprep.subr.mxu0 0.0
        %1905 = vmatpush1.msra.mxu0 0.0
        %1906 = vmatprep.subr.mxu0 0.0
        %1907 = vmatpush1.msra.mxu0 0.0
        %1908 = vmatprep.subr.mxu0 0.0
        %1909 = vmatpush1.msra.mxu0 0.0
        %1910 = vmatprep.subr.mxu0 0.0
        %1911 = vmatpush1.msra.mxu0 0.0
        %1912 = vmatprep.subr.mxu0 0.0
        %1913 = vmatpush1.msra.mxu0 0.0
        %1914 = vmatprep.subr.mxu0 0.0
        %1915 = vmatpush1.msra.mxu0 %v1874
        %1916 = vmatprep.subr.mxu0 0.0
        %1917 = vmatpush1.msra.mxu0 %v1873
        %1918 = vmatprep.subr.mxu0 0.0
        %1919 = vmatpush2.msra.mxu0 0.0
        %1920 = vmatprep.subr.mxu0 0.0
        %1921 = vmatpush2.msra.mxu0 0.0
        %1922 = vmatprep.subr.mxu0 0.0
        %1923 = vmatpush2.msra.mxu0 0.0
        %1924 = vmatprep.subr.mxu0 0.0
        %1925 = vmatpush2.msra.mxu0 0.0
        %1926 = vmatprep.subr.mxu0 0.0
        %1927 = vmatpush2.msra.mxu0 0.0
        %1928 = vmatprep.subr.mxu0 0.0
        %1929 = vmatpush2.msra.mxu0 0.0
        %1930 = vmatprep.subr.mxu0 0.0
        %1931 = vmatpush2.msra.mxu0 0.0
        %1932 = vmatprep.subr.mxu0 0.0
        %1933 = vmatpush2.msra.mxu0 0.0
        %1934 = vmatprep.subr.mxu0 0.0
        %1935 = vmatpush2.msra.mxu0 0.0
        %1936 = vmatprep.subr.mxu0 0.0
        %1937 = vmatpush2.msra.mxu0 0.0
        %1938 = vmatprep.subr.mxu0 0.0
        %1939 = vmatpush2.msra.mxu0 0.0
        %1940 = vmatprep.subr.mxu0 0.0
        %1941 = vmatpush2.msra.mxu0 0.0
        %1942 = vmatprep.subr.mxu0 0.0
        %1943 = vmatpush2.msra.mxu0 0.0
        %1944 = vmatprep.subr.mxu0 0.0
        %1945 = vmatpush2.msra.mxu0 0.0
        %1946 = vmatprep.subr.mxu0 0.0
        %1947 = vmatpush2.msra.mxu0 0.0
        %1948 = vmatprep.subr.mxu0 0.0
        %1949 = vmatpush2.msra.mxu0 0.0
        %1950 = vmatprep.mubr.f32.mxu0 0.0
        %1951 = vmatmul.mubr.f32.gmra.mxu0 %v1884
        %v1952 = vpop.f32.mrf.mxu0
        %v1953 = vadd.f32 %v1880, %v1952
        %v1954 = vpop.f32.mrf.mxu0
        %1955 = vdwg.mxu0
        %v1956 = vld [vmem:[%s31] sm:$0xff]
        %v1957 = vld [vmem:[%s33] sm:$0x1]
        %v1959 = vlaneseq
        %v1960 = vshrl.u32 %v1959, 7
        %v1961 = vsub.s32 0, %v1960
        %v1962 = vrot.slane %v1957, %v1961
        %v1965 = vsel %vm1059, %v1783, 0
        %1967 = vmatprep.subr.mxu0 0.0
        %1968 = vmatpush1.msra.mxu0 0.0
        %1969 = vmatprep.subr.mxu0 0.0
        %1970 = vmatpush1.msra.mxu0 0.0
        %1971 = vmatprep.subr.mxu0 0.0
        %1972 = vmatpush1.msra.mxu0 0.0
        %1973 = vmatprep.subr.mxu0 0.0
        %1974 = vmatpush1.msra.mxu0 0.0
        %1975 = vmatprep.subr.mxu0 0.0
        %1976 = vmatpush1.msra.mxu0 0.0
        %1977 = vmatprep.subr.mxu0 0.0
        %1978 = vmatpush1.msra.mxu0 0.0
        %1979 = vmatprep.subr.mxu0 0.0
        %1980 = vmatpush1.msra.mxu0 0.0
        %1981 = vmatprep.subr.mxu0 0.0
        %1982 = vmatpush1.msra.mxu0 0.0
        %1983 = vmatprep.subr.mxu0 0.0
        %1984 = vmatpush1.msra.mxu0 0.0
        %1985 = vmatprep.subr.mxu0 0.0
        %1986 = vmatpush1.msra.mxu0 0.0
        %1987 = vmatprep.subr.mxu0 0.0
        %1988 = vmatpush1.msra.mxu0 0.0
        %1989 = vmatprep.subr.mxu0 0.0
        %1990 = vmatpush1.msra.mxu0 0.0
        %1991 = vmatprep.subr.mxu0 0.0
        %1992 = vmatpush1.msra.mxu0 0.0
        %1993 = vmatprep.subr.mxu0 0.0
        %1994 = vmatpush1.msra.mxu0 0.0
        %1995 = vmatprep.subr.mxu0 0.0
        %1996 = vmatpush1.msra.mxu0 0.0
        %1997 = vmatprep.subr.mxu0 0.0
        %1998 = vmatpush1.msra.mxu0 %v1956
        %1999 = vmatprep.subr.mxu0 0.0
        %2000 = vmatpush2.msra.mxu0 0.0
        %2001 = vmatprep.subr.mxu0 0.0
        %2002 = vmatpush2.msra.mxu0 0.0
        %2003 = vmatprep.subr.mxu0 0.0
        %2004 = vmatpush2.msra.mxu0 0.0
        %2005 = vmatprep.subr.mxu0 0.0
        %2006 = vmatpush2.msra.mxu0 0.0
        %2007 = vmatprep.subr.mxu0 0.0
        %2008 = vmatpush2.msra.mxu0 0.0
        %2009 = vmatprep.subr.mxu0 0.0
        %2010 = vmatpush2.msra.mxu0 0.0
        %2011 = vmatprep.subr.mxu0 0.0
        %2012 = vmatpush2.msra.mxu0 0.0
        %2013 = vmatprep.subr.mxu0 0.0
        %2014 = vmatpush2.msra.mxu0 0.0
        %2015 = vmatprep.subr.mxu0 0.0
        %2016 = vmatpush2.msra.mxu0 0.0
        %2017 = vmatprep.subr.mxu0 0.0
        %2018 = vmatpush2.msra.mxu0 0.0
        %2019 = vmatprep.subr.mxu0 0.0
        %2020 = vmatpush2.msra.mxu0 0.0
        %2021 = vmatprep.subr.mxu0 0.0
        %2022 = vmatpush2.msra.mxu0 0.0
        %2023 = vmatprep.subr.mxu0 0.0
        %2024 = vmatpush2.msra.mxu0 0.0
        %2025 = vmatprep.subr.mxu0 0.0
        %2026 = vmatpush2.msra.mxu0 0.0
        %2027 = vmatprep.subr.mxu0 0.0
        %2028 = vmatpush2.msra.mxu0 0.0
        %2029 = vmatprep.subr.mxu0 0.0
        %2030 = vmatpush2.msra.mxu0 0.0
        %2031 = vmatprep.mubr.f32.mxu0 0.0
        %2032 = vmatmul.mubr.f32.gmra.mxu0 %v1965
        %v2033 = vpop.f32.mrf.mxu0
        %v2034 = vadd.f32 %v1962, %v2033
        %v2035 = vpop.f32.mrf.mxu0
        %2036 = vdwg.mxu0
        %v2037 = vmax.f32 %v2034, 0.0
        %v2038 = vld [vmem:[%s35] sm:$0xff]
        %v2039 = vld [vmem:[%s35 + $0x8] sm:$0xff]
        %v2040 = vld [vmem:[%s37] sm:$0x1]
        %v2042 = vlaneseq
        %v2043 = vshrl.u32 %v2042, 7
        %v2044 = vsub.s32 0, %v2043
        %v2045 = vrot.slane %v2040, %v2044
        %v2048 = vsel %vm1882, %v2037, 0
        %2050 = vmatprep.subr.mxu0 0.0
        %2051 = vmatpush1.msra.mxu0 0.0
        %2052 = vmatprep.subr.mxu0 0.0
        %2053 = vmatpush1.msra.mxu0 0.0
        %2054 = vmatprep.subr.mxu0 0.0
        %2055 = vmatpush1.msra.mxu0 0.0
        %2056 = vmatprep.subr.mxu0 0.0
        %2057 = vmatpush1.msra.mxu0 0.0
        %2058 = vmatprep.subr.mxu0 0.0
        %2059 = vmatpush1.msra.mxu0 0.0
        %2060 = vmatprep.subr.mxu0 0.0
        %2061 = vmatpush1.msra.mxu0 0.0
        %2062 = vmatprep.subr.mxu0 0.0
        %2063 = vmatpush1.msra.mxu0 0.0
        %2064 = vmatprep.subr.mxu0 0.0
        %2065 = vmatpush1.msra.mxu0 0.0
        %2066 = vmatprep.subr.mxu0 0.0
        %2067 = vmatpush1.msra.mxu0 0.0
        %2068 = vmatprep.subr.mxu0 0.0
        %2069 = vmatpush1.msra.mxu0 0.0
        %2070 = vmatprep.subr.mxu0 0.0
        %2071 = vmatpush1.msra.mxu0 0.0
        %2072 = vmatprep.subr.mxu0 0.0
        %2073 = vmatpush1.msra.mxu0 0.0
        %2074 = vmatprep.subr.mxu0 0.0
        %2075 = vmatpush1.msra.mxu0 0.0
        %2076 = vmatprep.subr.mxu0 0.0
        %2077 = vmatpush1.msra.mxu0 0.0
        %2078 = vmatprep.subr.mxu0 0.0
        %2079 = vmatpush1.msra.mxu0 %v2039
        %2080 = vmatprep.subr.mxu0 0.0
        %2081 = vmatpush1.msra.mxu0 %v2038
        %2082 = vmatprep.subr.mxu0 0.0
        %2083 = vmatpush2.msra.mxu0 0.0
        %2084 = vmatprep.subr.mxu0 0.0
        %2085 = vmatpush2.msra.mxu0 0.0
        %2086 = vmatprep.subr.mxu0 0.0
        %2087 = vmatpush2.msra.mxu0 0.0
        %2088 = vmatprep.subr.mxu0 0.0
        %2089 = vmatpush2.msra.mxu0 0.0
        %2090 = vmatprep.subr.mxu0 0.0
        %2091 = vmatpush2.msra.mxu0 0.0
        %2092 = vmatprep.subr.mxu0 0.0
        %2093 = vmatpush2.msra.mxu0 0.0
        %2094 = vmatprep.subr.mxu0 0.0
        %2095 = vmatpush2.msra.mxu0 0.0
        %2096 = vmatprep.subr.mxu0 0.0
        %2097 = vmatpush2.msra.mxu0 0.0
        %2098 = vmatprep.subr.mxu0 0.0
        %2099 = vmatpush2.msra.mxu0 0.0
        %2100 = vmatprep.subr.mxu0 0.0
        %2101 = vmatpush2.msra.mxu0 0.0
        %2102 = vmatprep.subr.mxu0 0.0
        %2103 = vmatpush2.msra.mxu0 0.0
        %2104 = vmatprep.subr.mxu0 0.0
        %2105 = vmatpush2.msra.mxu0 0.0
        %2106 = vmatprep.subr.mxu0 0.0
        %2107 = vmatpush2.msra.mxu0 0.0
        %2108 = vmatprep.subr.mxu0 0.0
        %2109 = vmatpush2.msra.mxu0 0.0
        %2110 = vmatprep.subr.mxu0 0.0
        %2111 = vmatpush2.msra.mxu0 0.0
        %2112 = vmatprep.subr.mxu0 0.0
        %2113 = vmatpush2.msra.mxu0 0.0
        %2114 = vmatprep.mubr.f32.mxu0 0.0
        %2115 = vmatmul.mubr.f32.gmra.mxu0 %v2048
        %v2116 = vpop.f32.mrf.mxu0
        %v2117 = vadd.f32 %v2045, %v2116
        %v2118 = vpop.f32.mrf.mxu0
        %2119 = vdwg.mxu0
        %v2120 = vld [vmem:[%s43] sm:$0xff]
        %v2121 = vld [vmem:[%s43 + $0x8] sm:$0xff]
        %v2122 = vld [vmem:[%s43 + $0x10] sm:$0xff]
        %v2123 = vld [vmem:[%s43 + $0x18] sm:$0xff]
        %v2125 = vsel %vm1882, %v2117, 0
        %2127 = vmatprep.subr.mxu0 0.0
        %2128 = vmatpush1.msra.mxu0 0.0
        %2129 = vmatprep.subr.mxu0 0.0
        %2130 = vmatpush1.msra.mxu0 0.0
        %2131 = vmatprep.subr.mxu0 0.0
        %2132 = vmatpush1.msra.mxu0 0.0
        %2133 = vmatprep.subr.mxu0 0.0
        %2134 = vmatpush1.msra.mxu0 0.0
        %2135 = vmatprep.subr.mxu0 0.0
        %2136 = vmatpush1.msra.mxu0 0.0
        %2137 = vmatprep.subr.mxu0 0.0
        %2138 = vmatpush1.msra.mxu0 0.0
        %2139 = vmatprep.subr.mxu0 0.0
        %2140 = vmatpush1.msra.mxu0 0.0
        %2141 = vmatprep.subr.mxu0 0.0
        %2142 = vmatpush1.msra.mxu0 0.0
        %2143 = vmatprep.subr.mxu0 0.0
        %2144 = vmatpush1.msra.mxu0 0.0
        %2145 = vmatprep.subr.mxu0 0.0
        %2146 = vmatpush1.msra.mxu0 0.0
        %2147 = vmatprep.subr.mxu0 0.0
        %2148 = vmatpush1.msra.mxu0 0.0
        %2149 = vmatprep.subr.mxu0 0.0
        %2150 = vmatpush1.msra.mxu0 0.0
        %2151 = vmatprep.subr.mxu0 0.0
        %2152 = vmatpush1.msra.mxu0 0.0
        %2153 = vmatprep.subr.mxu0 0.0
        %2154 = vmatpush1.msra.mxu0 0.0
        %2155 = vmatprep.subr.mxu0 0.0
        %2156 = vmatpush1.msra.mxu0 %v2123
        %2157 = vmatprep.subr.mxu0 0.0
        %2158 = vmatpush1.msra.mxu0 %v2122
        %2159 = vmatprep.subr.mxu0 0.0
        %2160 = vmatpush2.msra.mxu0 0.0
        %2161 = vmatprep.subr.mxu0 0.0
        %2162 = vmatpush2.msra.mxu0 0.0
        %2163 = vmatprep.subr.mxu0 0.0
        %2164 = vmatpush2.msra.mxu0 0.0
        %2165 = vmatprep.subr.mxu0 0.0
        %2166 = vmatpush2.msra.mxu0 0.0
        %2167 = vmatprep.subr.mxu0 0.0
        %2168 = vmatpush2.msra.mxu0 0.0
        %2169 = vmatprep.subr.mxu0 0.0
        %2170 = vmatpush2.msra.mxu0 0.0
        %2171 = vmatprep.subr.mxu0 0.0
        %2172 = vmatpush2.msra.mxu0 0.0
        %2173 = vmatprep.subr.mxu0 0.0
        %2174 = vmatpush2.msra.mxu0 0.0
        %2175 = vmatprep.subr.mxu0 0.0
        %2176 = vmatpush2.msra.mxu0 0.0
        %2177 = vmatprep.subr.mxu0 0.0
        %2178 = vmatpush2.msra.mxu0 0.0
        %2179 = vmatprep.subr.mxu0 0.0
        %2180 = vmatpush2.msra.mxu0 0.0
        %2181 = vmatprep.subr.mxu0 0.0
        %2182 = vmatpush2.msra.mxu0 0.0
        %2183 = vmatprep.subr.mxu0 0.0
        %2184 = vmatpush2.msra.mxu0 0.0
        %2185 = vmatprep.subr.mxu0 0.0
        %2186 = vmatpush2.msra.mxu0 0.0
        %2187 = vmatprep.subr.mxu0 0.0
        %2188 = vmatpush2.msra.mxu0 0.0
        %2189 = vmatprep.subr.mxu0 0.0
        %2190 = vmatpush2.msra.mxu0 0.0
        %2191 = vmatprep.mubr.f32.mxu0 0.0
        %2192 = vmatmul.mubr.f32.gmra.mxu0 %v2125
        %v2193 = vpop.f32.mrf.mxu0
        %v2194 = vadd.f32 0.0, %v2193
        %v2195 = vpop.f32.mrf.mxu0
        %2196 = vdwg.mxu0
        %v2198 = vsel %vm1882, %v1953, 0
        %2200 = vmatprep.subr.mxu0 0.0
        %2201 = vmatpush1.msra.mxu0 0.0
        %2202 = vmatprep.subr.mxu0 0.0
        %2203 = vmatpush1.msra.mxu0 0.0
        %2204 = vmatprep.subr.mxu0 0.0
        %2205 = vmatpush1.msra.mxu0 0.0
        %2206 = vmatprep.subr.mxu0 0.0
        %2207 = vmatpush1.msra.mxu0 0.0
        %2208 = vmatprep.subr.mxu0 0.0
        %2209 = vmatpush1.msra.mxu0 0.0
        %2210 = vmatprep.subr.mxu0 0.0
        %2211 = vmatpush1.msra.mxu0 0.0
        %2212 = vmatprep.subr.mxu0 0.0
        %2213 = vmatpush1.msra.mxu0 0.0
        %2214 = vmatprep.subr.mxu0 0.0
        %2215 = vmatpush1.msra.mxu0 0.0
        %2216 = vmatprep.subr.mxu0 0.0
        %2217 = vmatpush1.msra.mxu0 0.0
        %2218 = vmatprep.subr.mxu0 0.0
        %2219 = vmatpush1.msra.mxu0 0.0
        %2220 = vmatprep.subr.mxu0 0.0
        %2221 = vmatpush1.msra.mxu0 0.0
        %2222 = vmatprep.subr.mxu0 0.0
        %2223 = vmatpush1.msra.mxu0 0.0
        %2224 = vmatprep.subr.mxu0 0.0
        %2225 = vmatpush1.msra.mxu0 0.0
        %2226 = vmatprep.subr.mxu0 0.0
        %2227 = vmatpush1.msra.mxu0 0.0
        %2228 = vmatprep.subr.mxu0 0.0
        %2229 = vmatpush1.msra.mxu0 %v2121
        %2230 = vmatprep.subr.mxu0 0.0
        %2231 = vmatpush1.msra.mxu0 %v2120
        %2232 = vmatprep.subr.mxu0 0.0
        %2233 = vmatpush2.msra.mxu0 0.0
        %2234 = vmatprep.subr.mxu0 0.0
        %2235 = vmatpush2.msra.mxu0 0.0
        %2236 = vmatprep.subr.mxu0 0.0
        %2237 = vmatpush2.msra.mxu0 0.0
        %2238 = vmatprep.subr.mxu0 0.0
        %2239 = vmatpush2.msra.mxu0 0.0
        %2240 = vmatprep.subr.mxu0 0.0
        %2241 = vmatpush2.msra.mxu0 0.0
        %2242 = vmatprep.subr.mxu0 0.0
        %2243 = vmatpush2.msra.mxu0 0.0
        %2244 = vmatprep.subr.mxu0 0.0
        %2245 = vmatpush2.msra.mxu0 0.0
        %2246 = vmatprep.subr.mxu0 0.0
        %2247 = vmatpush2.msra.mxu0 0.0
        %2248 = vmatprep.subr.mxu0 0.0
        %2249 = vmatpush2.msra.mxu0 0.0
        %2250 = vmatprep.subr.mxu0 0.0
        %2251 = vmatpush2.msra.mxu0 0.0
        %2252 = vmatprep.subr.mxu0 0.0
        %2253 = vmatpush2.msra.mxu0 0.0
        %2254 = vmatprep.subr.mxu0 0.0
        %2255 = vmatpush2.msra.mxu0 0.0
        %2256 = vmatprep.subr.mxu0 0.0
        %2257 = vmatpush2.msra.mxu0 0.0
        %2258 = vmatprep.subr.mxu0 0.0
        %2259 = vmatpush2.msra.mxu0 0.0
        %2260 = vmatprep.subr.mxu0 0.0
        %2261 = vmatpush2.msra.mxu0 0.0
        %2262 = vmatprep.subr.mxu0 0.0
        %2263 = vmatpush2.msra.mxu0 0.0
        %2264 = vmatprep.mubr.f32.mxu0 0.0
        %2265 = vmatmul.mubr.f32.gmra.mxu0 %v2198
        %v2266 = vpop.f32.mrf.mxu0
        %v2267 = vadd.f32 %v2194, %v2266
        %v2268 = vpop.f32.mrf.mxu0
        %2269 = vdwg.mxu0
        %v2270 = vld [vmem:[%s45] sm:$0x1]
        %v2272 = vlaneseq
        %v2273 = vshrl.u32 %v2272, 7
        %v2274 = vsub.s32 0, %v2273
        %v2275 = vrot.slane %v2270, %v2274
        %v2277 = vadd.f32 %v2267, %v2275
        %v2278 = vmax.f32 %v2277, 0.0
        %v2279 = vadd.f32 %v2278, %v1953
        %2280 = vrot.lane.b32.xlu0 %v2117, 16
        %v2281 = vpop.permute.xlu0 %2280
        %v2283 = vadd.f32 %v2278, %v2281
        %v2284 = vld [vmem:[%s47] sm:$0xff]
        %v2285 = vld [vmem:[%s47 + $0x8] sm:$0xff]
        %v2286 = vld [vmem:[%s47 + $0x10] sm:$0xff]
        %v2287 = vld [vmem:[%s47 + $0x18] sm:$0xff]
        %v2288 = vld [vmem:[%s47 + $0x20] sm:$0xff]
        %v2289 = vld [vmem:[%s47 + $0x28] sm:$0xff]
        %v2290 = vld [vmem:[%s47 + $0x30] sm:$0xff]
        %v2291 = vld [vmem:[%s47 + $0x38] sm:$0xff]
        %v2293 = vsel %vm1882, %v2279, 0
        %2295 = vmatprep.subr.mxu0 0.0
        %2296 = vmatpush1.msra.mxu0 0.0
        %2297 = vmatprep.subr.mxu0 0.0
        %2298 = vmatpush1.msra.mxu0 0.0
        %2299 = vmatprep.subr.mxu0 0.0
        %2300 = vmatpush1.msra.mxu0 0.0
        %2301 = vmatprep.subr.mxu0 0.0
        %2302 = vmatpush1.msra.mxu0 0.0
        %2303 = vmatprep.subr.mxu0 0.0
        %2304 = vmatpush1.msra.mxu0 0.0
        %2305 = vmatprep.subr.mxu0 0.0
        %2306 = vmatpush1.msra.mxu0 0.0
        %2307 = vmatprep.subr.mxu0 0.0
        %2308 = vmatpush1.msra.mxu0 0.0
        %2309 = vmatprep.subr.mxu0 0.0
        %2310 = vmatpush1.msra.mxu0 0.0
        %2311 = vmatprep.subr.mxu0 0.0
        %2312 = vmatpush1.msra.mxu0 0.0
        %2313 = vmatprep.subr.mxu0 0.0
        %2314 = vmatpush1.msra.mxu0 0.0
        %2315 = vmatprep.subr.mxu0 0.0
        %2316 = vmatpush1.msra.mxu0 0.0
        %2317 = vmatprep.subr.mxu0 0.0
        %2318 = vmatpush1.msra.mxu0 0.0
        %2319 = vmatprep.subr.mxu0 0.0
        %2320 = vmatpush1.msra.mxu0 0.0
        %2321 = vmatprep.subr.mxu0 0.0
        %2322 = vmatpush1.msra.mxu0 0.0
        %2323 = vmatprep.subr.mxu0 0.0
        %2324 = vmatpush1.msra.mxu0 %v2289
        %2325 = vmatprep.subr.mxu0 0.0
        %2326 = vmatpush1.msra.mxu0 %v2288
        %2327 = vmatprep.subr.mxu0 0.0
        %2328 = vmatpush2.msra.mxu0 0.0
        %2329 = vmatprep.subr.mxu0 0.0
        %2330 = vmatpush2.msra.mxu0 0.0
        %2331 = vmatprep.subr.mxu0 0.0
        %2332 = vmatpush2.msra.mxu0 0.0
        %2333 = vmatprep.subr.mxu0 0.0
        %2334 = vmatpush2.msra.mxu0 0.0
        %2335 = vmatprep.subr.mxu0 0.0
        %2336 = vmatpush2.msra.mxu0 0.0
        %2337 = vmatprep.subr.mxu0 0.0
        %2338 = vmatpush2.msra.mxu0 0.0
        %2339 = vmatprep.subr.mxu0 0.0
        %2340 = vmatpush2.msra.mxu0 0.0
        %2341 = vmatprep.subr.mxu0 0.0
        %2342 = vmatpush2.msra.mxu0 0.0
        %2343 = vmatprep.subr.mxu0 0.0
        %2344 = vmatpush2.msra.mxu0 0.0
        %2345 = vmatprep.subr.mxu0 0.0
        %2346 = vmatpush2.msra.mxu0 0.0
        %2347 = vmatprep.subr.mxu0 0.0
        %2348 = vmatpush2.msra.mxu0 0.0
        %2349 = vmatprep.subr.mxu0 0.0
        %2350 = vmatpush2.msra.mxu0 0.0
        %2351 = vmatprep.subr.mxu0 0.0
        %2352 = vmatpush2.msra.mxu0 0.0
        %2353 = vmatprep.subr.mxu0 0.0
        %2354 = vmatpush2.msra.mxu0 0.0
        %2355 = vmatprep.subr.mxu0 0.0
        %2356 = vmatpush2.msra.mxu0 0.0
        %2357 = vmatprep.subr.mxu0 0.0
        %2358 = vmatpush2.msra.mxu0 0.0
        %2359 = vmatprep.mubr.f32.mxu0 0.0
        %2360 = vmatmul.mubr.f32.gmra.mxu0 %v2293
        %v2361 = vpop.f32.mrf.mxu0
        %v2362 = vadd.f32 0.0, %v2361
        %v2363 = vpop.f32.mrf.mxu0
        %2364 = vdwg.mxu0
        %v2366 = vsel %vm1190, %v1782, 0
        %2368 = vmatprep.subr.mxu0 0.0
        %2369 = vmatpush1.msra.mxu0 0.0
        %2370 = vmatprep.subr.mxu0 0.0
        %2371 = vmatpush1.msra.mxu0 0.0
        %2372 = vmatprep.subr.mxu0 0.0
        %2373 = vmatpush1.msra.mxu0 0.0
        %2374 = vmatprep.subr.mxu0 0.0
        %2375 = vmatpush1.msra.mxu0 0.0
        %2376 = vmatprep.subr.mxu0 0.0
        %2377 = vmatpush1.msra.mxu0 0.0
        %2378 = vmatprep.subr.mxu0 0.0
        %2379 = vmatpush1.msra.mxu0 0.0
        %2380 = vmatprep.subr.mxu0 0.0
        %2381 = vmatpush1.msra.mxu0 0.0
        %2382 = vmatprep.subr.mxu0 0.0
        %2383 = vmatpush1.msra.mxu0 0.0
        %2384 = vmatprep.subr.mxu0 0.0
        %2385 = vmatpush1.msra.mxu0 0.0
        %2386 = vmatprep.subr.mxu0 0.0
        %2387 = vmatpush1.msra.mxu0 0.0
        %2388 = vmatprep.subr.mxu0 0.0
        %2389 = vmatpush1.msra.mxu0 0.0
        %2390 = vmatprep.subr.mxu0 0.0
        %2391 = vmatpush1.msra.mxu0 0.0
        %2392 = vmatprep.subr.mxu0 0.0
        %2393 = vmatpush1.msra.mxu0 %v2287
        %2394 = vmatprep.subr.mxu0 0.0
        %2395 = vmatpush1.msra.mxu0 %v2286
        %2396 = vmatprep.subr.mxu0 0.0
        %2397 = vmatpush1.msra.mxu0 %v2285
        %2398 = vmatprep.subr.mxu0 0.0
        %2399 = vmatpush1.msra.mxu0 %v2284
        %2400 = vmatprep.subr.mxu0 0.0
        %2401 = vmatpush2.msra.mxu0 0.0
        %2402 = vmatprep.subr.mxu0 0.0
        %2403 = vmatpush2.msra.mxu0 0.0
        %2404 = vmatprep.subr.mxu0 0.0
        %2405 = vmatpush2.msra.mxu0 0.0
        %2406 = vmatprep.subr.mxu0 0.0
        %2407 = vmatpush2.msra.mxu0 0.0
        %2408 = vmatprep.subr.mxu0 0.0
        %2409 = vmatpush2.msra.mxu0 0.0
        %2410 = vmatprep.subr.mxu0 0.0
        %2411 = vmatpush2.msra.mxu0 0.0
        %2412 = vmatprep.subr.mxu0 0.0
        %2413 = vmatpush2.msra.mxu0 0.0
        %2414 = vmatprep.subr.mxu0 0.0
        %2415 = vmatpush2.msra.mxu0 0.0
        %2416 = vmatprep.subr.mxu0 0.0
        %2417 = vmatpush2.msra.mxu0 0.0
        %2418 = vmatprep.subr.mxu0 0.0
        %2419 = vmatpush2.msra.mxu0 0.0
        %2420 = vmatprep.subr.mxu0 0.0
        %2421 = vmatpush2.msra.mxu0 0.0
        %2422 = vmatprep.subr.mxu0 0.0
        %2423 = vmatpush2.msra.mxu0 0.0
        %2424 = vmatprep.subr.mxu0 0.0
        %2425 = vmatpush2.msra.mxu0 0.0
        %2426 = vmatprep.subr.mxu0 0.0
        %2427 = vmatpush2.msra.mxu0 0.0
        %2428 = vmatprep.subr.mxu0 0.0
        %2429 = vmatpush2.msra.mxu0 0.0
        %2430 = vmatprep.subr.mxu0 0.0
        %2431 = vmatpush2.msra.mxu0 0.0
        %2432 = vmatprep.mubr.f32.mxu0 0.0
        %2433 = vmatmul.mubr.f32.gmra.mxu0 %v2366
        %v2434 = vpop.f32.mrf.mxu0
        %v2435 = vadd.f32 %v2362, %v2434
        %v2436 = vpop.f32.mrf.mxu0
        %2437 = vdwg.mxu0
        %2439 = vrot.lane.b32.xlu0 %v2283, 112
        %v2440 = vpop.permute.xlu0 %2439
        %v2441 = vsel %vm1882, %v2440, 0
        %2443 = vmatprep.subr.mxu0 0.0
        %2444 = vmatpush1.msra.mxu0 0.0
        %2445 = vmatprep.subr.mxu0 0.0
        %2446 = vmatpush1.msra.mxu0 0.0
        %2447 = vmatprep.subr.mxu0 0.0
        %2448 = vmatpush1.msra.mxu0 0.0
        %2449 = vmatprep.subr.mxu0 0.0
        %2450 = vmatpush1.msra.mxu0 0.0
        %2451 = vmatprep.subr.mxu0 0.0
        %2452 = vmatpush1.msra.mxu0 0.0
        %2453 = vmatprep.subr.mxu0 0.0
        %2454 = vmatpush1.msra.mxu0 0.0
        %2455 = vmatprep.subr.mxu0 0.0
        %2456 = vmatpush1.msra.mxu0 0.0
        %2457 = vmatprep.subr.mxu0 0.0
        %2458 = vmatpush1.msra.mxu0 0.0
        %2459 = vmatprep.subr.mxu0 0.0
        %2460 = vmatpush1.msra.mxu0 0.0
        %2461 = vmatprep.subr.mxu0 0.0
        %2462 = vmatpush1.msra.mxu0 0.0
        %2463 = vmatprep.subr.mxu0 0.0
        %2464 = vmatpush1.msra.mxu0 0.0
        %2465 = vmatprep.subr.mxu0 0.0
        %2466 = vmatpush1.msra.mxu0 0.0
        %2467 = vmatprep.subr.mxu0 0.0
        %2468 = vmatpush1.msra.mxu0 0.0
        %2469 = vmatprep.subr.mxu0 0.0
        %2470 = vmatpush1.msra.mxu0 0.0
        %2471 = vmatprep.subr.mxu0 0.0
        %2472 = vmatpush1.msra.mxu0 %v2291
        %2473 = vmatprep.subr.mxu0 0.0
        %2474 = vmatpush1.msra.mxu0 %v2290
        %2475 = vmatprep.subr.mxu0 0.0
        %2476 = vmatpush2.msra.mxu0 0.0
        %2477 = vmatprep.subr.mxu0 0.0
        %2478 = vmatpush2.msra.mxu0 0.0
        %2479 = vmatprep.subr.mxu0 0.0
        %2480 = vmatpush2.msra.mxu0 0.0
        %2481 = vmatprep.subr.mxu0 0.0
        %2482 = vmatpush2.msra.mxu0 0.0
        %2483 = vmatprep.subr.mxu0 0.0
        %2484 = vmatpush2.msra.mxu0 0.0
        %2485 = vmatprep.subr.mxu0 0.0
        %2486 = vmatpush2.msra.mxu0 0.0
        %2487 = vmatprep.subr.mxu0 0.0
        %2488 = vmatpush2.msra.mxu0 0.0
        %2489 = vmatprep.subr.mxu0 0.0
        %2490 = vmatpush2.msra.mxu0 0.0
        %2491 = vmatprep.subr.mxu0 0.0
        %2492 = vmatpush2.msra.mxu0 0.0
        %2493 = vmatprep.subr.mxu0 0.0
        %2494 = vmatpush2.msra.mxu0 0.0
        %2495 = vmatprep.subr.mxu0 0.0
        %2496 = vmatpush2.msra.mxu0 0.0
        %2497 = vmatprep.subr.mxu0 0.0
        %2498 = vmatpush2.msra.mxu0 0.0
        %2499 = vmatprep.subr.mxu0 0.0
        %2500 = vmatpush2.msra.mxu0 0.0
        %2501 = vmatprep.subr.mxu0 0.0
        %2502 = vmatpush2.msra.mxu0 0.0
        %2503 = vmatprep.subr.mxu0 0.0
        %2504 = vmatpush2.msra.mxu0 0.0
        %2505 = vmatprep.subr.mxu0 0.0
        %2506 = vmatpush2.msra.mxu0 0.0
        %2507 = vmatprep.mubr.f32.mxu0 0.0
        %2508 = vmatmul.mubr.f32.gmra.mxu0 %v2441
        %v2509 = vpop.f32.mrf.mxu0
        %v2510 = vadd.f32 0.0, %v2509
        %v2511 = vpop.f32.mrf.mxu0
        %2512 = vdwg.mxu0
        %v2513 = vadd.f32 %v2435, %v2510
        %v2514 = vld [vmem:[%s49] sm:$0x1]
        %v2516 = vlaneseq
        %v2517 = vshrl.u32 %v2516, 7
        %v2518 = vsub.s32 0, %v2517
        %v2519 = vrot.slane %v2514, %v2518
        %v2521 = vadd.f32 %v2513, %v2519
        %v2522 = vmax.f32 %v2521, 0.0
        %v2523 = vld [vmem:[%s51] sm:$0xff]
        %v2524 = vld [vmem:[%s51 + $0x8] sm:$0xff]
        %v2525 = vld [vmem:[%s51 + $0x10] sm:$0xff]
        %v2526 = vld [vmem:[%s51 + $0x18] sm:$0xff]
        %v2527 = vld [vmem:[%s53] sm:$0x1]
        %v2529 = vlaneseq
        %v2530 = vshrl.u32 %v2529, 7
        %v2531 = vsub.s32 0, %v2530
        %v2532 = vrot.slane %v2527, %v2531
        %v2535 = vsel %vm1190, %v2522, 0
        %2537 = vmatprep.subr.mxu0 0.0
        %2538 = vmatpush1.msra.mxu0 0.0
        %2539 = vmatprep.subr.mxu0 0.0
        %2540 = vmatpush1.msra.mxu0 0.0
        %2541 = vmatprep.subr.mxu0 0.0
        %2542 = vmatpush1.msra.mxu0 0.0
        %2543 = vmatprep.subr.mxu0 0.0
        %2544 = vmatpush1.msra.mxu0 0.0
        %2545 = vmatprep.subr.mxu0 0.0
        %2546 = vmatpush1.msra.mxu0 0.0
        %2547 = vmatprep.subr.mxu0 0.0
        %2548 = vmatpush1.msra.mxu0 0.0
        %2549 = vmatprep.subr.mxu0 0.0
        %2550 = vmatpush1.msra.mxu0 0.0
        %2551 = vmatprep.subr.mxu0 0.0
        %2552 = vmatpush1.msra.mxu0 0.0
        %2553 = vmatprep.subr.mxu0 0.0
        %2554 = vmatpush1.msra.mxu0 0.0
        %2555 = vmatprep.subr.mxu0 0.0
        %2556 = vmatpush1.msra.mxu0 0.0
        %2557 = vmatprep.subr.mxu0 0.0
        %2558 = vmatpush1.msra.mxu0 0.0
        %2559 = vmatprep.subr.mxu0 0.0
        %2560 = vmatpush1.msra.mxu0 0.0
        %2561 = vmatprep.subr.mxu0 0.0
        %2562 = vmatpush1.msra.mxu0 %v2526
        %2563 = vmatprep.subr.mxu0 0.0
        %2564 = vmatpush1.msra.mxu0 %v2525
        %2565 = vmatprep.subr.mxu0 0.0
        %2566 = vmatpush1.msra.mxu0 %v2524
        %2567 = vmatprep.subr.mxu0 0.0
        %2568 = vmatpush1.msra.mxu0 %v2523
        %2569 = vmatprep.subr.mxu0 0.0
        %2570 = vmatpush2.msra.mxu0 0.0
        %2571 = vmatprep.subr.mxu0 0.0
        %2572 = vmatpush2.msra.mxu0 0.0
        %2573 = vmatprep.subr.mxu0 0.0
        %2574 = vmatpush2.msra.mxu0 0.0
        %2575 = vmatprep.subr.mxu0 0.0
        %2576 = vmatpush2.msra.mxu0 0.0
        %2577 = vmatprep.subr.mxu0 0.0
        %2578 = vmatpush2.msra.mxu0 0.0
        %2579 = vmatprep.subr.mxu0 0.0
        %2580 = vmatpush2.msra.mxu0 0.0
        %2581 = vmatprep.subr.mxu0 0.0
        %2582 = vmatpush2.msra.mxu0 0.0
        %2583 = vmatprep.subr.mxu0 0.0
        %2584 = vmatpush2.msra.mxu0 0.0
        %2585 = vmatprep.subr.mxu0 0.0
        %2586 = vmatpush2.msra.mxu0 0.0
        %2587 = vmatprep.subr.mxu0 0.0
        %2588 = vmatpush2.msra.mxu0 0.0
        %2589 = vmatprep.subr.mxu0 0.0
        %2590 = vmatpush2.msra.mxu0 0.0
        %2591 = vmatprep.subr.mxu0 0.0
        %2592 = vmatpush2.msra.mxu0 0.0
        %2593 = vmatprep.subr.mxu0 0.0
        %2594 = vmatpush2.msra.mxu0 0.0
        %2595 = vmatprep.subr.mxu0 0.0
        %2596 = vmatpush2.msra.mxu0 0.0
        %2597 = vmatprep.subr.mxu0 0.0
        %2598 = vmatpush2.msra.mxu0 0.0
        %2599 = vmatprep.subr.mxu0 0.0
        %2600 = vmatpush2.msra.mxu0 0.0
        %2601 = vmatprep.mubr.f32.mxu0 0.0
        %2602 = vmatmul.mubr.f32.gmra.mxu0 %v2535
        %v2603 = vpop.f32.mrf.mxu0
        %v2604 = vadd.f32 %v2532, %v2603
        %v2605 = vpop.f32.mrf.mxu0
        %2606 = vdwg.mxu0
        %v2607 = vld [vmem:[%s55] sm:$0xff]
        %v2608 = vld [vmem:[%s55 + $0x8] sm:$0xff]
        %v2609 = vld [vmem:[%s55 + $0x10] sm:$0xff]
        %v2610 = vld [vmem:[%s55 + $0x18] sm:$0xff]
        %v2611 = vld [vmem:[%s57] sm:$0x1]
        %v2613 = vlaneseq
        %v2614 = vshrl.u32 %v2613, 7
        %v2615 = vsub.s32 0, %v2614
        %v2616 = vrot.slane %v2611, %v2615
        %v2619 = vsel %vm1190, %v2604, 0
        %2621 = vmatprep.subr.mxu0 0.0
        %2622 = vmatpush1.msra.mxu0 0.0
        %2623 = vmatprep.subr.mxu0 0.0
        %2624 = vmatpush1.msra.mxu0 0.0
        %2625 = vmatprep.subr.mxu0 0.0
        %2626 = vmatpush1.msra.mxu0 0.0
        %2627 = vmatprep.subr.mxu0 0.0
        %2628 = vmatpush1.msra.mxu0 0.0
        %2629 = vmatprep.subr.mxu0 0.0
        %2630 = vmatpush1.msra.mxu0 0.0
        %2631 = vmatprep.subr.mxu0 0.0
        %2632 = vmatpush1.msra.mxu0 0.0
        %2633 = vmatprep.subr.mxu0 0.0
        %2634 = vmatpush1.msra.mxu0 0.0
        %2635 = vmatprep.subr.mxu0 0.0
        %2636 = vmatpush1.msra.mxu0 0.0
        %2637 = vmatprep.subr.mxu0 0.0
        %2638 = vmatpush1.msra.mxu0 0.0
        %2639 = vmatprep.subr.mxu0 0.0
        %2640 = vmatpush1.msra.mxu0 0.0
        %2641 = vmatprep.subr.mxu0 0.0
        %2642 = vmatpush1.msra.mxu0 0.0
        %2643 = vmatprep.subr.mxu0 0.0
        %2644 = vmatpush1.msra.mxu0 0.0
        %2645 = vmatprep.subr.mxu0 0.0
        %2646 = vmatpush1.msra.mxu0 %v2610
        %2647 = vmatprep.subr.mxu0 0.0
        %2648 = vmatpush1.msra.mxu0 %v2609
        %2649 = vmatprep.subr.mxu0 0.0
        %2650 = vmatpush1.msra.mxu0 %v2608
        %2651 = vmatprep.subr.mxu0 0.0
        %2652 = vmatpush1.msra.mxu0 %v2607
        %2653 = vmatprep.subr.mxu0 0.0
        %2654 = vmatpush2.msra.mxu0 0.0
        %2655 = vmatprep.subr.mxu0 0.0
        %2656 = vmatpush2.msra.mxu0 0.0
        %2657 = vmatprep.subr.mxu0 0.0
        %2658 = vmatpush2.msra.mxu0 0.0
        %2659 = vmatprep.subr.mxu0 0.0
        %2660 = vmatpush2.msra.mxu0 0.0
        %2661 = vmatprep.subr.mxu0 0.0
        %2662 = vmatpush2.msra.mxu0 0.0
        %2663 = vmatprep.subr.mxu0 0.0
        %2664 = vmatpush2.msra.mxu0 0.0
        %2665 = vmatprep.subr.mxu0 0.0
        %2666 = vmatpush2.msra.mxu0 0.0
        %2667 = vmatprep.subr.mxu0 0.0
        %2668 = vmatpush2.msra.mxu0 0.0
        %2669 = vmatprep.subr.mxu0 0.0
        %2670 = vmatpush2.msra.mxu0 0.0
        %2671 = vmatprep.subr.mxu0 0.0
        %2672 = vmatpush2.msra.mxu0 0.0
        %2673 = vmatprep.subr.mxu0 0.0
        %2674 = vmatpush2.msra.mxu0 0.0
        %2675 = vmatprep.subr.mxu0 0.0
        %2676 = vmatpush2.msra.mxu0 0.0
        %2677 = vmatprep.subr.mxu0 0.0
        %2678 = vmatpush2.msra.mxu0 0.0
        %2679 = vmatprep.subr.mxu0 0.0
        %2680 = vmatpush2.msra.mxu0 0.0
        %2681 = vmatprep.subr.mxu0 0.0
        %2682 = vmatpush2.msra.mxu0 0.0
        %2683 = vmatprep.subr.mxu0 0.0
        %2684 = vmatpush2.msra.mxu0 0.0
        %2685 = vmatprep.mubr.f32.mxu0 0.0
        %2686 = vmatmul.mubr.f32.gmra.mxu0 %v2619
        %v2687 = vpop.f32.mrf.mxu0
        %v2688 = vadd.f32 %v2616, %v2687
        %v2689 = vpop.f32.mrf.mxu0
        %2690 = vdwg.mxu0
        %2691 = vst [vmem:[%s1039] sm:$0xff] %v2688
        %p2692 = scmp.lt.s32.totalorder %s70, 1
        %s2693 = scalar_select %p2692, %s70, 1
        %s2694 = smul.addr %s2693, 8
        %s2695 = scalar_lea.vmem %s59, %s2694
        // Predicated region
        $region213: #{base_sim_model3_forward.1} parent=203 // pred_check
          %p2696 = pneg %p712
        $region214: #{base_sim_model3_forward.1} parent=203 // pred_check_branch
          %2698 = sbr.rel (%p2696) target = $region216
        $region215: #{base_sim_model3_forward.1} parent=203 // pred_region
          _
        $region216: #{base_sim_model3_forward.1} parent=203 // pred_fallthru
          _
      $region204: #{base_sim_model3_forward.1} parent=5 // pred_fallthru
        _
      %p2699 = scmp.le.s32.totalorder 2, %s65
      // Predicated region
      $region217: #{base_sim_model3_forward.1} parent=5 // pred_check
        %p2700 = pneg %p2699
      $region218: #{base_sim_model3_forward.1} parent=5 // pred_check_branch
        %2702 = sbr.rel (%p2700) target = $region220
      $region219: #{base_sim_model3_forward.1} parent=5 // pred_region
        %s2703 = ssub.s32 %s65, 2
        // Predicated region
        $region221: #{base_sim_model3_forward.1} parent=219 // pred_check
          %p2704 = pneg %p718
        $region222: #{base_sim_model3_forward.1} parent=219 // pred_check_branch
          %2706 = sbr.rel (%p2704) target = $region224
        $region223: #{base_sim_model3_forward.1} parent=219 // pred_region
          %p2707 = scmp.lt.s32.totalorder %s71, 1
          %s2708 = scalar_select %p2707, %s71, 1
          %s2709 = smul.addr %s2708, 8
          %s2710 = scalar_lea.vmem %s59, %s2709
        $region224: #{base_sim_model3_forward.1} parent=219 // pred_fallthru
          _
      $region220: #{base_sim_model3_forward.1} parent=5 // pred_fallthru
        _
    $region6: #{base_sim_model3_forward.1} parent=1 // loop_footer
      %s69 = sadd.s32 1, %s65
    $region7: #{base_sim_model3_forward.1} parent=1 // loop_footer_branch
      %64 = sbr.rel target = $region3
    $region8: #{base_sim_model3_forward.1} parent=1 // loop_exit
      _

</llo_original>
